<compile_context>
chip_gen: v6e
topology: v6e:2x2x1
jax: 0.10.0
libtpu: 0.0.40
codegen_flags: <defaults>
</compile_context>

<pallas_src>
import numpy as np
import jax
import jax.numpy as jnp
from jax.experimental import pallas as pl
from jax.experimental.pallas import tpu as pltpu

_VMEM_LIMIT = 32 * 1024 * 1024  # explicit, safe on v5e/v6e/v7x


def _round_up(a, m):
    return (a + m - 1) // m * m


# ----------------------- tiled conv matmul (im2col GEMM) -------------------- #

def conv_matmul(patches, w2, bias, residual=None):
    """out[b] = w2 @ patches[b] + bias (+ residual[b]).

    patches : (B, K, N)  bf16/f32   (K = Cin*KH*KW, N = Ho*Wo on the lane axis)
    w2      : (Cout, K)
    bias    : (Cout,)
    residual: (B, Cout, N) f32 or None (fused into the epilogue)
    returns : (B, Cout, N) float32
    """
    B, K, N = patches.shape
    Cout = w2.shape[0]

    Cp = _round_up(Cout, 8)                       # sublane-aligned rows
    Np = _round_up(N, 128)                        # lane-dense columns
    tn = min(512, Np)
    while Np % tn:
        tn -= 128
    if K <= 512:                                  # single K step, full-dim block
        Kp = tk = K
    else:
        Kp = _round_up(K, 128)
        tk = 512
        while Kp % tk:
            tk -= 128

    p = jnp.pad(patches.astype(jnp.bfloat16), ((0, 0), (0, Kp - K), (0, Np - N)))
    w = jnp.pad(w2.astype(jnp.bfloat16), ((0, Cp - Cout), (0, Kp - K)))
    bz = jnp.pad(bias.astype(jnp.float32).reshape(Cout, 1), ((0, Cp - Cout), (0, 0)))

    inputs = [w, p, bz]
    in_specs = [
        pl.BlockSpec((Cp, tk), lambda b, n, k: (0, k)),
        pl.BlockSpec((1, tk, tn), lambda b, n, k: (b, k, n)),
        pl.BlockSpec((Cp, 1), lambda b, n, k: (0, 0)),
    ]
    has_res = residual is not None
    if has_res:
        r = jnp.pad(residual.astype(jnp.float32),
                    ((0, 0), (0, Cp - Cout), (0, Np - N)))
        inputs.append(r)
        in_specs.append(pl.BlockSpec((1, Cp, tn), lambda b, n, k: (b, 0, n)))

    def kernel(*refs):
        if has_res:
            w_ref, p_ref, b_ref, r_ref, o_ref, acc_ref = refs
        else:
            w_ref, p_ref, b_ref, o_ref, acc_ref = refs

        @pl.when(pl.program_id(2) == 0)
        def _():
            acc_ref[...] = jnp.zeros_like(acc_ref)

        acc_ref[...] += jnp.dot(w_ref[...], p_ref[0],
                                preferred_element_type=jnp.float32)

        @pl.when(pl.program_id(2) == pl.num_programs(2) - 1)
        def _():
            out = acc_ref[...] + b_ref[...]
            if has_res:
                out = out + r_ref[0]
            o_ref[0] = out.astype(o_ref.dtype)

    outp = pl.pallas_call(
        kernel,
        out_shape=jax.ShapeDtypeStruct((B, Cp, Np), jnp.float32),
        grid=(B, Np // tn, Kp // tk),
        in_specs=in_specs,
        out_specs=pl.BlockSpec((1, Cp, tn), lambda b, n, k: (b, 0, n)),
        scratch_shapes=[pltpu.VMEM((Cp, tn), jnp.float32)],
        compiler_params=pltpu.CompilerParams(
            dimension_semantics=("parallel", "parallel", "arbitrary"),
            vmem_limit_bytes=_VMEM_LIMIT),
    )(*inputs)
    return outp[:, :Cout, :N]


def _im2col(x, KH, KW, padding):
    """NCHW -> (B, Cin*KH*KW, Ho*Wo) patches in bf16 (tap index = kh*KW+kw)."""
    x = x.astype(jnp.bfloat16)
    B, Cin, H, W = x.shape
    if padding:
        x = jnp.pad(x, ((0, 0), (0, 0), (padding, padding), (padding, padding)))
    Ho = H + 2 * padding - KH + 1
    Wo = W + 2 * padding - KW + 1
    cols = [x[:, :, kh:kh + Ho, kw:kw + Wo]
            for kh in range(KH) for kw in range(KW)]
    p = jnp.stack(cols, axis=2)                      # (B, Cin, KH*KW, Ho, Wo)
    return p.reshape(B, Cin * KH * KW, Ho * Wo)


def conv2d_nchw(x, w, b, padding=0):
    B, Cin, H, W = x.shape
    Cout, _, KH, KW = w.shape
    Ho = H + 2 * padding - KH + 1
    Wo = W + 2 * padding - KW + 1
    patches = _im2col(x, KH, KW, padding)
    out = conv_matmul(patches, w.reshape(Cout, -1), b)
    return out.reshape(B, Cout, Ho, Wo)


def final_conv(branches, w, b, residual):
    """Conv(3C->C, 3x3, pad 1) over the implicit channel concat of `branches`,
    with the residual add fused into the matmul epilogue."""
    B, _, H, W = branches[0].shape
    Cout, _, KH, KW = w.shape
    patches = jnp.concatenate([_im2col(t, KH, KW, 1) for t in branches], axis=1)
    out = conv_matmul(patches, w.reshape(Cout, -1), b,
                      residual=residual.reshape(B, Cout, H * W))
    return out.reshape(B, Cout, H, W)


# -------------------- fused separable map (blur / upsample) ----------------- #

def _sep_kernel(x_ref, rh_ref, rwt_ref, o_ref):
    xi = x_ref[0, 0]                                               # (H, W)
    t = jnp.dot(xi, rwt_ref[...], preferred_element_type=jnp.float32)   # (H, Wo)
    o_ref[0, 0] = jnp.dot(rh_ref[...], t,
                          preferred_element_type=jnp.float32)      # (Ho, Wo)


def separable_map(x, rh, rw):
    """out[b, c] = rh @ x[b, c] @ rw.T — one fused kernel for BlurPool2d and
    bilinear upsampling (both are separable linear maps per channel)."""
    B, C, H, W = x.shape
    Ho, Wo = rh.shape[0], rw.shape[0]
    return pl.pallas_call(
        _sep_kernel,
        out_shape=jax.ShapeDtypeStruct((B, C, Ho, Wo), jnp.float32),
        grid=(B, C),
        in_specs=[pl.BlockSpec((1, 1, H, W), lambda b, c: (b, c, 0, 0)),
                  pl.BlockSpec((Ho, H), lambda b, c: (0, 0)),
                  pl.BlockSpec((W, Wo), lambda b, c: (0, 0))],
        out_specs=pl.BlockSpec((1, 1, Ho, Wo), lambda b, c: (b, c, 0, 0)),
        compiler_params=pltpu.CompilerParams(
            dimension_semantics=("parallel", "parallel"),
            vmem_limit_bytes=_VMEM_LIMIT),
    )(x.astype(jnp.float32), rh.astype(jnp.float32), rw.T.astype(jnp.float32))


def _blur_matrix(size, stride):
    """Fold timm BlurPool2d (filt_size=3, reflect pad, stride) along one axis
    into a dense (out, in) matrix."""
    k = np.array([0.25, 0.5, 0.25], np.float64)
    pad = ((stride - 1) + 2) // 2
    out_size = (size + 2 * pad - 3) // stride + 1
    D = np.zeros((out_size, size), np.float32)
    for i in range(out_size):
        for t in range(3):
            p = i * stride + t - pad
            if p < 0:
                p = -p                       # PyTorch 'reflect': -1 -> 1
            if p >= size:
                p = 2 * size - 2 - p         # size -> size-2
            D[i, p] += k[t]
    return jnp.asarray(D)


def _upsample_matrix(in_size, out_size):
    """PyTorch bilinear, align_corners=False (half-pixel) interpolation weights."""
    scale = in_size / out_size
    i = np.arange(out_size)
    src = np.maximum((i + 0.5) * scale - 0.5, 0.0)
    i0 = np.minimum(np.floor(src).astype(np.int64), in_size - 1)
    i1 = np.minimum(i0 + 1, in_size - 1)
    lam = src - i0
    R = np.zeros((out_size, in_size), np.float32)
    R[i, i0] += (1.0 - lam)
    R[i, i1] += lam
    return jnp.asarray(R)


# ----------------------------------- FCA ------------------------------------ #

def _fca_kernel(x_ref, m_ref, o_ref):
    # x block: (1, C, H*W)  — H*W lane-dense; gridded (parallel) over B.
    x = x_ref[...]
    y = jnp.mean(x, axis=-1)                                        # (1, C) GAP
    z = jnp.dot(y, m_ref[...], preferred_element_type=jnp.float32)  # 3-tap conv
    gate = 1.0 / (1.0 + jnp.exp(-z)) + 1.0                          # sigmoid + 1
    o_ref[...] = x * gate[:, :, None]                               # x*sig + x


def fca(x, band):
    B, C, H, W = x.shape
    HW = H * W
    xf = x.reshape(B, C, HW).astype(jnp.float32)
    out = pl.pallas_call(
        _fca_kernel,
        out_shape=jax.ShapeDtypeStruct((B, C, HW), jnp.float32),
        grid=(B,),
        in_specs=[pl.BlockSpec((1, C, HW), lambda b: (b, 0, 0)),
                  pl.BlockSpec((C, C), lambda b: (0, 0))],
        out_specs=pl.BlockSpec((1, C, HW), lambda b: (b, 0, 0)),
        compiler_params=pltpu.CompilerParams(
            dimension_semantics=("parallel",),
            vmem_limit_bytes=_VMEM_LIMIT),
    )(xf, band.astype(jnp.float32))
    return out.reshape(B, C, H, W)


def _conv1d_matrix(w3, C):
    # nn.Conv1d(1,1,k=3,pad=1,bias=False) over the channel axis, as z = y @ M.
    # Kept as a dense (C, C) band matrix: for C << 128 this is a negligible
    # 3-diagonal constant; swap to roll-based taps only when C >= 128.
    M = jnp.zeros((C, C), jnp.float32)
    M = M + jnp.diag(jnp.full((C - 1,), w3[0]), k=1)
    M = M + jnp.diag(jnp.full((C,), w3[1]), k=0)
    M = M + jnp.diag(jnp.full((C - 1,), w3[2]), k=-1)
    return M


# ------------------------------- MAB forward -------------------------------- #

def mab_forward(x, p):
    B, C, H, W = x.shape
    x = x.astype(jnp.float32)

    # Branch 1: FCA at full resolution.
    x1 = fca(x, _conv1d_matrix(p["fca1_w"], C))

    # Branch 2: BlurPool(stride=2) -> FCA -> bilinear x2 -> Conv 3x3 pad 1.
    d2 = separable_map(x, _blur_matrix(H, 2), _blur_matrix(W, 2))
    f2 = fca(d2, _conv1d_matrix(p["fca2_w"], C))
    h2, w2 = d2.shape[2], d2.shape[3]
    u2 = separable_map(f2, _upsample_matrix(h2, 2 * h2), _upsample_matrix(w2, 2 * w2))
    x2 = conv2d_nchw(u2, p["up2_w"], p["up2_b"], padding=1)

    # Branch 3: BlurPool(stride=4) -> FCA -> bilinear x4 -> Conv 5x5 pad 0.
    d3 = separable_map(x, _blur_matrix(H, 4), _blur_matrix(W, 4))
    f3 = fca(d3, _conv1d_matrix(p["fca3_w"], C))
    h3, w3 = d3.shape[2], d3.shape[3]
    u3 = separable_map(f3, _upsample_matrix(h3, 4 * h3), _upsample_matrix(w3, 4 * w3))
    x3 = conv2d_nchw(u3, p["up3_w"], p["up3_b"], padding=0)

    # Final Conv(3C -> C, 3x3, pad 1) over the implicit concat, residual fused.
    return final_conv((x1, x2, x3), p["conv_w"], p["conv_b"], residual=x)


def init_params(key, C):
    ks = jax.random.split(key, 9)

    def nrm(k, shape, scale=0.1):
        return scale * jax.random.normal(k, shape, jnp.float32)

    return {
        "fca1_w": nrm(ks[0], (3,)),
        "fca2_w": nrm(ks[1], (3,)),
        "fca3_w": nrm(ks[2], (3,)),
        "up2_w": nrm(ks[3], (C, C, 3, 3)),
        "up2_b": nrm(ks[4], (C,)),
        "up3_w": nrm(ks[5], (C, C, 5, 5)),
        "up3_b": nrm(ks[6], (C,)),
        "conv_w": nrm(ks[7], (C, 3 * C, 3, 3)),
        "conv_b": nrm(ks[8], (C,)),
    }


if __name__ == "__main__":
    key = jax.random.PRNGKey(0)
    kx, kp = jax.random.split(key)
    B, C, H, W = 2, 4, 16, 16
    x = jax.random.normal(kx, (B, C, H, W), jnp.float32)
    params = init_params(kp, C)

    out = jax.jit(mab_forward)(x, params)
    out = jax.block_until_ready(out)

    assert out.shape == (B, C, H, W), out.shape
    assert bool(jnp.all(jnp.isfinite(out)))
    print("KERNEL_OK")
</pallas_src>

<mosaic_0001>
module attributes {stable_mosaic.version = 11 : i64} {
  func.func @_sep_kernel(%arg0: i32, %arg1: i32, %arg2: memref<1x1x16x16xf32, #tpu.memory_space<vmem>>, %arg3: memref<5x16xf32, #tpu.memory_space<vmem>>, %arg4: memref<16x5xf32, #tpu.memory_space<vmem>>, %arg5: memref<1x1x5x5xf32, #tpu.memory_space<vmem>>) attributes {dimension_semantics = [#tpu.dimension_semantics<parallel>, #tpu.dimension_semantics<parallel>], iteration_bounds = array<i64: 2, 4>, scalar_prefetch = 0 : i64, scratch_operands = 0 : i64, tpu.core_type = #tpu.core_type<tc>, window_params = [{transform_indices = @transform_0, window_bounds = array<i64: 1, 1, 16, 16>}, {pipeline_mode = #tpu.pipeline_mode<synchronous>, transform_indices = @transform_1, window_bounds = array<i64: 5, 16>}, {pipeline_mode = #tpu.pipeline_mode<synchronous>, transform_indices = @transform_2, window_bounds = array<i64: 16, 5>}, {transform_indices = @transform_3, window_bounds = array<i64: 1, 1, 5, 5>}]} {
    %c0 = arith.constant 0 : index
    %c0_0 = arith.constant 0 : index
    %c0_1 = arith.constant 0 : index
    %c0_2 = arith.constant 0 : index
    %0 = vector.load %arg2[%c0, %c0_0, %c0_1, %c0_2] : memref<1x1x16x16xf32, #tpu.memory_space<vmem>>, vector<1x1x16x16xf32>
    %1 = vector.shape_cast %0 : vector<1x1x16x16xf32> to vector<16x16xf32>
    %c0_3 = arith.constant 0 : index
    %c0_4 = arith.constant 0 : index
    %2 = vector.load %arg4[%c0_3, %c0_4] : memref<16x5xf32, #tpu.memory_space<vmem>>, vector<16x5xf32>
    %cst = arith.constant dense<0.000000e+00> : vector<16x5xf32>
    %3 = tpu.matmul %1, %2, %cst {dimension_numbers = #tpu.dot_dimension_numbers<[1], [0], [0], [1], [0, 0, 1, 1], [], []>} : vector<16x16xf32>, vector<16x5xf32>, vector<16x5xf32> -> vector<16x5xf32>
    %c0_5 = arith.constant 0 : index
    %c0_6 = arith.constant 0 : index
    %4 = vector.load %arg3[%c0_5, %c0_6] : memref<5x16xf32, #tpu.memory_space<vmem>>, vector<5x16xf32>
    %cst_7 = arith.constant dense<0.000000e+00> : vector<5x5xf32>
    %5 = tpu.matmul %4, %3, %cst_7 {dimension_numbers = #tpu.dot_dimension_numbers<[1], [0], [0], [1], [0, 0, 1, 1], [], []>} : vector<5x16xf32>, vector<16x5xf32>, vector<5x5xf32> -> vector<5x5xf32>
    %c0_8 = arith.constant 0 : index
    %c0_9 = arith.constant 0 : index
    %c0_10 = arith.constant 0 : index
    %c0_11 = arith.constant 0 : index
    %6 = vector.load %arg5[%c0_8, %c0_9, %c0_10, %c0_11] : memref<1x1x5x5xf32, #tpu.memory_space<vmem>>, vector<1x1x5x5xf32>
    %7 = vector.shape_cast %6 : vector<1x1x5x5xf32> to vector<5x5xf32>
    %8 = vector.shape_cast %5 : vector<5x5xf32> to vector<1x1x5x5xf32>
    tpu.vector_store %arg5[%c0_8, %c0_9, %c0_10, %c0_11], %8 {strides = array<i32>} : memref<1x1x5x5xf32, #tpu.memory_space<vmem>>, vector<1x1x5x5xf32>,
    return
  }
  func.func @transform_0(%arg0: i32, %arg1: i32) -> (i32, i32, i32, i32) {
    %c0_i32 = arith.constant 0 : i32
    %c0_i32_0 = arith.constant 0 : i32
    %c0_i32_1 = arith.constant 0 : i32
    return %arg0, %arg1, %c0_i32, %c0_i32_0 : i32, i32, i32, i32
  }
  func.func @transform_1(%arg0: i32, %arg1: i32) -> (i32, i32) {
    %c0_i32 = arith.constant 0 : i32
    %c0_i32_0 = arith.constant 0 : i32
    %c0_i32_1 = arith.constant 0 : i32
    return %c0_i32, %c0_i32_0 : i32, i32
  }
  func.func @transform_2(%arg0: i32, %arg1: i32) -> (i32, i32) {
    %c0_i32 = arith.constant 0 : i32
    %c0_i32_0 = arith.constant 0 : i32
    %c0_i32_1 = arith.constant 0 : i32
    return %c0_i32, %c0_i32_0 : i32, i32
  }
  func.func @transform_3(%arg0: i32, %arg1: i32) -> (i32, i32, i32, i32) {
    %c0_i32 = arith.constant 0 : i32
    %c0_i32_0 = arith.constant 0 : i32
    %c0_i32_1 = arith.constant 0 : i32
    return %arg0, %arg1, %c0_i32, %c0_i32_0 : i32, i32, i32, i32
  }
}

module attributes {stable_mosaic.version = 11 : i64} {
  func.func @_fca_kernel(%arg0: i32, %arg1: memref<1x4x25xf32, #tpu.memory_space<vmem>>, %arg2: memref<4x4xf32, #tpu.memory_space<vmem>>, %arg3: memref<1x4x25xf32, #tpu.memory_space<vmem>>) attributes {dimension_semantics = [#tpu.dimension_semantics<parallel>], iteration_bounds = array<i64: 2>, scalar_prefetch = 0 : i64, scratch_operands = 0 : i64, tpu.core_type = #tpu.core_type<tc>, window_params = [{transform_indices = @transform_0, window_bounds = array<i64: 1, 4, 25>}, {pipeline_mode = #tpu.pipeline_mode<synchronous>, transform_indices = @transform_1, window_bounds = array<i64: 4, 4>}, {transform_indices = @transform_2, window_bounds = array<i64: 1, 4, 25>}]} {
    %c0 = arith.constant 0 : index
    %c0_0 = arith.constant 0 : index
    %c0_1 = arith.constant 0 : index
    %0 = vector.load %arg1[%c0, %c0_0, %c0_1] : memref<1x4x25xf32, #tpu.memory_space<vmem>>, vector<1x4x25xf32>
    %cst = arith.constant dense<0.000000e+00> : vector<1x4xf32>
    %1 = vector.multi_reduction <add>, %0, %cst [2] : vector<1x4x25xf32> to vector<1x4xf32>
    %cst_2 = arith.constant 2.500000e+01 : f32
    %2 = vector.broadcast %cst_2 : f32 to vector<1x4xf32>
    %3 = arith.divf %1, %2 : vector<1x4xf32>
    %c0_3 = arith.constant 0 : index
    %c0_4 = arith.constant 0 : index
    %4 = vector.load %arg2[%c0_3, %c0_4] : memref<4x4xf32, #tpu.memory_space<vmem>>, vector<4x4xf32>
    %cst_5 = arith.constant dense<0.000000e+00> : vector<1x4xf32>
    %5 = tpu.matmul %3, %4, %cst_5 {dimension_numbers = #tpu.dot_dimension_numbers<[1], [0], [0], [1], [0, 0, 1, 1], [], []>} : vector<1x4xf32>, vector<4x4xf32>, vector<1x4xf32> -> vector<1x4xf32>
    %cst_6 = arith.constant 0.000000e+00 : f32
    %6 = vector.broadcast %cst_6 : f32 to vector<1x4xf32>
    %7 = arith.subf %6, %5 : vector<1x4xf32>
    %8 = math.exp %7 : vector<1x4xf32>
    %cst_7 = arith.constant 1.000000e+00 : f32
    %9 = vector.broadcast %cst_7 : f32 to vector<1x4xf32>
    %10 = arith.addf %9, %8 : vector<1x4xf32>
    %cst_8 = arith.constant 1.000000e+00 : f32
    %11 = vector.broadcast %cst_8 : f32 to vector<1x4xf32>
    %12 = arith.divf %11, %10 : vector<1x4xf32>
    %cst_9 = arith.constant 1.000000e+00 : f32
    %13 = vector.broadcast %cst_9 : f32 to vector<1x4xf32>
    %14 = arith.addf %12, %13 : vector<1x4xf32>
    %15 = vector.shape_cast %14 : vector<1x4xf32> to vector<1x4x1xf32>
    %16 = vector.broadcast %15 : vector<1x4x1xf32> to vector<1x4x25xf32>
    %17 = arith.mulf %0, %16 : vector<1x4x25xf32>
    %c0_10 = arith.constant 0 : index
    %c0_11 = arith.constant 0 : index
    %c0_12 = arith.constant 0 : index
    %18 = vector.load %arg3[%c0_10, %c0_11, %c0_12] : memref<1x4x25xf32, #tpu.memory_space<vmem>>, vector<1x4x25xf32>
    tpu.vector_store %arg3[%c0_10, %c0_11, %c0_12], %17 {strides = array<i32>} : memref<1x4x25xf32, #tpu.memory_space<vmem>>, vector<1x4x25xf32>,
    return
  }
  func.func @transform_0(%arg0: i32) -> (i32, i32, i32) {
    %c0_i32 = arith.constant 0 : i32
    %c0_i32_0 = arith.constant 0 : i32
    %c0_i32_1 = arith.constant 0 : i32
    return %arg0, %c0_i32, %c0_i32_0 : i32, i32, i32
  }
  func.func @transform_1(%arg0: i32) -> (i32, i32) {
    %c0_i32 = arith.constant 0 : i32
    %c0_i32_0 = arith.constant 0 : i32
    %c0_i32_1 = arith.constant 0 : i32
    return %c0_i32, %c0_i32_0 : i32, i32
  }
  func.func @transform_2(%arg0: i32) -> (i32, i32, i32) {
    %c0_i32 = arith.constant 0 : i32
    %c0_i32_0 = arith.constant 0 : i32
    %c0_i32_1 = arith.constant 0 : i32
    return %arg0, %c0_i32, %c0_i32_0 : i32, i32, i32
  }
}

module attributes {stable_mosaic.version = 11 : i64} {
  func.func @_sep_kernel(%arg0: i32, %arg1: i32, %arg2: memref<1x1x5x5xf32, #tpu.memory_space<vmem>>, %arg3: memref<20x5xf32, #tpu.memory_space<vmem>>, %arg4: memref<5x20xf32, #tpu.memory_space<vmem>>, %arg5: memref<1x1x20x20xf32, #tpu.memory_space<vmem>>) attributes {dimension_semantics = [#tpu.dimension_semantics<parallel>, #tpu.dimension_semantics<parallel>], iteration_bounds = array<i64: 2, 4>, scalar_prefetch = 0 : i64, scratch_operands = 0 : i64, tpu.core_type = #tpu.core_type<tc>, window_params = [{transform_indices = @transform_0, window_bounds = array<i64: 1, 1, 5, 5>}, {pipeline_mode = #tpu.pipeline_mode<synchronous>, transform_indices = @transform_1, window_bounds = array<i64: 20, 5>}, {pipeline_mode = #tpu.pipeline_mode<synchronous>, transform_indices = @transform_2, window_bounds = array<i64: 5, 20>}, {transform_indices = @transform_3, window_bounds = array<i64: 1, 1, 20, 20>}]} {
    %c0 = arith.constant 0 : index
    %c0_0 = arith.constant 0 : index
    %c0_1 = arith.constant 0 : index
    %c0_2 = arith.constant 0 : index
    %0 = vector.load %arg2[%c0, %c0_0, %c0_1, %c0_2] : memref<1x1x5x5xf32, #tpu.memory_space<vmem>>, vector<1x1x5x5xf32>
    %1 = vector.shape_cast %0 : vector<1x1x5x5xf32> to vector<5x5xf32>
    %c0_3 = arith.constant 0 : index
    %c0_4 = arith.constant 0 : index
    %2 = vector.load %arg4[%c0_3, %c0_4] : memref<5x20xf32, #tpu.memory_space<vmem>>, vector<5x20xf32>
    %cst = arith.constant dense<0.000000e+00> : vector<5x20xf32>
    %3 = tpu.matmul %1, %2, %cst {dimension_numbers = #tpu.dot_dimension_numbers<[1], [0], [0], [1], [0, 0, 1, 1], [], []>} : vector<5x5xf32>, vector<5x20xf32>, vector<5x20xf32> -> vector<5x20xf32>
    %c0_5 = arith.constant 0 : index
    %c0_6 = arith.constant 0 : index
    %4 = vector.load %arg3[%c0_5, %c0_6] : memref<20x5xf32, #tpu.memory_space<vmem>>, vector<20x5xf32>
    %cst_7 = arith.constant dense<0.000000e+00> : vector<20x20xf32>
    %5 = tpu.matmul %4, %3, %cst_7 {dimension_numbers = #tpu.dot_dimension_numbers<[1], [0], [0], [1], [0, 0, 1, 1], [], []>} : vector<20x5xf32>, vector<5x20xf32>, vector<20x20xf32> -> vector<20x20xf32>
    %c0_8 = arith.constant 0 : index
    %c0_9 = arith.constant 0 : index
    %c0_10 = arith.constant 0 : index
    %c0_11 = arith.constant 0 : index
    %6 = vector.load %arg5[%c0_8, %c0_9, %c0_10, %c0_11] : memref<1x1x20x20xf32, #tpu.memory_space<vmem>>, vector<1x1x20x20xf32>
    %7 = vector.shape_cast %6 : vector<1x1x20x20xf32> to vector<20x20xf32>
    %8 = vector.shape_cast %5 : vector<20x20xf32> to vector<1x1x20x20xf32>
    tpu.vector_store %arg5[%c0_8, %c0_9, %c0_10, %c0_11], %8 {strides = array<i32>} : memref<1x1x20x20xf32, #tpu.memory_space<vmem>>, vector<1x1x20x20xf32>,
    return
  }
  func.func @transform_0(%arg0: i32, %arg1: i32) -> (i32, i32, i32, i32) {
    %c0_i32 = arith.constant 0 : i32
    %c0_i32_0 = arith.constant 0 : i32
    %c0_i32_1 = arith.constant 0 : i32
    return %arg0, %arg1, %c0_i32, %c0_i32_0 : i32, i32, i32, i32
  }
  func.func @transform_1(%arg0: i32, %arg1: i32) -> (i32, i32) {
    %c0_i32 = arith.constant 0 : i32
    %c0_i32_0 = arith.constant 0 : i32
    %c0_i32_1 = arith.constant 0 : i32
    return %c0_i32, %c0_i32_0 : i32, i32
  }
  func.func @transform_2(%arg0: i32, %arg1: i32) -> (i32, i32) {
    %c0_i32 = arith.constant 0 : i32
    %c0_i32_0 = arith.constant 0 : i32
    %c0_i32_1 = arith.constant 0 : i32
    return %c0_i32, %c0_i32_0 : i32, i32
  }
  func.func @transform_3(%arg0: i32, %arg1: i32) -> (i32, i32, i32, i32) {
    %c0_i32 = arith.constant 0 : i32
    %c0_i32_0 = arith.constant 0 : i32
    %c0_i32_1 = arith.constant 0 : i32
    return %arg0, %arg1, %c0_i32, %c0_i32_0 : i32, i32, i32, i32
  }
}

module attributes {stable_mosaic.version = 11 : i64} {
  func.func @kernel(%arg0: i32, %arg1: i32, %arg2: i32, %arg3: memref<8x100xbf16, #tpu.memory_space<vmem>>, %arg4: memref<1x100x256xbf16, #tpu.memory_space<vmem>>, %arg5: memref<8x1xf32, #tpu.memory_space<vmem>>, %arg6: memref<1x8x256xf32, #tpu.memory_space<vmem>>, %arg7: memref<8x256xf32, #tpu.memory_space<vmem>>) attributes {dimension_semantics = [#tpu.dimension_semantics<parallel>, #tpu.dimension_semantics<parallel>, #tpu.dimension_semantics<arbitrary>], iteration_bounds = array<i64: 2, 1, 1>, scalar_prefetch = 0 : i64, scratch_operands = 1 : i64, tpu.core_type = #tpu.core_type<tc>, window_params = [{transform_indices = @transform_0, window_bounds = array<i64: 8, 100>}, {transform_indices = @transform_1, window_bounds = array<i64: 1, 100, 256>}, {pipeline_mode = #tpu.pipeline_mode<synchronous>, transform_indices = @transform_2, window_bounds = array<i64: 8, 1>}, {transform_indices = @transform_3, window_bounds = array<i64: 1, 8, 256>}]} {
    %c0_i32 = arith.constant 0 : i32
    %0 = arith.cmpi eq, %arg2, %c0_i32 : i32
    %1 = arith.extui %0 : i1 to i32
    %c0_i32_0 = arith.constant 0 : i32
    %2 = arith.cmpi ne, %1, %c0_i32_0 : i32
    scf.if %2 {
      %cst_11 = arith.constant 0.000000e+00 : f32
      %13 = vector.broadcast %cst_11 : f32 to vector<8x256xf32>
      %c0_12 = arith.constant 0 : index
      %c0_13 = arith.constant 0 : index
      %14 = vector.load %arg7[%c0_12, %c0_13] : memref<8x256xf32, #tpu.memory_space<vmem>>, vector<8x256xf32>
      tpu.vector_store %arg7[%c0_12, %c0_13], %13 {strides = array<i32>} : memref<8x256xf32, #tpu.memory_space<vmem>>, vector<8x256xf32>,
    } else {
    }
    %c0 = arith.constant 0 : index
    %c0_1 = arith.constant 0 : index
    %3 = vector.load %arg7[%c0, %c0_1] : memref<8x256xf32, #tpu.memory_space<vmem>>, vector<8x256xf32>
    %c0_2 = arith.constant 0 : index
    %c0_3 = arith.constant 0 : index
    %4 = vector.load %arg3[%c0_2, %c0_3] : memref<8x100xbf16, #tpu.memory_space<vmem>>, vector<8x100xbf16>
    %c0_4 = arith.constant 0 : index
    %c0_5 = arith.constant 0 : index
    %c0_6 = arith.constant 0 : index
    %5 = vector.load %arg4[%c0_4, %c0_5, %c0_6] : memref<1x100x256xbf16, #tpu.memory_space<vmem>>, vector<1x100x256xbf16>
    %6 = vector.shape_cast %5 : vector<1x100x256xbf16> to vector<100x256xbf16>
    %cst = arith.constant dense<0.000000e+00> : vector<8x256xf32>
    %7 = tpu.matmul %4, %6, %cst {dimension_numbers = #tpu.dot_dimension_numbers<[1], [0], [0], [1], [0, 0, 1, 1], [], []>} : vector<8x100xbf16>, vector<100x256xbf16>, vector<8x256xf32> -> vector<8x256xf32>
    %8 = arith.addf %3, %7 : vector<8x256xf32>
    %c0_7 = arith.constant 0 : index
    %c0_8 = arith.constant 0 : index
    %9 = vector.load %arg7[%c0_7, %c0_8] : memref<8x256xf32, #tpu.memory_space<vmem>>, vector<8x256xf32>
    tpu.vector_store %arg7[%c0_7, %c0_8], %8 {strides = array<i32>} : memref<8x256xf32, #tpu.memory_space<vmem>>, vector<8x256xf32>,
    %c0_i32_9 = arith.constant 0 : i32
    %10 = arith.cmpi eq, %arg2, %c0_i32_9 : i32
    %11 = arith.extui %10 : i1 to i32
    %c0_i32_10 = arith.constant 0 : i32
    %12 = arith.cmpi ne, %11, %c0_i32_10 : i32
    scf.if %12 {
      %c0_11 = arith.constant 0 : index
      %c0_12 = arith.constant 0 : index
      %13 = vector.load %arg7[%c0_11, %c0_12] : memref<8x256xf32, #tpu.memory_space<vmem>>, vector<8x256xf32>
      %c0_13 = arith.constant 0 : index
      %c0_14 = arith.constant 0 : index
      %14 = vector.load %arg5[%c0_13, %c0_14] : memref<8x1xf32, #tpu.memory_space<vmem>>, vector<8x1xf32>
      %15 = vector.broadcast %14 : vector<8x1xf32> to vector<8x256xf32>
      %16 = arith.addf %13, %15 : vector<8x256xf32>
      %c0_15 = arith.constant 0 : index
      %c0_16 = arith.constant 0 : index
      %c0_17 = arith.constant 0 : index
      %17 = vector.load %arg6[%c0_15, %c0_16, %c0_17] : memref<1x8x256xf32, #tpu.memory_space<vmem>>, vector<1x8x256xf32>
      %18 = vector.shape_cast %17 : vector<1x8x256xf32> to vector<8x256xf32>
      %19 = vector.shape_cast %16 : vector<8x256xf32> to vector<1x8x256xf32>
      tpu.vector_store %arg6[%c0_15, %c0_16, %c0_17], %19 {strides = array<i32>} : memref<1x8x256xf32, #tpu.memory_space<vmem>>, vector<1x8x256xf32>,
    } else {
    }
    return
  }
  func.func @transform_0(%arg0: i32, %arg1: i32, %arg2: i32) -> (i32, i32) {
    %c0_i32 = arith.constant 0 : i32
    %c0_i32_0 = arith.constant 0 : i32
    return %c0_i32, %arg2 : i32, i32
  }
  func.func @transform_1(%arg0: i32, %arg1: i32, %arg2: i32) -> (i32, i32, i32) {
    %c0_i32 = arith.constant 0 : i32
    return %arg0, %arg2, %arg1 : i32, i32, i32
  }
  func.func @transform_2(%arg0: i32, %arg1: i32, %arg2: i32) -> (i32, i32) {
    %c0_i32 = arith.constant 0 : i32
    %c0_i32_0 = arith.constant 0 : i32
    %c0_i32_1 = arith.constant 0 : i32
    return %c0_i32, %c0_i32_0 : i32, i32
  }
  func.func @transform_3(%arg0: i32, %arg1: i32, %arg2: i32) -> (i32, i32, i32) {
    %c0_i32 = arith.constant 0 : i32
    %c0_i32_0 = arith.constant 0 : i32
    return %arg0, %c0_i32, %arg1 : i32, i32, i32
  }
}

module attributes {stable_mosaic.version = 11 : i64} {
  func.func @_sep_kernel(%arg0: i32, %arg1: i32, %arg2: memref<1x1x16x16xf32, #tpu.memory_space<vmem>>, %arg3: memref<8x16xf32, #tpu.memory_space<vmem>>, %arg4: memref<16x8xf32, #tpu.memory_space<vmem>>, %arg5: memref<1x1x8x8xf32, #tpu.memory_space<vmem>>) attributes {dimension_semantics = [#tpu.dimension_semantics<parallel>, #tpu.dimension_semantics<parallel>], iteration_bounds = array<i64: 2, 4>, scalar_prefetch = 0 : i64, scratch_operands = 0 : i64, tpu.core_type = #tpu.core_type<tc>, window_params = [{transform_indices = @transform_0, window_bounds = array<i64: 1, 1, 16, 16>}, {pipeline_mode = #tpu.pipeline_mode<synchronous>, transform_indices = @transform_1, window_bounds = array<i64: 8, 16>}, {pipeline_mode = #tpu.pipeline_mode<synchronous>, transform_indices = @transform_2, window_bounds = array<i64: 16, 8>}, {transform_indices = @transform_3, window_bounds = array<i64: 1, 1, 8, 8>}]} {
    %c0 = arith.constant 0 : index
    %c0_0 = arith.constant 0 : index
    %c0_1 = arith.constant 0 : index
    %c0_2 = arith.constant 0 : index
    %0 = vector.load %arg2[%c0, %c0_0, %c0_1, %c0_2] : memref<1x1x16x16xf32, #tpu.memory_space<vmem>>, vector<1x1x16x16xf32>
    %1 = vector.shape_cast %0 : vector<1x1x16x16xf32> to vector<16x16xf32>
    %c0_3 = arith.constant 0 : index
    %c0_4 = arith.constant 0 : index
    %2 = vector.load %arg4[%c0_3, %c0_4] : memref<16x8xf32, #tpu.memory_space<vmem>>, vector<16x8xf32>
    %cst = arith.constant dense<0.000000e+00> : vector<16x8xf32>
    %3 = tpu.matmul %1, %2, %cst {dimension_numbers = #tpu.dot_dimension_numbers<[1], [0], [0], [1], [0, 0, 1, 1], [], []>} : vector<16x16xf32>, vector<16x8xf32>, vector<16x8xf32> -> vector<16x8xf32>
    %c0_5 = arith.constant 0 : index
    %c0_6 = arith.constant 0 : index
    %4 = vector.load %arg3[%c0_5, %c0_6] : memref<8x16xf32, #tpu.memory_space<vmem>>, vector<8x16xf32>
    %cst_7 = arith.constant dense<0.000000e+00> : vector<8x8xf32>
    %5 = tpu.matmul %4, %3, %cst_7 {dimension_numbers = #tpu.dot_dimension_numbers<[1], [0], [0], [1], [0, 0, 1, 1], [], []>} : vector<8x16xf32>, vector<16x8xf32>, vector<8x8xf32> -> vector<8x8xf32>
    %c0_8 = arith.constant 0 : index
    %c0_9 = arith.constant 0 : index
    %c0_10 = arith.constant 0 : index
    %c0_11 = arith.constant 0 : index
    %6 = vector.load %arg5[%c0_8, %c0_9, %c0_10, %c0_11] : memref<1x1x8x8xf32, #tpu.memory_space<vmem>>, vector<1x1x8x8xf32>
    %7 = vector.shape_cast %6 : vector<1x1x8x8xf32> to vector<8x8xf32>
    %8 = vector.shape_cast %5 : vector<8x8xf32> to vector<1x1x8x8xf32>
    tpu.vector_store %arg5[%c0_8, %c0_9, %c0_10, %c0_11], %8 {strides = array<i32>} : memref<1x1x8x8xf32, #tpu.memory_space<vmem>>, vector<1x1x8x8xf32>,
    return
  }
  func.func @transform_0(%arg0: i32, %arg1: i32) -> (i32, i32, i32, i32) {
    %c0_i32 = arith.constant 0 : i32
    %c0_i32_0 = arith.constant 0 : i32
    %c0_i32_1 = arith.constant 0 : i32
    return %arg0, %arg1, %c0_i32, %c0_i32_0 : i32, i32, i32, i32
  }
  func.func @transform_1(%arg0: i32, %arg1: i32) -> (i32, i32) {
    %c0_i32 = arith.constant 0 : i32
    %c0_i32_0 = arith.constant 0 : i32
    %c0_i32_1 = arith.constant 0 : i32
    return %c0_i32, %c0_i32_0 : i32, i32
  }
  func.func @transform_2(%arg0: i32, %arg1: i32) -> (i32, i32) {
    %c0_i32 = arith.constant 0 : i32
    %c0_i32_0 = arith.constant 0 : i32
    %c0_i32_1 = arith.constant 0 : i32
    return %c0_i32, %c0_i32_0 : i32, i32
  }
  func.func @transform_3(%arg0: i32, %arg1: i32) -> (i32, i32, i32, i32) {
    %c0_i32 = arith.constant 0 : i32
    %c0_i32_0 = arith.constant 0 : i32
    %c0_i32_1 = arith.constant 0 : i32
    return %arg0, %arg1, %c0_i32, %c0_i32_0 : i32, i32, i32, i32
  }
}

module attributes {stable_mosaic.version = 11 : i64} {
  func.func @_fca_kernel(%arg0: i32, %arg1: memref<1x4x64xf32, #tpu.memory_space<vmem>>, %arg2: memref<4x4xf32, #tpu.memory_space<vmem>>, %arg3: memref<1x4x64xf32, #tpu.memory_space<vmem>>) attributes {dimension_semantics = [#tpu.dimension_semantics<parallel>], iteration_bounds = array<i64: 2>, scalar_prefetch = 0 : i64, scratch_operands = 0 : i64, tpu.core_type = #tpu.core_type<tc>, window_params = [{transform_indices = @transform_0, window_bounds = array<i64: 1, 4, 64>}, {pipeline_mode = #tpu.pipeline_mode<synchronous>, transform_indices = @transform_1, window_bounds = array<i64: 4, 4>}, {transform_indices = @transform_2, window_bounds = array<i64: 1, 4, 64>}]} {
    %c0 = arith.constant 0 : index
    %c0_0 = arith.constant 0 : index
    %c0_1 = arith.constant 0 : index
    %0 = vector.load %arg1[%c0, %c0_0, %c0_1] : memref<1x4x64xf32, #tpu.memory_space<vmem>>, vector<1x4x64xf32>
    %cst = arith.constant dense<0.000000e+00> : vector<1x4xf32>
    %1 = vector.multi_reduction <add>, %0, %cst [2] : vector<1x4x64xf32> to vector<1x4xf32>
    %cst_2 = arith.constant 6.400000e+01 : f32
    %2 = vector.broadcast %cst_2 : f32 to vector<1x4xf32>
    %3 = arith.divf %1, %2 : vector<1x4xf32>
    %c0_3 = arith.constant 0 : index
    %c0_4 = arith.constant 0 : index
    %4 = vector.load %arg2[%c0_3, %c0_4] : memref<4x4xf32, #tpu.memory_space<vmem>>, vector<4x4xf32>
    %cst_5 = arith.constant dense<0.000000e+00> : vector<1x4xf32>
    %5 = tpu.matmul %3, %4, %cst_5 {dimension_numbers = #tpu.dot_dimension_numbers<[1], [0], [0], [1], [0, 0, 1, 1], [], []>} : vector<1x4xf32>, vector<4x4xf32>, vector<1x4xf32> -> vector<1x4xf32>
    %cst_6 = arith.constant 0.000000e+00 : f32
    %6 = vector.broadcast %cst_6 : f32 to vector<1x4xf32>
    %7 = arith.subf %6, %5 : vector<1x4xf32>
    %8 = math.exp %7 : vector<1x4xf32>
    %cst_7 = arith.constant 1.000000e+00 : f32
    %9 = vector.broadcast %cst_7 : f32 to vector<1x4xf32>
    %10 = arith.addf %9, %8 : vector<1x4xf32>
    %cst_8 = arith.constant 1.000000e+00 : f32
    %11 = vector.broadcast %cst_8 : f32 to vector<1x4xf32>
    %12 = arith.divf %11, %10 : vector<1x4xf32>
    %cst_9 = arith.constant 1.000000e+00 : f32
    %13 = vector.broadcast %cst_9 : f32 to vector<1x4xf32>
    %14 = arith.addf %12, %13 : vector<1x4xf32>
    %15 = vector.shape_cast %14 : vector<1x4xf32> to vector<1x4x1xf32>
    %16 = vector.broadcast %15 : vector<1x4x1xf32> to vector<1x4x64xf32>
    %17 = arith.mulf %0, %16 : vector<1x4x64xf32>
    %c0_10 = arith.constant 0 : index
    %c0_11 = arith.constant 0 : index
    %c0_12 = arith.constant 0 : index
    %18 = vector.load %arg3[%c0_10, %c0_11, %c0_12] : memref<1x4x64xf32, #tpu.memory_space<vmem>>, vector<1x4x64xf32>
    tpu.vector_store %arg3[%c0_10, %c0_11, %c0_12], %17 {strides = array<i32>} : memref<1x4x64xf32, #tpu.memory_space<vmem>>, vector<1x4x64xf32>,
    return
  }
  func.func @transform_0(%arg0: i32) -> (i32, i32, i32) {
    %c0_i32 = arith.constant 0 : i32
    %c0_i32_0 = arith.constant 0 : i32
    %c0_i32_1 = arith.constant 0 : i32
    return %arg0, %c0_i32, %c0_i32_0 : i32, i32, i32
  }
  func.func @transform_1(%arg0: i32) -> (i32, i32) {
    %c0_i32 = arith.constant 0 : i32
    %c0_i32_0 = arith.constant 0 : i32
    %c0_i32_1 = arith.constant 0 : i32
    return %c0_i32, %c0_i32_0 : i32, i32
  }
  func.func @transform_2(%arg0: i32) -> (i32, i32, i32) {
    %c0_i32 = arith.constant 0 : i32
    %c0_i32_0 = arith.constant 0 : i32
    %c0_i32_1 = arith.constant 0 : i32
    return %arg0, %c0_i32, %c0_i32_0 : i32, i32, i32
  }
}

module attributes {stable_mosaic.version = 11 : i64} {
  func.func @_sep_kernel(%arg0: i32, %arg1: i32, %arg2: memref<1x1x8x8xf32, #tpu.memory_space<vmem>>, %arg3: memref<16x8xf32, #tpu.memory_space<vmem>>, %arg4: memref<8x16xf32, #tpu.memory_space<vmem>>, %arg5: memref<1x1x16x16xf32, #tpu.memory_space<vmem>>) attributes {dimension_semantics = [#tpu.dimension_semantics<parallel>, #tpu.dimension_semantics<parallel>], iteration_bounds = array<i64: 2, 4>, scalar_prefetch = 0 : i64, scratch_operands = 0 : i64, tpu.core_type = #tpu.core_type<tc>, window_params = [{transform_indices = @transform_0, window_bounds = array<i64: 1, 1, 8, 8>}, {pipeline_mode = #tpu.pipeline_mode<synchronous>, transform_indices = @transform_1, window_bounds = array<i64: 16, 8>}, {pipeline_mode = #tpu.pipeline_mode<synchronous>, transform_indices = @transform_2, window_bounds = array<i64: 8, 16>}, {transform_indices = @transform_3, window_bounds = array<i64: 1, 1, 16, 16>}]} {
    %c0 = arith.constant 0 : index
    %c0_0 = arith.constant 0 : index
    %c0_1 = arith.constant 0 : index
    %c0_2 = arith.constant 0 : index
    %0 = vector.load %arg2[%c0, %c0_0, %c0_1, %c0_2] : memref<1x1x8x8xf32, #tpu.memory_space<vmem>>, vector<1x1x8x8xf32>
    %1 = vector.shape_cast %0 : vector<1x1x8x8xf32> to vector<8x8xf32>
    %c0_3 = arith.constant 0 : index
    %c0_4 = arith.constant 0 : index
    %2 = vector.load %arg4[%c0_3, %c0_4] : memref<8x16xf32, #tpu.memory_space<vmem>>, vector<8x16xf32>
    %cst = arith.constant dense<0.000000e+00> : vector<8x16xf32>
    %3 = tpu.matmul %1, %2, %cst {dimension_numbers = #tpu.dot_dimension_numbers<[1], [0], [0], [1], [0, 0, 1, 1], [], []>} : vector<8x8xf32>, vector<8x16xf32>, vector<8x16xf32> -> vector<8x16xf32>
    %c0_5 = arith.constant 0 : index
    %c0_6 = arith.constant 0 : index
    %4 = vector.load %arg3[%c0_5, %c0_6] : memref<16x8xf32, #tpu.memory_space<vmem>>, vector<16x8xf32>
    %cst_7 = arith.constant dense<0.000000e+00> : vector<16x16xf32>
    %5 = tpu.matmul %4, %3, %cst_7 {dimension_numbers = #tpu.dot_dimension_numbers<[1], [0], [0], [1], [0, 0, 1, 1], [], []>} : vector<16x8xf32>, vector<8x16xf32>, vector<16x16xf32> -> vector<16x16xf32>
    %c0_8 = arith.constant 0 : index
    %c0_9 = arith.constant 0 : index
    %c0_10 = arith.constant 0 : index
    %c0_11 = arith.constant 0 : index
    %6 = vector.load %arg5[%c0_8, %c0_9, %c0_10, %c0_11] : memref<1x1x16x16xf32, #tpu.memory_space<vmem>>, vector<1x1x16x16xf32>
    %7 = vector.shape_cast %6 : vector<1x1x16x16xf32> to vector<16x16xf32>
    %8 = vector.shape_cast %5 : vector<16x16xf32> to vector<1x1x16x16xf32>
    tpu.vector_store %arg5[%c0_8, %c0_9, %c0_10, %c0_11], %8 {strides = array<i32>} : memref<1x1x16x16xf32, #tpu.memory_space<vmem>>, vector<1x1x16x16xf32>,
    return
  }
  func.func @transform_0(%arg0: i32, %arg1: i32) -> (i32, i32, i32, i32) {
    %c0_i32 = arith.constant 0 : i32
    %c0_i32_0 = arith.constant 0 : i32
    %c0_i32_1 = arith.constant 0 : i32
    return %arg0, %arg1, %c0_i32, %c0_i32_0 : i32, i32, i32, i32
  }
  func.func @transform_1(%arg0: i32, %arg1: i32) -> (i32, i32) {
    %c0_i32 = arith.constant 0 : i32
    %c0_i32_0 = arith.constant 0 : i32
    %c0_i32_1 = arith.constant 0 : i32
    return %c0_i32, %c0_i32_0 : i32, i32
  }
  func.func @transform_2(%arg0: i32, %arg1: i32) -> (i32, i32) {
    %c0_i32 = arith.constant 0 : i32
    %c0_i32_0 = arith.constant 0 : i32
    %c0_i32_1 = arith.constant 0 : i32
    return %c0_i32, %c0_i32_0 : i32, i32
  }
  func.func @transform_3(%arg0: i32, %arg1: i32) -> (i32, i32, i32, i32) {
    %c0_i32 = arith.constant 0 : i32
    %c0_i32_0 = arith.constant 0 : i32
    %c0_i32_1 = arith.constant 0 : i32
    return %arg0, %arg1, %c0_i32, %c0_i32_0 : i32, i32, i32, i32
  }
}

module attributes {stable_mosaic.version = 11 : i64} {
  func.func @kernel(%arg0: i32, %arg1: i32, %arg2: i32, %arg3: memref<8x36xbf16, #tpu.memory_space<vmem>>, %arg4: memref<1x36x256xbf16, #tpu.memory_space<vmem>>, %arg5: memref<8x1xf32, #tpu.memory_space<vmem>>, %arg6: memref<1x8x256xf32, #tpu.memory_space<vmem>>, %arg7: memref<8x256xf32, #tpu.memory_space<vmem>>) attributes {dimension_semantics = [#tpu.dimension_semantics<parallel>, #tpu.dimension_semantics<parallel>, #tpu.dimension_semantics<arbitrary>], iteration_bounds = array<i64: 2, 1, 1>, scalar_prefetch = 0 : i64, scratch_operands = 1 : i64, tpu.core_type = #tpu.core_type<tc>, window_params = [{transform_indices = @transform_0, window_bounds = array<i64: 8, 36>}, {transform_indices = @transform_1, window_bounds = array<i64: 1, 36, 256>}, {pipeline_mode = #tpu.pipeline_mode<synchronous>, transform_indices = @transform_2, window_bounds = array<i64: 8, 1>}, {transform_indices = @transform_3, window_bounds = array<i64: 1, 8, 256>}]} {
    %c0_i32 = arith.constant 0 : i32
    %0 = arith.cmpi eq, %arg2, %c0_i32 : i32
    %1 = arith.extui %0 : i1 to i32
    %c0_i32_0 = arith.constant 0 : i32
    %2 = arith.cmpi ne, %1, %c0_i32_0 : i32
    scf.if %2 {
      %cst_11 = arith.constant 0.000000e+00 : f32
      %13 = vector.broadcast %cst_11 : f32 to vector<8x256xf32>
      %c0_12 = arith.constant 0 : index
      %c0_13 = arith.constant 0 : index
      %14 = vector.load %arg7[%c0_12, %c0_13] : memref<8x256xf32, #tpu.memory_space<vmem>>, vector<8x256xf32>
      tpu.vector_store %arg7[%c0_12, %c0_13], %13 {strides = array<i32>} : memref<8x256xf32, #tpu.memory_space<vmem>>, vector<8x256xf32>,
    } else {
    }
    %c0 = arith.constant 0 : index
    %c0_1 = arith.constant 0 : index
    %3 = vector.load %arg7[%c0, %c0_1] : memref<8x256xf32, #tpu.memory_space<vmem>>, vector<8x256xf32>
    %c0_2 = arith.constant 0 : index
    %c0_3 = arith.constant 0 : index
    %4 = vector.load %arg3[%c0_2, %c0_3] : memref<8x36xbf16, #tpu.memory_space<vmem>>, vector<8x36xbf16>
    %c0_4 = arith.constant 0 : index
    %c0_5 = arith.constant 0 : index
    %c0_6 = arith.constant 0 : index
    %5 = vector.load %arg4[%c0_4, %c0_5, %c0_6] : memref<1x36x256xbf16, #tpu.memory_space<vmem>>, vector<1x36x256xbf16>
    %6 = vector.shape_cast %5 : vector<1x36x256xbf16> to vector<36x256xbf16>
    %cst = arith.constant dense<0.000000e+00> : vector<8x256xf32>
    %7 = tpu.matmul %4, %6, %cst {dimension_numbers = #tpu.dot_dimension_numbers<[1], [0], [0], [1], [0, 0, 1, 1], [], []>} : vector<8x36xbf16>, vector<36x256xbf16>, vector<8x256xf32> -> vector<8x256xf32>
    %8 = arith.addf %3, %7 : vector<8x256xf32>
    %c0_7 = arith.constant 0 : index
    %c0_8 = arith.constant 0 : index
    %9 = vector.load %arg7[%c0_7, %c0_8] : memref<8x256xf32, #tpu.memory_space<vmem>>, vector<8x256xf32>
    tpu.vector_store %arg7[%c0_7, %c0_8], %8 {strides = array<i32>} : memref<8x256xf32, #tpu.memory_space<vmem>>, vector<8x256xf32>,
    %c0_i32_9 = arith.constant 0 : i32
    %10 = arith.cmpi eq, %arg2, %c0_i32_9 : i32
    %11 = arith.extui %10 : i1 to i32
    %c0_i32_10 = arith.constant 0 : i32
    %12 = arith.cmpi ne, %11, %c0_i32_10 : i32
    scf.if %12 {
      %c0_11 = arith.constant 0 : index
      %c0_12 = arith.constant 0 : index
      %13 = vector.load %arg7[%c0_11, %c0_12] : memref<8x256xf32, #tpu.memory_space<vmem>>, vector<8x256xf32>
      %c0_13 = arith.constant 0 : index
      %c0_14 = arith.constant 0 : index
      %14 = vector.load %arg5[%c0_13, %c0_14] : memref<8x1xf32, #tpu.memory_space<vmem>>, vector<8x1xf32>
      %15 = vector.broadcast %14 : vector<8x1xf32> to vector<8x256xf32>
      %16 = arith.addf %13, %15 : vector<8x256xf32>
      %c0_15 = arith.constant 0 : index
      %c0_16 = arith.constant 0 : index
      %c0_17 = arith.constant 0 : index
      %17 = vector.load %arg6[%c0_15, %c0_16, %c0_17] : memref<1x8x256xf32, #tpu.memory_space<vmem>>, vector<1x8x256xf32>
      %18 = vector.shape_cast %17 : vector<1x8x256xf32> to vector<8x256xf32>
      %19 = vector.shape_cast %16 : vector<8x256xf32> to vector<1x8x256xf32>
      tpu.vector_store %arg6[%c0_15, %c0_16, %c0_17], %19 {strides = array<i32>} : memref<1x8x256xf32, #tpu.memory_space<vmem>>, vector<1x8x256xf32>,
    } else {
    }
    return
  }
  func.func @transform_0(%arg0: i32, %arg1: i32, %arg2: i32) -> (i32, i32) {
    %c0_i32 = arith.constant 0 : i32
    %c0_i32_0 = arith.constant 0 : i32
    return %c0_i32, %arg2 : i32, i32
  }
  func.func @transform_1(%arg0: i32, %arg1: i32, %arg2: i32) -> (i32, i32, i32) {
    %c0_i32 = arith.constant 0 : i32
    return %arg0, %arg2, %arg1 : i32, i32, i32
  }
  func.func @transform_2(%arg0: i32, %arg1: i32, %arg2: i32) -> (i32, i32) {
    %c0_i32 = arith.constant 0 : i32
    %c0_i32_0 = arith.constant 0 : i32
    %c0_i32_1 = arith.constant 0 : i32
    return %c0_i32, %c0_i32_0 : i32, i32
  }
  func.func @transform_3(%arg0: i32, %arg1: i32, %arg2: i32) -> (i32, i32, i32) {
    %c0_i32 = arith.constant 0 : i32
    %c0_i32_0 = arith.constant 0 : i32
    return %arg0, %c0_i32, %arg1 : i32, i32, i32
  }
}

module attributes {stable_mosaic.version = 11 : i64} {
  func.func @_fca_kernel(%arg0: i32, %arg1: memref<1x4x256xf32, #tpu.memory_space<vmem>>, %arg2: memref<4x4xf32, #tpu.memory_space<vmem>>, %arg3: memref<1x4x256xf32, #tpu.memory_space<vmem>>) attributes {dimension_semantics = [#tpu.dimension_semantics<parallel>], iteration_bounds = array<i64: 2>, scalar_prefetch = 0 : i64, scratch_operands = 0 : i64, tpu.core_type = #tpu.core_type<tc>, window_params = [{transform_indices = @transform_0, window_bounds = array<i64: 1, 4, 256>}, {pipeline_mode = #tpu.pipeline_mode<synchronous>, transform_indices = @transform_1, window_bounds = array<i64: 4, 4>}, {transform_indices = @transform_2, window_bounds = array<i64: 1, 4, 256>}]} {
    %c0 = arith.constant 0 : index
    %c0_0 = arith.constant 0 : index
    %c0_1 = arith.constant 0 : index
    %0 = vector.load %arg1[%c0, %c0_0, %c0_1] : memref<1x4x256xf32, #tpu.memory_space<vmem>>, vector<1x4x256xf32>
    %cst = arith.constant dense<0.000000e+00> : vector<1x4xf32>
    %1 = vector.multi_reduction <add>, %0, %cst [2] : vector<1x4x256xf32> to vector<1x4xf32>
    %cst_2 = arith.constant 2.560000e+02 : f32
    %2 = vector.broadcast %cst_2 : f32 to vector<1x4xf32>
    %3 = arith.divf %1, %2 : vector<1x4xf32>
    %c0_3 = arith.constant 0 : index
    %c0_4 = arith.constant 0 : index
    %4 = vector.load %arg2[%c0_3, %c0_4] : memref<4x4xf32, #tpu.memory_space<vmem>>, vector<4x4xf32>
    %cst_5 = arith.constant dense<0.000000e+00> : vector<1x4xf32>
    %5 = tpu.matmul %3, %4, %cst_5 {dimension_numbers = #tpu.dot_dimension_numbers<[1], [0], [0], [1], [0, 0, 1, 1], [], []>} : vector<1x4xf32>, vector<4x4xf32>, vector<1x4xf32> -> vector<1x4xf32>
    %cst_6 = arith.constant 0.000000e+00 : f32
    %6 = vector.broadcast %cst_6 : f32 to vector<1x4xf32>
    %7 = arith.subf %6, %5 : vector<1x4xf32>
    %8 = math.exp %7 : vector<1x4xf32>
    %cst_7 = arith.constant 1.000000e+00 : f32
    %9 = vector.broadcast %cst_7 : f32 to vector<1x4xf32>
    %10 = arith.addf %9, %8 : vector<1x4xf32>
    %cst_8 = arith.constant 1.000000e+00 : f32
    %11 = vector.broadcast %cst_8 : f32 to vector<1x4xf32>
    %12 = arith.divf %11, %10 : vector<1x4xf32>
    %cst_9 = arith.constant 1.000000e+00 : f32
    %13 = vector.broadcast %cst_9 : f32 to vector<1x4xf32>
    %14 = arith.addf %12, %13 : vector<1x4xf32>
    %15 = vector.shape_cast %14 : vector<1x4xf32> to vector<1x4x1xf32>
    %16 = vector.broadcast %15 : vector<1x4x1xf32> to vector<1x4x256xf32>
    %17 = arith.mulf %0, %16 : vector<1x4x256xf32>
    %c0_10 = arith.constant 0 : index
    %c0_11 = arith.constant 0 : index
    %c0_12 = arith.constant 0 : index
    %18 = vector.load %arg3[%c0_10, %c0_11, %c0_12] : memref<1x4x256xf32, #tpu.memory_space<vmem>>, vector<1x4x256xf32>
    tpu.vector_store %arg3[%c0_10, %c0_11, %c0_12], %17 {strides = array<i32>} : memref<1x4x256xf32, #tpu.memory_space<vmem>>, vector<1x4x256xf32>,
    return
  }
  func.func @transform_0(%arg0: i32) -> (i32, i32, i32) {
    %c0_i32 = arith.constant 0 : i32
    %c0_i32_0 = arith.constant 0 : i32
    %c0_i32_1 = arith.constant 0 : i32
    return %arg0, %c0_i32, %c0_i32_0 : i32, i32, i32
  }
  func.func @transform_1(%arg0: i32) -> (i32, i32) {
    %c0_i32 = arith.constant 0 : i32
    %c0_i32_0 = arith.constant 0 : i32
    %c0_i32_1 = arith.constant 0 : i32
    return %c0_i32, %c0_i32_0 : i32, i32
  }
  func.func @transform_2(%arg0: i32) -> (i32, i32, i32) {
    %c0_i32 = arith.constant 0 : i32
    %c0_i32_0 = arith.constant 0 : i32
    %c0_i32_1 = arith.constant 0 : i32
    return %arg0, %c0_i32, %c0_i32_0 : i32, i32, i32
  }
}

module attributes {stable_mosaic.version = 11 : i64} {
  func.func @kernel(%arg0: i32, %arg1: i32, %arg2: i32, %arg3: memref<8x108xbf16, #tpu.memory_space<vmem>>, %arg4: memref<1x108x256xbf16, #tpu.memory_space<vmem>>, %arg5: memref<8x1xf32, #tpu.memory_space<vmem>>, %arg6: memref<1x8x256xf32, #tpu.memory_space<vmem>>, %arg7: memref<1x8x256xf32, #tpu.memory_space<vmem>>, %arg8: memref<8x256xf32, #tpu.memory_space<vmem>>) attributes {dimension_semantics = [#tpu.dimension_semantics<parallel>, #tpu.dimension_semantics<parallel>, #tpu.dimension_semantics<arbitrary>], iteration_bounds = array<i64: 2, 1, 1>, scalar_prefetch = 0 : i64, scratch_operands = 1 : i64, tpu.core_type = #tpu.core_type<tc>, window_params = [{transform_indices = @transform_0, window_bounds = array<i64: 8, 108>}, {transform_indices = @transform_1, window_bounds = array<i64: 1, 108, 256>}, {pipeline_mode = #tpu.pipeline_mode<synchronous>, transform_indices = @transform_2, window_bounds = array<i64: 8, 1>}, {transform_indices = @transform_3, window_bounds = array<i64: 1, 8, 256>}, {transform_indices = @transform_4, window_bounds = array<i64: 1, 8, 256>}]} {
    %c0_i32 = arith.constant 0 : i32
    %0 = arith.cmpi eq, %arg2, %c0_i32 : i32
    %1 = arith.extui %0 : i1 to i32
    %c0_i32_0 = arith.constant 0 : i32
    %2 = arith.cmpi ne, %1, %c0_i32_0 : i32
    scf.if %2 {
      %cst_11 = arith.constant 0.000000e+00 : f32
      %13 = vector.broadcast %cst_11 : f32 to vector<8x256xf32>
      %c0_12 = arith.constant 0 : index
      %c0_13 = arith.constant 0 : index
      %14 = vector.load %arg8[%c0_12, %c0_13] : memref<8x256xf32, #tpu.memory_space<vmem>>, vector<8x256xf32>
      tpu.vector_store %arg8[%c0_12, %c0_13], %13 {strides = array<i32>} : memref<8x256xf32, #tpu.memory_space<vmem>>, vector<8x256xf32>,
    } else {
    }
    %c0 = arith.constant 0 : index
    %c0_1 = arith.constant 0 : index
    %3 = vector.load %arg8[%c0, %c0_1] : memref<8x256xf32, #tpu.memory_space<vmem>>, vector<8x256xf32>
    %c0_2 = arith.constant 0 : index
    %c0_3 = arith.constant 0 : index
    %4 = vector.load %arg3[%c0_2, %c0_3] : memref<8x108xbf16, #tpu.memory_space<vmem>>, vector<8x108xbf16>
    %c0_4 = arith.constant 0 : index
    %c0_5 = arith.constant 0 : index
    %c0_6 = arith.constant 0 : index
    %5 = vector.load %arg4[%c0_4, %c0_5, %c0_6] : memref<1x108x256xbf16, #tpu.memory_space<vmem>>, vector<1x108x256xbf16>
    %6 = vector.shape_cast %5 : vector<1x108x256xbf16> to vector<108x256xbf16>
    %cst = arith.constant dense<0.000000e+00> : vector<8x256xf32>
    %7 = tpu.matmul %4, %6, %cst {dimension_numbers = #tpu.dot_dimension_numbers<[1], [0], [0], [1], [0, 0, 1, 1], [], []>} : vector<8x108xbf16>, vector<108x256xbf16>, vector<8x256xf32> -> vector<8x256xf32>
    %8 = arith.addf %3, %7 : vector<8x256xf32>
    %c0_7 = arith.constant 0 : index
    %c0_8 = arith.constant 0 : index
    %9 = vector.load %arg8[%c0_7, %c0_8] : memref<8x256xf32, #tpu.memory_space<vmem>>, vector<8x256xf32>
    tpu.vector_store %arg8[%c0_7, %c0_8], %8 {strides = array<i32>} : memref<8x256xf32, #tpu.memory_space<vmem>>, vector<8x256xf32>,
    %c0_i32_9 = arith.constant 0 : i32
    %10 = arith.cmpi eq, %arg2, %c0_i32_9 : i32
    %11 = arith.extui %10 : i1 to i32
    %c0_i32_10 = arith.constant 0 : i32
    %12 = arith.cmpi ne, %11, %c0_i32_10 : i32
    scf.if %12 {
      %c0_11 = arith.constant 0 : index
      %c0_12 = arith.constant 0 : index
      %13 = vector.load %arg8[%c0_11, %c0_12] : memref<8x256xf32, #tpu.memory_space<vmem>>, vector<8x256xf32>
      %c0_13 = arith.constant 0 : index
      %c0_14 = arith.constant 0 : index
      %14 = vector.load %arg5[%c0_13, %c0_14] : memref<8x1xf32, #tpu.memory_space<vmem>>, vector<8x1xf32>
      %15 = vector.broadcast %14 : vector<8x1xf32> to vector<8x256xf32>
      %16 = arith.addf %13, %15 : vector<8x256xf32>
      %c0_15 = arith.constant 0 : index
      %c0_16 = arith.constant 0 : index
      %c0_17 = arith.constant 0 : index
      %17 = vector.load %arg6[%c0_15, %c0_16, %c0_17] : memref<1x8x256xf32, #tpu.memory_space<vmem>>, vector<1x8x256xf32>
      %18 = vector.shape_cast %17 : vector<1x8x256xf32> to vector<8x256xf32>
      %19 = arith.addf %16, %18 : vector<8x256xf32>
      %c0_18 = arith.constant 0 : index
      %c0_19 = arith.constant 0 : index
      %c0_20 = arith.constant 0 : index
      %20 = vector.load %arg7[%c0_18, %c0_19, %c0_20] : memref<1x8x256xf32, #tpu.memory_space<vmem>>, vector<1x8x256xf32>
      %21 = vector.shape_cast %20 : vector<1x8x256xf32> to vector<8x256xf32>
      %22 = vector.shape_cast %19 : vector<8x256xf32> to vector<1x8x256xf32>
      tpu.vector_store %arg7[%c0_18, %c0_19, %c0_20], %22 {strides = array<i32>} : memref<1x8x256xf32, #tpu.memory_space<vmem>>, vector<1x8x256xf32>,
    } else {
    }
    return
  }
  func.func @transform_0(%arg0: i32, %arg1: i32, %arg2: i32) -> (i32, i32) {
    %c0_i32 = arith.constant 0 : i32
    %c0_i32_0 = arith.constant 0 : i32
    return %c0_i32, %arg2 : i32, i32
  }
  func.func @transform_1(%arg0: i32, %arg1: i32, %arg2: i32) -> (i32, i32, i32) {
    %c0_i32 = arith.constant 0 : i32
    return %arg0, %arg2, %arg1 : i32, i32, i32
  }
  func.func @transform_2(%arg0: i32, %arg1: i32, %arg2: i32) -> (i32, i32) {
    %c0_i32 = arith.constant 0 : i32
    %c0_i32_0 = arith.constant 0 : i32
    %c0_i32_1 = arith.constant 0 : i32
    return %c0_i32, %c0_i32_0 : i32, i32
  }
  func.func @transform_3(%arg0: i32, %arg1: i32, %arg2: i32) -> (i32, i32, i32) {
    %c0_i32 = arith.constant 0 : i32
    %c0_i32_0 = arith.constant 0 : i32
    return %arg0, %c0_i32, %arg1 : i32, i32, i32
  }
  func.func @transform_4(%arg0: i32, %arg1: i32, %arg2: i32) -> (i32, i32, i32) {
    %c0_i32 = arith.constant 0 : i32
    %c0_i32_0 = arith.constant 0 : i32
    return %arg0, %c0_i32, %arg1 : i32, i32, i32
  }
}

</mosaic_0001>

<llo_original>
// kernel: mab_forward.15
$region0: #{mab_forward.15}
  #allocation0 [shape = 'u32[]', space=smem, size = 0x4, offset = 0x4, fixed_abs, tag = 'smem constant byte address 0x4 - core index']
  #allocation1 [shape = 'u32[144,128]{1,0:T(1,128)}', space=vmem, size = 0x12000, scoped, tag = 'internal scratch']
  %s0 = inlined_call_operand.vmem [shape: f32[2,4,16,16], index: 0, kind: input, shape index: {}]
  %s1 = inlined_call_operand.vmem [shape: f32[5,16], index: 1, kind: input, shape index: {}]
  %s2 = inlined_call_operand.vmem [shape: f32[16,5], index: 2, kind: input, shape index: {}]
  %s3 = inlined_call_operand.vmem [shape: f32[2,4,5,5], index: 3, kind: output, shape index: {}]
  %s4 = sld [smem:[#allocation0]]
  $region45: #{mab_forward.15} parent=0
    _
  %s6 = ssub.s32 1, %s4
  %s7 = scalar_select 0, %s6, %s4
  loop: start=0, step=1, limit=10
  $region2: #{mab_forward.15} parent=0 // loop_pre_header
    _
  $region3: #{mab_forward.15} parent=0 // loop_header
    %s9 = sphi 0, %s13
    %p10 = scmp.ge.s32.totalorder %s9, 10
    %s16 = sphi 0, %s28
    %s17 = sphi 0, %s24
    %s18 = sphi 0, %s16
    %s19 = sphi 0, %s17
    %s20 = sphi 0, %s18
    %s21 = sphi 0, %s19
    %s33 = sphi 0, %s35
    %s36 = sphi 0, %s33
    %s37 = sphi 0, %s36
    %s53 = sphi 0, %s37
    %s57 = sphi 0, %s57
    %s59 = sphi 0, %s57
    %s60 = sphi 0, %s59
    %s74 = sphi 0, %s60
    %s78 = sphi 0, %s78
    %s80 = sphi 0, %s78
    %s81 = sphi 0, %s80
    %s95 = sphi 0, %s81
    %s103 = sphi 0, %s105
    %s106 = sphi 0, %s103
    %s107 = sphi 0, %s106
    %s123 = sphi 0, %s107
  $region4: #{mab_forward.15} parent=0 // loop_header_branch
    %12 = sbr.rel (%p10) target = $region8
  $region5: #{mab_forward.15} parent=0 // loop_body
    %s14 = ssub.s32 %s9, 1
    %s15 = ssub.s32 %s9, 2
    %s22 = sadd.s32 1, %s17
    %p23 = scmp.ge.s32.totalorder %s22, 4
    %s24 = scalar_select %p23, 0, %s22
    %s25 = sadd.s32 1, %s16
    %s26 = scalar_select %p23, %s25, %s16
    %p27 = scmp.ge.s32.totalorder %s26, 2
    %s28 = scalar_select %p27, 0, %s26
    %s29 = ssub.s32 %s16, %s28
    %s30 = ssub.s32 %s17, %s24
    %s31 = sor.u32 %s29, %s30
    %p32 = scmp.eq.s32.totalorder %s31, 0
    %s34 = sadd.s32 %s33, 1
    %s35 = scalar_select %p32, %s33, %s34
    %p38 = pneg %p32
    %p39 = scmp.eq.s32.totalorder %s9, 7
    %p40 = por %p38, %p39
    %p41 = scmp.ne.s32.totalorder %s33, %s36
    %p42 = scmp.eq.s32.totalorder %s9, 0
    %p43 = por %p41, %p42
    %p44 = scmp.ne.s32.totalorder %s33, %s36
    %p45 = scmp.eq.s32.totalorder %s14, 7
    %p46 = por %p44, %p45
    %p47 = scmp.ne.s32.totalorder %s36, %s37
    %p48 = scmp.eq.s32.totalorder %s14, 0
    %p49 = por %p47, %p48
    %p50 = scmp.ne.s32.totalorder %s36, %s37
    %p51 = scmp.eq.s32.totalorder %s15, 7
    %p52 = por %p50, %p51
    %p54 = scmp.ne.s32.totalorder %s37, %s53
    %p55 = scmp.eq.s32.totalorder %s15, 0
    %p56 = por %p54, %p55
    %s58 = sadd.s32 %s57, 1
    %p61 = scmp.eq.s32.totalorder %s9, 7
    %p62 = scmp.ne.s32.totalorder %s57, %s59
    %p63 = scmp.eq.s32.totalorder %s9, 0
    %p64 = por %p62, %p63
    %p65 = scmp.ne.s32.totalorder %s57, %s59
    %p66 = scmp.eq.s32.totalorder %s14, 7
    %p67 = por %p65, %p66
    %p68 = scmp.ne.s32.totalorder %s59, %s60
    %p69 = scmp.eq.s32.totalorder %s14, 0
    %p70 = por %p68, %p69
    %p71 = scmp.ne.s32.totalorder %s59, %s60
    %p72 = scmp.eq.s32.totalorder %s15, 7
    %p73 = por %p71, %p72
    %p75 = scmp.ne.s32.totalorder %s60, %s74
    %p76 = scmp.eq.s32.totalorder %s15, 0
    %p77 = por %p75, %p76
    %s79 = sadd.s32 %s78, 1
    %p82 = scmp.eq.s32.totalorder %s9, 7
    %p83 = scmp.ne.s32.totalorder %s78, %s80
    %p84 = scmp.eq.s32.totalorder %s9, 0
    %p85 = por %p83, %p84
    %p86 = scmp.ne.s32.totalorder %s78, %s80
    %p87 = scmp.eq.s32.totalorder %s14, 7
    %p88 = por %p86, %p87
    %p89 = scmp.ne.s32.totalorder %s80, %s81
    %p90 = scmp.eq.s32.totalorder %s14, 0
    %p91 = por %p89, %p90
    %p92 = scmp.ne.s32.totalorder %s80, %s81
    %p93 = scmp.eq.s32.totalorder %s15, 7
    %p94 = por %p92, %p93
    %p96 = scmp.ne.s32.totalorder %s81, %s95
    %p97 = scmp.eq.s32.totalorder %s15, 0
    %p98 = por %p96, %p97
    %s99 = ssub.s32 %s16, %s28
    %s100 = ssub.s32 %s17, %s24
    %s101 = sor.u32 %s99, %s100
    %p102 = scmp.eq.s32.totalorder %s101, 0
    %s104 = sadd.s32 %s103, 1
    %s105 = scalar_select %p102, %s103, %s104
    %p108 = pneg %p102
    %p109 = scmp.eq.s32.totalorder %s9, 7
    %p110 = por %p108, %p109
    %p111 = scmp.ne.s32.totalorder %s103, %s106
    %p112 = scmp.eq.s32.totalorder %s9, 0
    %p113 = por %p111, %p112
    %p114 = scmp.ne.s32.totalorder %s103, %s106
    %p115 = scmp.eq.s32.totalorder %s14, 7
    %p116 = por %p114, %p115
    %p117 = scmp.ne.s32.totalorder %s106, %s107
    %p118 = scmp.eq.s32.totalorder %s14, 0
    %p119 = por %p117, %p118
    %p120 = scmp.ne.s32.totalorder %s106, %s107
    %p121 = scmp.eq.s32.totalorder %s15, 7
    %p122 = por %p120, %p121
    %p124 = scmp.ne.s32.totalorder %s107, %s123
    %p125 = scmp.eq.s32.totalorder %s15, 0
    %p126 = por %p124, %p125
    %p127 = scmp.le.s32.totalorder 1, %s9
    %p128 = scmp.lt.s32.totalorder %s9, 9
    %p129 = pnand %p127, %p128
    %p130 = pneg %p129
    // Predicated region
    $region9: #{mab_forward.15} parent=5 // pred_check
      _
    $region10: #{mab_forward.15} parent=5 // pred_check_branch
      %132 = sbr.rel (%p129) target = $region12
    $region11: #{mab_forward.15} parent=5 // pred_region
      %s133 = ssub.s32 %s9, 1
      // Predicated region
      $region13: #{mab_forward.15} parent=11 // pred_check
        %p134 = pneg %p70
      $region14: #{mab_forward.15} parent=11 // pred_check_branch
        %136 = sbr.rel (%p134) target = $region16
      $region15: #{mab_forward.15} parent=11 // pred_region
        _
      $region16: #{mab_forward.15} parent=11 // pred_fallthru
        _
      // Predicated region
      $region17: #{mab_forward.15} parent=11 // pred_check
        %p137 = pneg %p91
      $region18: #{mab_forward.15} parent=11 // pred_check_branch
        %139 = sbr.rel (%p137) target = $region20
      $region19: #{mab_forward.15} parent=11 // pred_region
        _
      $region20: #{mab_forward.15} parent=11 // pred_fallthru
        _
    $region12: #{mab_forward.15} parent=5 // pred_fallthru
      _
    %p140 = scmp.lt.s32.totalorder %s9, 8
    // Predicated region
    $region21: #{mab_forward.15} parent=5 // pred_check
      %p141 = pneg %p140
    $region22: #{mab_forward.15} parent=5 // pred_check_branch
      %143 = sbr.rel (%p141) target = $region24
    $region23: #{mab_forward.15} parent=5 // pred_region
      // Predicated region
      $region25: #{mab_forward.15} parent=23 // pred_check
        %p144 = pneg %p43
      $region26: #{mab_forward.15} parent=23 // pred_check_branch
        %146 = sbr.rel (%p144) target = $region28
      $region27: #{mab_forward.15} parent=23 // pred_region
        %p147 = scmp.lt.s32.totalorder %s16, 1
        %s148 = scalar_select %p147, %s16, 1
        %p149 = scmp.lt.s32.totalorder %s17, 3
        %s150 = scalar_select %p149, %s17, 3
        %s151 = smul.addr %s150, 2
        %s152 = smul.addr %s148, 8
        %s153 = sadd.s32 %s151, %s152
        %s154 = smul.addr %s153, 8
        %s155 = scalar_lea.vmem %s0, %s154
      $region28: #{mab_forward.15} parent=23 // pred_fallthru
        _
    $region24: #{mab_forward.15} parent=5 // pred_fallthru
      _
    %p156 = scmp.le.s32.totalorder 1, %s9
    %p157 = scmp.lt.s32.totalorder %s9, 9
    %p158 = pnand %p156, %p157
    %p159 = pneg %p158
    // Predicated region
    $region29: #{mab_forward.15} parent=5 // pred_check
      _
    $region30: #{mab_forward.15} parent=5 // pred_check_branch
      %161 = sbr.rel (%p158) target = $region32
    $region31: #{mab_forward.15} parent=5 // pred_region
      %s162 = ssub.s32 %s9, 1
      %p163 = scmp.lt.s32.totalorder %s18, 1
      %s164 = scalar_select %p163, %s18, 1
      %p165 = scmp.lt.s32.totalorder %s19, 3
      %s166 = scalar_select %p165, %s19, 3
      %s167 = smul.addr %s166, 2
      %s168 = smul.addr %s164, 8
      %s169 = sadd.s32 %s167, %s168
      %s170 = smul.addr %s169, 8
      %s171 = scalar_lea.vmem %s0, %s170
      %p172 = pneg %p49
      %p173 = pneg %p46
      %p174 = pneg %p70
      %p175 = pneg %p67
      %p176 = pneg %p91
      %p177 = pneg %p88
      %p178 = pneg %p119
      %p179 = pneg %p116
      %p180 = scmp.lt.s32.totalorder %s18, 1
      %s181 = scalar_select %p180, %s18, 1
      %p182 = scmp.lt.s32.totalorder %s19, 3
      %s183 = scalar_select %p182, %s19, 3
      %s184 = smul.addr %s181, 4
      %s185 = sadd.s32 %s183, %s184
      %s186 = smul.addr %s185, 8
      %s187 = scalar_lea.vmem %s3, %s186
      %p188 = scmp.lt.s32.totalorder %s18, 1
      %s189 = scalar_select %p188, %s18, 1
      %p190 = scmp.lt.s32.totalorder %s19, 3
      %s191 = scalar_select %p190, %s19, 3
      %s192 = smul.addr %s191, 2
      %s193 = smul.addr %s189, 8
      %s194 = sadd.s32 %s192, %s193
      %s195 = smul.addr %s194, 8
      %s196 = scalar_lea.vmem %s0, %s195
      %p197 = scmp.lt.s32.totalorder %s18, 1
      %s198 = scalar_select %p197, %s18, 1
      %p199 = scmp.lt.s32.totalorder %s19, 3
      %s200 = scalar_select %p199, %s19, 3
      %s201 = smul.addr %s198, 4
      %s202 = sadd.s32 %s200, %s201
      %s203 = smul.addr %s202, 8
      %s204 = scalar_lea.vmem %s3, %s203
      %v205 = vld [vmem:[%s196] sm:$0xff]
      %v206 = vld [vmem:[%s196 + $0x8] sm:$0xff]
      %v207 = vld [vmem:[%s2] sm:$0xff]
      %v208 = vld [vmem:[%s2 + $0x8] sm:$0xff]
      %vm209 = vcmask 130048
      %v211 = vsel %vm209, %v205, 0
      %v214 = vsel %vm209, %v206, 0
      %216 = vmatprep.subr.mxu0 0.0
      %217 = vmatpush1.msra.mxu0 0.0
      %218 = vmatprep.subr.mxu0 0.0
      %219 = vmatpush1.msra.mxu0 0.0
      %220 = vmatprep.subr.mxu0 0.0
      %221 = vmatpush1.msra.mxu0 0.0
      %222 = vmatprep.subr.mxu0 0.0
      %223 = vmatpush1.msra.mxu0 0.0
      %224 = vmatprep.subr.mxu0 0.0
      %225 = vmatpush1.msra.mxu0 0.0
      %226 = vmatprep.subr.mxu0 0.0
      %227 = vmatpush1.msra.mxu0 0.0
      %228 = vmatprep.subr.mxu0 0.0
      %229 = vmatpush1.msra.mxu0 0.0
      %230 = vmatprep.subr.mxu0 0.0
      %231 = vmatpush1.msra.mxu0 0.0
      %232 = vmatprep.subr.mxu0 0.0
      %233 = vmatpush1.msra.mxu0 0.0
      %234 = vmatprep.subr.mxu0 0.0
      %235 = vmatpush1.msra.mxu0 0.0
      %236 = vmatprep.subr.mxu0 0.0
      %237 = vmatpush1.msra.mxu0 0.0
      %238 = vmatprep.subr.mxu0 0.0
      %239 = vmatpush1.msra.mxu0 0.0
      %240 = vmatprep.subr.mxu0 0.0
      %241 = vmatpush1.msra.mxu0 0.0
      %242 = vmatprep.subr.mxu0 0.0
      %243 = vmatpush1.msra.mxu0 0.0
      %244 = vmatprep.subr.mxu0 0.0
      %245 = vmatpush1.msra.mxu0 %v208
      %246 = vmatprep.subr.mxu0 0.0
      %247 = vmatpush1.msra.mxu0 %v207
      %248 = vmatprep.subr.mxu0 0.0
      %249 = vmatpush2.msra.mxu0 0.0
      %250 = vmatprep.subr.mxu0 0.0
      %251 = vmatpush2.msra.mxu0 0.0
      %252 = vmatprep.subr.mxu0 0.0
      %253 = vmatpush2.msra.mxu0 0.0
      %254 = vmatprep.subr.mxu0 0.0
      %255 = vmatpush2.msra.mxu0 0.0
      %256 = vmatprep.subr.mxu0 0.0
      %257 = vmatpush2.msra.mxu0 0.0
      %258 = vmatprep.subr.mxu0 0.0
      %259 = vmatpush2.msra.mxu0 0.0
      %260 = vmatprep.subr.mxu0 0.0
      %261 = vmatpush2.msra.mxu0 0.0
      %262 = vmatprep.subr.mxu0 0.0
      %263 = vmatpush2.msra.mxu0 0.0
      %264 = vmatprep.subr.mxu0 0.0
      %265 = vmatpush2.msra.mxu0 0.0
      %266 = vmatprep.subr.mxu0 0.0
      %267 = vmatpush2.msra.mxu0 0.0
      %268 = vmatprep.subr.mxu0 0.0
      %269 = vmatpush2.msra.mxu0 0.0
      %270 = vmatprep.subr.mxu0 0.0
      %271 = vmatpush2.msra.mxu0 0.0
      %272 = vmatprep.subr.mxu0 0.0
      %273 = vmatpush2.msra.mxu0 0.0
      %274 = vmatprep.subr.mxu0 0.0
      %275 = vmatpush2.msra.mxu0 0.0
      %276 = vmatprep.subr.mxu0 0.0
      %277 = vmatpush2.msra.mxu0 0.0
      %278 = vmatprep.subr.mxu0 0.0
      %279 = vmatpush2.msra.mxu0 0.0
      %280 = vmatprep.mubr.f32.mxu0 0.0
      %281 = vmatmul.mubr.f32.gmra.mxu0 %v211
      %v282 = vpop.f32.mrf.mxu0
      %v283 = vadd.f32 0.0, %v282
      %v284 = vpop.f32.mrf.mxu0
      %285 = vmatprep.mubr.f32.mxu0 0.0
      %286 = vmatmul.mubr.f32.gmra.mxu0 %v214
      %v287 = vpop.f32.mrf.mxu0
      %v288 = vadd.f32 0.0, %v287
      %v289 = vpop.f32.mrf.mxu0
      %290 = vdwg.mxu0
      %v291 = vld [vmem:[%s1] sm:$0x1f]
      %v293 = vsel %vm209, %v291, 0
      %295 = vmatprep.subr.mxu0 0.0
      %296 = vmatpush1.msra.mxu0 0.0
      %297 = vmatprep.subr.mxu0 0.0
      %298 = vmatpush1.msra.mxu0 0.0
      %299 = vmatprep.subr.mxu0 0.0
      %300 = vmatpush1.msra.mxu0 0.0
      %301 = vmatprep.subr.mxu0 0.0
      %302 = vmatpush1.msra.mxu0 0.0
      %303 = vmatprep.subr.mxu0 0.0
      %304 = vmatpush1.msra.mxu0 0.0
      %305 = vmatprep.subr.mxu0 0.0
      %306 = vmatpush1.msra.mxu0 0.0
      %307 = vmatprep.subr.mxu0 0.0
      %308 = vmatpush1.msra.mxu0 0.0
      %309 = vmatprep.subr.mxu0 0.0
      %310 = vmatpush1.msra.mxu0 0.0
      %311 = vmatprep.subr.mxu0 0.0
      %312 = vmatpush1.msra.mxu0 0.0
      %313 = vmatprep.subr.mxu0 0.0
      %314 = vmatpush1.msra.mxu0 0.0
      %315 = vmatprep.subr.mxu0 0.0
      %316 = vmatpush1.msra.mxu0 0.0
      %317 = vmatprep.subr.mxu0 0.0
      %318 = vmatpush1.msra.mxu0 0.0
      %319 = vmatprep.subr.mxu0 0.0
      %320 = vmatpush1.msra.mxu0 0.0
      %321 = vmatprep.subr.mxu0 0.0
      %322 = vmatpush1.msra.mxu0 0.0
      %323 = vmatprep.subr.mxu0 0.0
      %324 = vmatpush1.msra.mxu0 %v288
      %325 = vmatprep.subr.mxu0 0.0
      %326 = vmatpush1.msra.mxu0 %v283
      %327 = vmatprep.subr.mxu0 0.0
      %328 = vmatpush2.msra.mxu0 0.0
      %329 = vmatprep.subr.mxu0 0.0
      %330 = vmatpush2.msra.mxu0 0.0
      %331 = vmatprep.subr.mxu0 0.0
      %332 = vmatpush2.msra.mxu0 0.0
      %333 = vmatprep.subr.mxu0 0.0
      %334 = vmatpush2.msra.mxu0 0.0
      %335 = vmatprep.subr.mxu0 0.0
      %336 = vmatpush2.msra.mxu0 0.0
      %337 = vmatprep.subr.mxu0 0.0
      %338 = vmatpush2.msra.mxu0 0.0
      %339 = vmatprep.subr.mxu0 0.0
      %340 = vmatpush2.msra.mxu0 0.0
      %341 = vmatprep.subr.mxu0 0.0
      %342 = vmatpush2.msra.mxu0 0.0
      %343 = vmatprep.subr.mxu0 0.0
      %344 = vmatpush2.msra.mxu0 0.0
      %345 = vmatprep.subr.mxu0 0.0
      %346 = vmatpush2.msra.mxu0 0.0
      %347 = vmatprep.subr.mxu0 0.0
      %348 = vmatpush2.msra.mxu0 0.0
      %349 = vmatprep.subr.mxu0 0.0
      %350 = vmatpush2.msra.mxu0 0.0
      %351 = vmatprep.subr.mxu0 0.0
      %352 = vmatpush2.msra.mxu0 0.0
      %353 = vmatprep.subr.mxu0 0.0
      %354 = vmatpush2.msra.mxu0 0.0
      %355 = vmatprep.subr.mxu0 0.0
      %356 = vmatpush2.msra.mxu0 0.0
      %357 = vmatprep.subr.mxu0 0.0
      %358 = vmatpush2.msra.mxu0 0.0
      %359 = vmatprep.mubr.f32.mxu0 0.0
      %360 = vmatmul.mubr.f32.gmra.mxu0 %v293
      %v361 = vpop.f32.mrf.mxu0
      %v362 = vadd.f32 0.0, %v361
      %v363 = vpop.f32.mrf.mxu0
      %364 = vdwg.mxu0
      %vm365 = vcmask 36864
      %366 = vst.msk [vmem:[%s204] sm:$0x1f] %vm365, %v362
      %p367 = scmp.lt.s32.totalorder %s18, 1
      %s368 = scalar_select %p367, %s18, 1
      %p369 = scmp.lt.s32.totalorder %s19, 3
      %s370 = scalar_select %p369, %s19, 3
      %s371 = smul.addr %s368, 4
      %s372 = sadd.s32 %s370, %s371
      %s373 = smul.addr %s372, 8
      %s374 = scalar_lea.vmem %s3, %s373
      // Predicated region
      $region33: #{mab_forward.15} parent=31 // pred_check
        %p375 = pneg %p116
      $region34: #{mab_forward.15} parent=31 // pred_check_branch
        %377 = sbr.rel (%p375) target = $region36
      $region35: #{mab_forward.15} parent=31 // pred_region
        _
      $region36: #{mab_forward.15} parent=31 // pred_fallthru
        _
    $region32: #{mab_forward.15} parent=5 // pred_fallthru
      _
    %p378 = scmp.le.s32.totalorder 2, %s9
    // Predicated region
    $region37: #{mab_forward.15} parent=5 // pred_check
      %p379 = pneg %p378
    $region38: #{mab_forward.15} parent=5 // pred_check_branch
      %381 = sbr.rel (%p379) target = $region40
    $region39: #{mab_forward.15} parent=5 // pred_region
      %s382 = ssub.s32 %s9, 2
      // Predicated region
      $region41: #{mab_forward.15} parent=39 // pred_check
        %p383 = pneg %p122
      $region42: #{mab_forward.15} parent=39 // pred_check_branch
        %385 = sbr.rel (%p383) target = $region44
      $region43: #{mab_forward.15} parent=39 // pred_region
        %p386 = scmp.lt.s32.totalorder %s20, 1
        %s387 = scalar_select %p386, %s20, 1
        %p388 = scmp.lt.s32.totalorder %s21, 3
        %s389 = scalar_select %p388, %s21, 3
        %s390 = smul.addr %s387, 4
        %s391 = sadd.s32 %s389, %s390
        %s392 = smul.addr %s391, 8
        %s393 = scalar_lea.vmem %s3, %s392
      $region44: #{mab_forward.15} parent=39 // pred_fallthru
        _
    $region40: #{mab_forward.15} parent=5 // pred_fallthru
      _
  $region6: #{mab_forward.15} parent=0 // loop_footer
    %s13 = sadd.s32 1, %s9
  $region7: #{mab_forward.15} parent=0 // loop_footer_branch
    %8 = sbr.rel target = $region3
  $region8: #{mab_forward.15} parent=0 // loop_exit
    _

// kernel: mab_forward.17
$region0: #{mab_forward.17}
  #allocation0 [shape = 'u32[]', space=smem, size = 0x4, offset = 0x4, fixed_abs, tag = 'smem constant byte address 0x4 - core index']
  #allocation1 [shape = 'u32[144,128]{1,0:T(1,128)}', space=vmem, size = 0x12000, scoped, tag = 'internal scratch']
  %s0 = inlined_call_operand.vmem [shape: f32[2,4,5,5], index: 0, kind: input, shape index: {}]
  %s1 = inlined_call_operand.vmem [shape: f32[20,5], index: 1, kind: input, shape index: {}]
  %s2 = inlined_call_operand.vmem [shape: f32[5,20], index: 2, kind: input, shape index: {}]
  %s3 = inlined_call_operand.vmem [shape: f32[2,4,20,20], index: 3, kind: output, shape index: {}]
  %s4 = sld [smem:[#allocation0]]
  $region45: #{mab_forward.17} parent=0
    _
  %s6 = ssub.s32 1, %s4
  %s7 = scalar_select 0, %s6, %s4
  loop: start=0, step=1, limit=10
  $region2: #{mab_forward.17} parent=0 // loop_pre_header
    _
  $region3: #{mab_forward.17} parent=0 // loop_header
    %s9 = sphi 0, %s13
    %p10 = scmp.ge.s32.totalorder %s9, 10
    %s16 = sphi 0, %s28
    %s17 = sphi 0, %s24
    %s18 = sphi 0, %s16
    %s19 = sphi 0, %s17
    %s20 = sphi 0, %s18
    %s21 = sphi 0, %s19
    %s33 = sphi 0, %s35
    %s36 = sphi 0, %s33
    %s37 = sphi 0, %s36
    %s53 = sphi 0, %s37
    %s57 = sphi 0, %s57
    %s59 = sphi 0, %s57
    %s60 = sphi 0, %s59
    %s74 = sphi 0, %s60
    %s78 = sphi 0, %s78
    %s80 = sphi 0, %s78
    %s81 = sphi 0, %s80
    %s95 = sphi 0, %s81
    %s103 = sphi 0, %s105
    %s106 = sphi 0, %s103
    %s107 = sphi 0, %s106
    %s123 = sphi 0, %s107
  $region4: #{mab_forward.17} parent=0 // loop_header_branch
    %12 = sbr.rel (%p10) target = $region8
  $region5: #{mab_forward.17} parent=0 // loop_body
    %s14 = ssub.s32 %s9, 1
    %s15 = ssub.s32 %s9, 2
    %s22 = sadd.s32 1, %s17
    %p23 = scmp.ge.s32.totalorder %s22, 4
    %s24 = scalar_select %p23, 0, %s22
    %s25 = sadd.s32 1, %s16
    %s26 = scalar_select %p23, %s25, %s16
    %p27 = scmp.ge.s32.totalorder %s26, 2
    %s28 = scalar_select %p27, 0, %s26
    %s29 = ssub.s32 %s16, %s28
    %s30 = ssub.s32 %s17, %s24
    %s31 = sor.u32 %s29, %s30
    %p32 = scmp.eq.s32.totalorder %s31, 0
    %s34 = sadd.s32 %s33, 1
    %s35 = scalar_select %p32, %s33, %s34
    %p38 = pneg %p32
    %p39 = scmp.eq.s32.totalorder %s9, 7
    %p40 = por %p38, %p39
    %p41 = scmp.ne.s32.totalorder %s33, %s36
    %p42 = scmp.eq.s32.totalorder %s9, 0
    %p43 = por %p41, %p42
    %p44 = scmp.ne.s32.totalorder %s33, %s36
    %p45 = scmp.eq.s32.totalorder %s14, 7
    %p46 = por %p44, %p45
    %p47 = scmp.ne.s32.totalorder %s36, %s37
    %p48 = scmp.eq.s32.totalorder %s14, 0
    %p49 = por %p47, %p48
    %p50 = scmp.ne.s32.totalorder %s36, %s37
    %p51 = scmp.eq.s32.totalorder %s15, 7
    %p52 = por %p50, %p51
    %p54 = scmp.ne.s32.totalorder %s37, %s53
    %p55 = scmp.eq.s32.totalorder %s15, 0
    %p56 = por %p54, %p55
    %s58 = sadd.s32 %s57, 1
    %p61 = scmp.eq.s32.totalorder %s9, 7
    %p62 = scmp.ne.s32.totalorder %s57, %s59
    %p63 = scmp.eq.s32.totalorder %s9, 0
    %p64 = por %p62, %p63
    %p65 = scmp.ne.s32.totalorder %s57, %s59
    %p66 = scmp.eq.s32.totalorder %s14, 7
    %p67 = por %p65, %p66
    %p68 = scmp.ne.s32.totalorder %s59, %s60
    %p69 = scmp.eq.s32.totalorder %s14, 0
    %p70 = por %p68, %p69
    %p71 = scmp.ne.s32.totalorder %s59, %s60
    %p72 = scmp.eq.s32.totalorder %s15, 7
    %p73 = por %p71, %p72
    %p75 = scmp.ne.s32.totalorder %s60, %s74
    %p76 = scmp.eq.s32.totalorder %s15, 0
    %p77 = por %p75, %p76
    %s79 = sadd.s32 %s78, 1
    %p82 = scmp.eq.s32.totalorder %s9, 7
    %p83 = scmp.ne.s32.totalorder %s78, %s80
    %p84 = scmp.eq.s32.totalorder %s9, 0
    %p85 = por %p83, %p84
    %p86 = scmp.ne.s32.totalorder %s78, %s80
    %p87 = scmp.eq.s32.totalorder %s14, 7
    %p88 = por %p86, %p87
    %p89 = scmp.ne.s32.totalorder %s80, %s81
    %p90 = scmp.eq.s32.totalorder %s14, 0
    %p91 = por %p89, %p90
    %p92 = scmp.ne.s32.totalorder %s80, %s81
    %p93 = scmp.eq.s32.totalorder %s15, 7
    %p94 = por %p92, %p93
    %p96 = scmp.ne.s32.totalorder %s81, %s95
    %p97 = scmp.eq.s32.totalorder %s15, 0
    %p98 = por %p96, %p97
    %s99 = ssub.s32 %s16, %s28
    %s100 = ssub.s32 %s17, %s24
    %s101 = sor.u32 %s99, %s100
    %p102 = scmp.eq.s32.totalorder %s101, 0
    %s104 = sadd.s32 %s103, 1
    %s105 = scalar_select %p102, %s103, %s104
    %p108 = pneg %p102
    %p109 = scmp.eq.s32.totalorder %s9, 7
    %p110 = por %p108, %p109
    %p111 = scmp.ne.s32.totalorder %s103, %s106
    %p112 = scmp.eq.s32.totalorder %s9, 0
    %p113 = por %p111, %p112
    %p114 = scmp.ne.s32.totalorder %s103, %s106
    %p115 = scmp.eq.s32.totalorder %s14, 7
    %p116 = por %p114, %p115
    %p117 = scmp.ne.s32.totalorder %s106, %s107
    %p118 = scmp.eq.s32.totalorder %s14, 0
    %p119 = por %p117, %p118
    %p120 = scmp.ne.s32.totalorder %s106, %s107
    %p121 = scmp.eq.s32.totalorder %s15, 7
    %p122 = por %p120, %p121
    %p124 = scmp.ne.s32.totalorder %s107, %s123
    %p125 = scmp.eq.s32.totalorder %s15, 0
    %p126 = por %p124, %p125
    %p127 = scmp.le.s32.totalorder 1, %s9
    %p128 = scmp.lt.s32.totalorder %s9, 9
    %p129 = pnand %p127, %p128
    %p130 = pneg %p129
    // Predicated region
    $region9: #{mab_forward.17} parent=5 // pred_check
      _
    $region10: #{mab_forward.17} parent=5 // pred_check_branch
      %132 = sbr.rel (%p129) target = $region12
    $region11: #{mab_forward.17} parent=5 // pred_region
      %s133 = ssub.s32 %s9, 1
      // Predicated region
      $region13: #{mab_forward.17} parent=11 // pred_check
        %p134 = pneg %p70
      $region14: #{mab_forward.17} parent=11 // pred_check_branch
        %136 = sbr.rel (%p134) target = $region16
      $region15: #{mab_forward.17} parent=11 // pred_region
        _
      $region16: #{mab_forward.17} parent=11 // pred_fallthru
        _
      // Predicated region
      $region17: #{mab_forward.17} parent=11 // pred_check
        %p137 = pneg %p91
      $region18: #{mab_forward.17} parent=11 // pred_check_branch
        %139 = sbr.rel (%p137) target = $region20
      $region19: #{mab_forward.17} parent=11 // pred_region
        _
      $region20: #{mab_forward.17} parent=11 // pred_fallthru
        _
    $region12: #{mab_forward.17} parent=5 // pred_fallthru
      _
    %p140 = scmp.lt.s32.totalorder %s9, 8
    // Predicated region
    $region21: #{mab_forward.17} parent=5 // pred_check
      %p141 = pneg %p140
    $region22: #{mab_forward.17} parent=5 // pred_check_branch
      %143 = sbr.rel (%p141) target = $region24
    $region23: #{mab_forward.17} parent=5 // pred_region
      // Predicated region
      $region25: #{mab_forward.17} parent=23 // pred_check
        %p144 = pneg %p43
      $region26: #{mab_forward.17} parent=23 // pred_check_branch
        %146 = sbr.rel (%p144) target = $region28
      $region27: #{mab_forward.17} parent=23 // pred_region
        %p147 = scmp.lt.s32.totalorder %s16, 1
        %s148 = scalar_select %p147, %s16, 1
        %p149 = scmp.lt.s32.totalorder %s17, 3
        %s150 = scalar_select %p149, %s17, 3
        %s151 = smul.addr %s148, 4
        %s152 = sadd.s32 %s150, %s151
        %s153 = smul.addr %s152, 8
        %s154 = scalar_lea.vmem %s0, %s153
      $region28: #{mab_forward.17} parent=23 // pred_fallthru
        _
    $region24: #{mab_forward.17} parent=5 // pred_fallthru
      _
    %p155 = scmp.le.s32.totalorder 1, %s9
    %p156 = scmp.lt.s32.totalorder %s9, 9
    %p157 = pnand %p155, %p156
    %p158 = pneg %p157
    // Predicated region
    $region29: #{mab_forward.17} parent=5 // pred_check
      _
    $region30: #{mab_forward.17} parent=5 // pred_check_branch
      %160 = sbr.rel (%p157) target = $region32
    $region31: #{mab_forward.17} parent=5 // pred_region
      %s161 = ssub.s32 %s9, 1
      %p162 = scmp.lt.s32.totalorder %s18, 1
      %s163 = scalar_select %p162, %s18, 1
      %p164 = scmp.lt.s32.totalorder %s19, 3
      %s165 = scalar_select %p164, %s19, 3
      %s166 = smul.addr %s163, 4
      %s167 = sadd.s32 %s165, %s166
      %s168 = smul.addr %s167, 8
      %s169 = scalar_lea.vmem %s0, %s168
      %p170 = pneg %p49
      %p171 = pneg %p46
      %p172 = pneg %p70
      %p173 = pneg %p67
      %p174 = pneg %p91
      %p175 = pneg %p88
      %p176 = pneg %p119
      %p177 = pneg %p116
      %p178 = scmp.lt.s32.totalorder %s18, 1
      %s179 = scalar_select %p178, %s18, 1
      %p180 = scmp.lt.s32.totalorder %s19, 3
      %s181 = scalar_select %p180, %s19, 3
      %s182 = smul.addr %s181, 3
      %s183 = smul.addr %s179, 12
      %s184 = sadd.s32 %s182, %s183
      %s185 = smul.addr %s184, 8
      %s186 = scalar_lea.vmem %s3, %s185
      %p187 = scmp.lt.s32.totalorder %s18, 1
      %s188 = scalar_select %p187, %s18, 1
      %p189 = scmp.lt.s32.totalorder %s19, 3
      %s190 = scalar_select %p189, %s19, 3
      %s191 = smul.addr %s188, 4
      %s192 = sadd.s32 %s190, %s191
      %s193 = smul.addr %s192, 8
      %s194 = scalar_lea.vmem %s0, %s193
      %p195 = scmp.lt.s32.totalorder %s18, 1
      %s196 = scalar_select %p195, %s18, 1
      %p197 = scmp.lt.s32.totalorder %s19, 3
      %s198 = scalar_select %p197, %s19, 3
      %s199 = smul.addr %s198, 3
      %s200 = smul.addr %s196, 12
      %s201 = sadd.s32 %s199, %s200
      %s202 = smul.addr %s201, 8
      %s203 = scalar_lea.vmem %s3, %s202
      %v204 = vld [vmem:[%s194] sm:$0x1f]
      %v205 = vld [vmem:[%s2] sm:$0x1f]
      %vm206 = vcmask 39936
      %v208 = vsel %vm206, %v204, 0
      %vm210 = vcmask 1044480
      %v212 = vsel %vm210, %v205, 0
      %214 = vmatprep.subr.mxu0 0.0
      %215 = vmatpush1.msra.mxu0 0.0
      %216 = vmatprep.subr.mxu0 0.0
      %217 = vmatpush1.msra.mxu0 0.0
      %218 = vmatprep.subr.mxu0 0.0
      %219 = vmatpush1.msra.mxu0 0.0
      %220 = vmatprep.subr.mxu0 0.0
      %221 = vmatpush1.msra.mxu0 0.0
      %222 = vmatprep.subr.mxu0 0.0
      %223 = vmatpush1.msra.mxu0 0.0
      %224 = vmatprep.subr.mxu0 0.0
      %225 = vmatpush1.msra.mxu0 0.0
      %226 = vmatprep.subr.mxu0 0.0
      %227 = vmatpush1.msra.mxu0 0.0
      %228 = vmatprep.subr.mxu0 0.0
      %229 = vmatpush1.msra.mxu0 0.0
      %230 = vmatprep.subr.mxu0 0.0
      %231 = vmatpush1.msra.mxu0 0.0
      %232 = vmatprep.subr.mxu0 0.0
      %233 = vmatpush1.msra.mxu0 0.0
      %234 = vmatprep.subr.mxu0 0.0
      %235 = vmatpush1.msra.mxu0 0.0
      %236 = vmatprep.subr.mxu0 0.0
      %237 = vmatpush1.msra.mxu0 0.0
      %238 = vmatprep.subr.mxu0 0.0
      %239 = vmatpush1.msra.mxu0 0.0
      %240 = vmatprep.subr.mxu0 0.0
      %241 = vmatpush1.msra.mxu0 0.0
      %242 = vmatprep.subr.mxu0 0.0
      %243 = vmatpush1.msra.mxu0 0.0
      %244 = vmatprep.subr.mxu0 0.0
      %245 = vmatpush1.msra.mxu0 %v212
      %246 = vmatprep.subr.mxu0 0.0
      %247 = vmatpush2.msra.mxu0 0.0
      %248 = vmatprep.subr.mxu0 0.0
      %249 = vmatpush2.msra.mxu0 0.0
      %250 = vmatprep.subr.mxu0 0.0
      %251 = vmatpush2.msra.mxu0 0.0
      %252 = vmatprep.subr.mxu0 0.0
      %253 = vmatpush2.msra.mxu0 0.0
      %254 = vmatprep.subr.mxu0 0.0
      %255 = vmatpush2.msra.mxu0 0.0
      %256 = vmatprep.subr.mxu0 0.0
      %257 = vmatpush2.msra.mxu0 0.0
      %258 = vmatprep.subr.mxu0 0.0
      %259 = vmatpush2.msra.mxu0 0.0
      %260 = vmatprep.subr.mxu0 0.0
      %261 = vmatpush2.msra.mxu0 0.0
      %262 = vmatprep.subr.mxu0 0.0
      %263 = vmatpush2.msra.mxu0 0.0
      %264 = vmatprep.subr.mxu0 0.0
      %265 = vmatpush2.msra.mxu0 0.0
      %266 = vmatprep.subr.mxu0 0.0
      %267 = vmatpush2.msra.mxu0 0.0
      %268 = vmatprep.subr.mxu0 0.0
      %269 = vmatpush2.msra.mxu0 0.0
      %270 = vmatprep.subr.mxu0 0.0
      %271 = vmatpush2.msra.mxu0 0.0
      %272 = vmatprep.subr.mxu0 0.0
      %273 = vmatpush2.msra.mxu0 0.0
      %274 = vmatprep.subr.mxu0 0.0
      %275 = vmatpush2.msra.mxu0 0.0
      %276 = vmatprep.subr.mxu0 0.0
      %277 = vmatpush2.msra.mxu0 0.0
      %278 = vmatprep.mubr.f32.mxu0 0.0
      %279 = vmatmul.mubr.f32.gmra.mxu0 %v208
      %v280 = vpop.f32.mrf.mxu0
      %v281 = vadd.f32 0.0, %v280
      %v282 = vpop.f32.mrf.mxu0
      %283 = vdwg.mxu0
      %v284 = vld [vmem:[%s1] sm:$0xff]
      %v285 = vld [vmem:[%s1 + $0x8] sm:$0xff]
      %v286 = vld [vmem:[%s1 + $0x10] sm:$0xf]
      %v288 = vsel %vm206, %v284, 0
      %v291 = vsel %vm206, %v285, 0
      %v294 = vsel %vm206, %v286, 0
      %v297 = vsel %vm210, %v281, 0
      %299 = vmatprep.subr.mxu0 0.0
      %300 = vmatpush1.msra.mxu0 0.0
      %301 = vmatprep.subr.mxu0 0.0
      %302 = vmatpush1.msra.mxu0 0.0
      %303 = vmatprep.subr.mxu0 0.0
      %304 = vmatpush1.msra.mxu0 0.0
      %305 = vmatprep.subr.mxu0 0.0
      %306 = vmatpush1.msra.mxu0 0.0
      %307 = vmatprep.subr.mxu0 0.0
      %308 = vmatpush1.msra.mxu0 0.0
      %309 = vmatprep.subr.mxu0 0.0
      %310 = vmatpush1.msra.mxu0 0.0
      %311 = vmatprep.subr.mxu0 0.0
      %312 = vmatpush1.msra.mxu0 0.0
      %313 = vmatprep.subr.mxu0 0.0
      %314 = vmatpush1.msra.mxu0 0.0
      %315 = vmatprep.subr.mxu0 0.0
      %316 = vmatpush1.msra.mxu0 0.0
      %317 = vmatprep.subr.mxu0 0.0
      %318 = vmatpush1.msra.mxu0 0.0
      %319 = vmatprep.subr.mxu0 0.0
      %320 = vmatpush1.msra.mxu0 0.0
      %321 = vmatprep.subr.mxu0 0.0
      %322 = vmatpush1.msra.mxu0 0.0
      %323 = vmatprep.subr.mxu0 0.0
      %324 = vmatpush1.msra.mxu0 0.0
      %325 = vmatprep.subr.mxu0 0.0
      %326 = vmatpush1.msra.mxu0 0.0
      %327 = vmatprep.subr.mxu0 0.0
      %328 = vmatpush1.msra.mxu0 0.0
      %329 = vmatprep.subr.mxu0 0.0
      %330 = vmatpush1.msra.mxu0 %v297
      %331 = vmatprep.subr.mxu0 0.0
      %332 = vmatpush2.msra.mxu0 0.0
      %333 = vmatprep.subr.mxu0 0.0
      %334 = vmatpush2.msra.mxu0 0.0
      %335 = vmatprep.subr.mxu0 0.0
      %336 = vmatpush2.msra.mxu0 0.0
      %337 = vmatprep.subr.mxu0 0.0
      %338 = vmatpush2.msra.mxu0 0.0
      %339 = vmatprep.subr.mxu0 0.0
      %340 = vmatpush2.msra.mxu0 0.0
      %341 = vmatprep.subr.mxu0 0.0
      %342 = vmatpush2.msra.mxu0 0.0
      %343 = vmatprep.subr.mxu0 0.0
      %344 = vmatpush2.msra.mxu0 0.0
      %345 = vmatprep.subr.mxu0 0.0
      %346 = vmatpush2.msra.mxu0 0.0
      %347 = vmatprep.subr.mxu0 0.0
      %348 = vmatpush2.msra.mxu0 0.0
      %349 = vmatprep.subr.mxu0 0.0
      %350 = vmatpush2.msra.mxu0 0.0
      %351 = vmatprep.subr.mxu0 0.0
      %352 = vmatpush2.msra.mxu0 0.0
      %353 = vmatprep.subr.mxu0 0.0
      %354 = vmatpush2.msra.mxu0 0.0
      %355 = vmatprep.subr.mxu0 0.0
      %356 = vmatpush2.msra.mxu0 0.0
      %357 = vmatprep.subr.mxu0 0.0
      %358 = vmatpush2.msra.mxu0 0.0
      %359 = vmatprep.subr.mxu0 0.0
      %360 = vmatpush2.msra.mxu0 0.0
      %361 = vmatprep.subr.mxu0 0.0
      %362 = vmatpush2.msra.mxu0 0.0
      %363 = vmatprep.mubr.f32.mxu0 0.0
      %364 = vmatmul.mubr.f32.gmra.mxu0 %v288
      %v365 = vpop.f32.mrf.mxu0
      %v366 = vadd.f32 0.0, %v365
      %v367 = vpop.f32.mrf.mxu0
      %368 = vmatprep.mubr.f32.mxu0 0.0
      %369 = vmatmul.mubr.f32.gmra.mxu0 %v291
      %v370 = vpop.f32.mrf.mxu0
      %v371 = vadd.f32 0.0, %v370
      %v372 = vpop.f32.mrf.mxu0
      %373 = vmatprep.mubr.f32.mxu0 0.0
      %374 = vmatmul.mubr.f32.gmra.mxu0 %v294
      %v375 = vpop.f32.mrf.mxu0
      %v376 = vadd.f32 0.0, %v375
      %v377 = vpop.f32.mrf.mxu0
      %378 = vdwg.mxu0
      %vm379 = vcmask 162816
      %380 = vst.msk [vmem:[%s203] sm:$0xff] %vm379, %v366
      %381 = vst.msk [vmem:[%s203 + $0x8] sm:$0xff] %vm379, %v371
      %vm382 = vcmask 158720
      %383 = vst.msk [vmem:[%s203 + $0x10] sm:$0xf] %vm382, %v376
      %p384 = scmp.lt.s32.totalorder %s18, 1
      %s385 = scalar_select %p384, %s18, 1
      %p386 = scmp.lt.s32.totalorder %s19, 3
      %s387 = scalar_select %p386, %s19, 3
      %s388 = smul.addr %s387, 3
      %s389 = smul.addr %s385, 12
      %s390 = sadd.s32 %s388, %s389
      %s391 = smul.addr %s390, 8
      %s392 = scalar_lea.vmem %s3, %s391
      // Predicated region
      $region33: #{mab_forward.17} parent=31 // pred_check
        %p393 = pneg %p116
      $region34: #{mab_forward.17} parent=31 // pred_check_branch
        %395 = sbr.rel (%p393) target = $region36
      $region35: #{mab_forward.17} parent=31 // pred_region
        _
      $region36: #{mab_forward.17} parent=31 // pred_fallthru
        _
    $region32: #{mab_forward.17} parent=5 // pred_fallthru
      _
    %p396 = scmp.le.s32.totalorder 2, %s9
    // Predicated region
    $region37: #{mab_forward.17} parent=5 // pred_check
      %p397 = pneg %p396
    $region38: #{mab_forward.17} parent=5 // pred_check_branch
      %399 = sbr.rel (%p397) target = $region40
    $region39: #{mab_forward.17} parent=5 // pred_region
      %s400 = ssub.s32 %s9, 2
      // Predicated region
      $region41: #{mab_forward.17} parent=39 // pred_check
        %p401 = pneg %p122
      $region42: #{mab_forward.17} parent=39 // pred_check_branch
        %403 = sbr.rel (%p401) target = $region44
      $region43: #{mab_forward.17} parent=39 // pred_region
        %p404 = scmp.lt.s32.totalorder %s20, 1
        %s405 = scalar_select %p404, %s20, 1
        %p406 = scmp.lt.s32.totalorder %s21, 3
        %s407 = scalar_select %p406, %s21, 3
        %s408 = smul.addr %s407, 3
        %s409 = smul.addr %s405, 12
        %s410 = sadd.s32 %s408, %s409
        %s411 = smul.addr %s410, 8
        %s412 = scalar_lea.vmem %s3, %s411
      $region44: #{mab_forward.17} parent=39 // pred_fallthru
        _
    $region40: #{mab_forward.17} parent=5 // pred_fallthru
      _
  $region6: #{mab_forward.17} parent=0 // loop_footer
    %s13 = sadd.s32 1, %s9
  $region7: #{mab_forward.17} parent=0 // loop_footer_branch
    %8 = sbr.rel target = $region3
  $region8: #{mab_forward.17} parent=0 // loop_exit
    _

// kernel: mab_forward.16
$region0: #{mab_forward.16}
  #allocation0 [shape = 'u32[]', space=smem, size = 0x4, offset = 0x4, fixed_abs, tag = 'smem constant byte address 0x4 - core index']
  #allocation1 [shape = 'u32[144,128]{1,0:T(1,128)}', space=vmem, size = 0x12000, scoped, tag = 'internal scratch']
  %s0 = inlined_call_operand.vmem [shape: f32[2,4,25], index: 0, kind: input, shape index: {}]
  %s1 = inlined_call_operand.vmem [shape: f32[4,4], index: 1, kind: input, shape index: {}]
  %s2 = inlined_call_operand.vmem [shape: f32[2,4,25], index: 2, kind: output, shape index: {}]
  %s3 = sld [smem:[#allocation0]]
  $region41: #{mab_forward.16} parent=0
    _
  %s5 = ssub.s32 1, %s3
  %s6 = scalar_select 0, %s5, %s3
  loop: start=0, step=1, limit=4
  $region2: #{mab_forward.16} parent=0 // loop_pre_header
    _
  $region3: #{mab_forward.16} parent=0 // loop_header
    %s8 = sphi 0, %s12
    %p9 = scmp.ge.s32.totalorder %s8, 4
    %s18 = sphi 0, %s20
    %s21 = sphi 0, %s18
    %s22 = sphi 0, %s21
    %s38 = sphi 0, %s22
    %s42 = sphi 0, %s42
    %s44 = sphi 0, %s42
    %s45 = sphi 0, %s44
    %s59 = sphi 0, %s45
    %s65 = sphi 0, %s67
    %s68 = sphi 0, %s65
    %s69 = sphi 0, %s68
    %s85 = sphi 0, %s69
  $region4: #{mab_forward.16} parent=0 // loop_header_branch
    %11 = sbr.rel (%p9) target = $region8
  $region5: #{mab_forward.16} parent=0 // loop_body
    %s13 = ssub.s32 %s8, 1
    %s14 = ssub.s32 %s8, 2
    %s15 = sadd.s32 %s8, 1
    %s16 = ssub.s32 %s8, %s15
    %p17 = scmp.eq.s32.totalorder %s16, 0
    %s19 = sadd.s32 %s18, 1
    %s20 = scalar_select %p17, %s18, %s19
    %p23 = pneg %p17
    %p24 = scmp.eq.s32.totalorder %s8, 1
    %p25 = por %p23, %p24
    %p26 = scmp.ne.s32.totalorder %s18, %s21
    %p27 = scmp.eq.s32.totalorder %s8, 0
    %p28 = por %p26, %p27
    %p29 = scmp.ne.s32.totalorder %s18, %s21
    %p30 = scmp.eq.s32.totalorder %s13, 1
    %p31 = por %p29, %p30
    %p32 = scmp.ne.s32.totalorder %s21, %s22
    %p33 = scmp.eq.s32.totalorder %s13, 0
    %p34 = por %p32, %p33
    %p35 = scmp.ne.s32.totalorder %s21, %s22
    %p36 = scmp.eq.s32.totalorder %s14, 1
    %p37 = por %p35, %p36
    %p39 = scmp.ne.s32.totalorder %s22, %s38
    %p40 = scmp.eq.s32.totalorder %s14, 0
    %p41 = por %p39, %p40
    %s43 = sadd.s32 %s42, 1
    %p46 = scmp.eq.s32.totalorder %s8, 1
    %p47 = scmp.ne.s32.totalorder %s42, %s44
    %p48 = scmp.eq.s32.totalorder %s8, 0
    %p49 = por %p47, %p48
    %p50 = scmp.ne.s32.totalorder %s42, %s44
    %p51 = scmp.eq.s32.totalorder %s13, 1
    %p52 = por %p50, %p51
    %p53 = scmp.ne.s32.totalorder %s44, %s45
    %p54 = scmp.eq.s32.totalorder %s13, 0
    %p55 = por %p53, %p54
    %p56 = scmp.ne.s32.totalorder %s44, %s45
    %p57 = scmp.eq.s32.totalorder %s14, 1
    %p58 = por %p56, %p57
    %p60 = scmp.ne.s32.totalorder %s45, %s59
    %p61 = scmp.eq.s32.totalorder %s14, 0
    %p62 = por %p60, %p61
    %s63 = ssub.s32 %s8, %s15
    %p64 = scmp.eq.s32.totalorder %s63, 0
    %s66 = sadd.s32 %s65, 1
    %s67 = scalar_select %p64, %s65, %s66
    %p70 = pneg %p64
    %p71 = scmp.eq.s32.totalorder %s8, 1
    %p72 = por %p70, %p71
    %p73 = scmp.ne.s32.totalorder %s65, %s68
    %p74 = scmp.eq.s32.totalorder %s8, 0
    %p75 = por %p73, %p74
    %p76 = scmp.ne.s32.totalorder %s65, %s68
    %p77 = scmp.eq.s32.totalorder %s13, 1
    %p78 = por %p76, %p77
    %p79 = scmp.ne.s32.totalorder %s68, %s69
    %p80 = scmp.eq.s32.totalorder %s13, 0
    %p81 = por %p79, %p80
    %p82 = scmp.ne.s32.totalorder %s68, %s69
    %p83 = scmp.eq.s32.totalorder %s14, 1
    %p84 = por %p82, %p83
    %p86 = scmp.ne.s32.totalorder %s69, %s85
    %p87 = scmp.eq.s32.totalorder %s14, 0
    %p88 = por %p86, %p87
    %p89 = scmp.le.s32.totalorder 1, %s8
    %p90 = scmp.lt.s32.totalorder %s8, 3
    %p91 = pnand %p89, %p90
    %p92 = pneg %p91
    // Predicated region
    $region9: #{mab_forward.16} parent=5 // pred_check
      _
    $region10: #{mab_forward.16} parent=5 // pred_check_branch
      %94 = sbr.rel (%p91) target = $region12
    $region11: #{mab_forward.16} parent=5 // pred_region
      %s95 = ssub.s32 %s8, 1
      // Predicated region
      $region13: #{mab_forward.16} parent=11 // pred_check
        %p96 = pneg %p55
      $region14: #{mab_forward.16} parent=11 // pred_check_branch
        %98 = sbr.rel (%p96) target = $region16
      $region15: #{mab_forward.16} parent=11 // pred_region
        _
      $region16: #{mab_forward.16} parent=11 // pred_fallthru
        _
    $region12: #{mab_forward.16} parent=5 // pred_fallthru
      _
    %p99 = scmp.lt.s32.totalorder %s8, 2
    // Predicated region
    $region17: #{mab_forward.16} parent=5 // pred_check
      %p100 = pneg %p99
    $region18: #{mab_forward.16} parent=5 // pred_check_branch
      %102 = sbr.rel (%p100) target = $region20
    $region19: #{mab_forward.16} parent=5 // pred_region
      // Predicated region
      $region21: #{mab_forward.16} parent=19 // pred_check
        %p103 = pneg %p28
      $region22: #{mab_forward.16} parent=19 // pred_check_branch
        %105 = sbr.rel (%p103) target = $region24
      $region23: #{mab_forward.16} parent=19 // pred_region
        %p106 = scmp.lt.s32.totalorder %s8, 1
        %s107 = scalar_select %p106, %s8, 1
        %s108 = smul.addr %s107, 4
        %s109 = scalar_lea.vmem %s0, %s108
      $region24: #{mab_forward.16} parent=19 // pred_fallthru
        _
    $region20: #{mab_forward.16} parent=5 // pred_fallthru
      _
    %p110 = scmp.le.s32.totalorder 1, %s8
    %p111 = scmp.lt.s32.totalorder %s8, 3
    %p112 = pnand %p110, %p111
    %p113 = pneg %p112
    // Predicated region
    $region25: #{mab_forward.16} parent=5 // pred_check
      _
    $region26: #{mab_forward.16} parent=5 // pred_check_branch
      %115 = sbr.rel (%p112) target = $region28
    $region27: #{mab_forward.16} parent=5 // pred_region
      %s116 = ssub.s32 %s8, 1
      %p117 = scmp.lt.s32.totalorder %s13, 1
      %s118 = scalar_select %p117, %s13, 1
      %s119 = smul.addr %s118, 4
      %s120 = scalar_lea.vmem %s0, %s119
      %p121 = pneg %p34
      %p122 = pneg %p31
      %p123 = pneg %p55
      %p124 = pneg %p52
      %p125 = pneg %p81
      %p126 = pneg %p78
      %p127 = scmp.lt.s32.totalorder %s13, 1
      %s128 = scalar_select %p127, %s13, 1
      %s129 = smul.addr %s128, 4
      %s130 = scalar_lea.vmem %s2, %s129
      %p131 = scmp.lt.s32.totalorder %s13, 1
      %s132 = scalar_select %p131, %s13, 1
      %s133 = smul.addr %s132, 4
      %s134 = scalar_lea.vmem %s0, %s133
      %p135 = scmp.lt.s32.totalorder %s13, 1
      %s136 = scalar_select %p135, %s13, 1
      %s137 = smul.addr %s136, 4
      %s138 = scalar_lea.vmem %s2, %s137
      %v139 = vld [vmem:[%s134] sm:$0xf]
      %vm140 = vcmask 199680
      %v141 = vsel %vm140, %v139, 0.0
      %142 = vadd.xlane.f32.xlu0 %v141
      %v143 = vpop.xlane.xlu0 %142
      %v144 = vrcp.pop 25.0
      %v145 = vmul.f32 %v143, %v144
      %v146 = vld [vmem:[%s1] sm:$0xf]
      %v148 = vlaneseq
      %v149 = vand.u32 %v148, 127
      %v150 = vlaneseq
      %v151 = vshrl.u32 %v150, 7
      %v152 = vsub.s32 %v149, %v151
      %v153 = vrot.slane %v145, %v152
      %vm154 = vcmask 31744
      %v155 = vsel %vm154, %v153, 0
      %vm157 = vcmask 1043456
      %v159 = vsel %vm157, %v146, 0
      %161 = vmatprep.subr.mxu0 0.0
      %162 = vmatpush1.msra.mxu0 0.0
      %163 = vmatprep.subr.mxu0 0.0
      %164 = vmatpush1.msra.mxu0 0.0
      %165 = vmatprep.subr.mxu0 0.0
      %166 = vmatpush1.msra.mxu0 0.0
      %167 = vmatprep.subr.mxu0 0.0
      %168 = vmatpush1.msra.mxu0 0.0
      %169 = vmatprep.subr.mxu0 0.0
      %170 = vmatpush1.msra.mxu0 0.0
      %171 = vmatprep.subr.mxu0 0.0
      %172 = vmatpush1.msra.mxu0 0.0
      %173 = vmatprep.subr.mxu0 0.0
      %174 = vmatpush1.msra.mxu0 0.0
      %175 = vmatprep.subr.mxu0 0.0
      %176 = vmatpush1.msra.mxu0 0.0
      %177 = vmatprep.subr.mxu0 0.0
      %178 = vmatpush1.msra.mxu0 0.0
      %179 = vmatprep.subr.mxu0 0.0
      %180 = vmatpush1.msra.mxu0 0.0
      %181 = vmatprep.subr.mxu0 0.0
      %182 = vmatpush1.msra.mxu0 0.0
      %183 = vmatprep.subr.mxu0 0.0
      %184 = vmatpush1.msra.mxu0 0.0
      %185 = vmatprep.subr.mxu0 0.0
      %186 = vmatpush1.msra.mxu0 0.0
      %187 = vmatprep.subr.mxu0 0.0
      %188 = vmatpush1.msra.mxu0 0.0
      %189 = vmatprep.subr.mxu0 0.0
      %190 = vmatpush1.msra.mxu0 0.0
      %191 = vmatprep.subr.mxu0 0.0
      %192 = vmatpush1.msra.mxu0 %v159
      %193 = vmatprep.subr.mxu0 0.0
      %194 = vmatpush2.msra.mxu0 0.0
      %195 = vmatprep.subr.mxu0 0.0
      %196 = vmatpush2.msra.mxu0 0.0
      %197 = vmatprep.subr.mxu0 0.0
      %198 = vmatpush2.msra.mxu0 0.0
      %199 = vmatprep.subr.mxu0 0.0
      %200 = vmatpush2.msra.mxu0 0.0
      %201 = vmatprep.subr.mxu0 0.0
      %202 = vmatpush2.msra.mxu0 0.0
      %203 = vmatprep.subr.mxu0 0.0
      %204 = vmatpush2.msra.mxu0 0.0
      %205 = vmatprep.subr.mxu0 0.0
      %206 = vmatpush2.msra.mxu0 0.0
      %207 = vmatprep.subr.mxu0 0.0
      %208 = vmatpush2.msra.mxu0 0.0
      %209 = vmatprep.subr.mxu0 0.0
      %210 = vmatpush2.msra.mxu0 0.0
      %211 = vmatprep.subr.mxu0 0.0
      %212 = vmatpush2.msra.mxu0 0.0
      %213 = vmatprep.subr.mxu0 0.0
      %214 = vmatpush2.msra.mxu0 0.0
      %215 = vmatprep.subr.mxu0 0.0
      %216 = vmatpush2.msra.mxu0 0.0
      %217 = vmatprep.subr.mxu0 0.0
      %218 = vmatpush2.msra.mxu0 0.0
      %219 = vmatprep.subr.mxu0 0.0
      %220 = vmatpush2.msra.mxu0 0.0
      %221 = vmatprep.subr.mxu0 0.0
      %222 = vmatpush2.msra.mxu0 0.0
      %223 = vmatprep.subr.mxu0 0.0
      %224 = vmatpush2.msra.mxu0 0.0
      %225 = vmatprep.mubr.f32.mxu0 0.0
      %226 = vmatmul.mubr.f32.gmra.mxu0 %v155
      %v227 = vpop.f32.mrf.mxu0
      %v228 = vadd.f32 0.0, %v227
      %v229 = vpop.f32.mrf.mxu0
      %230 = vdwg.mxu0
      %v231 = vsub.f32 0.0, %v228
      %v232 = vmul.f32 %v231, 1.442695
      %v233 = vpow.pop %v232
      %v234 = vadd.f32 %v233, 1.0
      %v235 = vrcp.pop %v234
      %v236 = vmul.f32 1.0, %v235
      %v237 = vadd.f32 %v236, 1.0
      %v238 = vlaneseq
      %v239 = vshrl.u32 %v238, 7
      %v240 = vsub.s32 0, %v239
      %v241 = vrot.slane %v237, %v240
      %243 = vbcast.lane.b32.xlu0 %v241, 256
      %v244 = vpop.permute.xlu0 %243
      %v245 = vmul.f32 %v139, %v244
      %246 = vst.msk [vmem:[%s138] sm:$0xf] %vm140, %v245
      %p247 = scmp.lt.s32.totalorder %s13, 1
      %s248 = scalar_select %p247, %s13, 1
      %s249 = smul.addr %s248, 4
      %s250 = scalar_lea.vmem %s2, %s249
      // Predicated region
      $region29: #{mab_forward.16} parent=27 // pred_check
        %p251 = pneg %p78
      $region30: #{mab_forward.16} parent=27 // pred_check_branch
        %253 = sbr.rel (%p251) target = $region32
      $region31: #{mab_forward.16} parent=27 // pred_region
        _
      $region32: #{mab_forward.16} parent=27 // pred_fallthru
        _
    $region28: #{mab_forward.16} parent=5 // pred_fallthru
      _
    %p254 = scmp.le.s32.totalorder 2, %s8
    // Predicated region
    $region33: #{mab_forward.16} parent=5 // pred_check
      %p255 = pneg %p254
    $region34: #{mab_forward.16} parent=5 // pred_check_branch
      %257 = sbr.rel (%p255) target = $region36
    $region35: #{mab_forward.16} parent=5 // pred_region
      %s258 = ssub.s32 %s8, 2
      // Predicated region
      $region37: #{mab_forward.16} parent=35 // pred_check
        %p259 = pneg %p84
      $region38: #{mab_forward.16} parent=35 // pred_check_branch
        %261 = sbr.rel (%p259) target = $region40
      $region39: #{mab_forward.16} parent=35 // pred_region
        %p262 = scmp.lt.s32.totalorder %s14, 1
        %s263 = scalar_select %p262, %s14, 1
        %s264 = smul.addr %s263, 4
        %s265 = scalar_lea.vmem %s2, %s264
      $region40: #{mab_forward.16} parent=35 // pred_fallthru
        _
    $region36: #{mab_forward.16} parent=5 // pred_fallthru
      _
  $region6: #{mab_forward.16} parent=0 // loop_footer
    %s12 = sadd.s32 1, %s8
  $region7: #{mab_forward.16} parent=0 // loop_footer_branch
    %7 = sbr.rel target = $region3
  $region8: #{mab_forward.16} parent=0 // loop_exit
    _

// kernel: mab_forward.18
$region0: #{mab_forward.18}
  #allocation0 [shape = 'u32[]', space=smem, size = 0x4, offset = 0x4, fixed_abs, tag = 'smem constant byte address 0x4 - core index']
  #allocation1 [shape = 'u32[144,128]{1,0:T(1,128)}', space=vmem, size = 0x12000, scoped, tag = 'internal scratch']
  #allocation2 [shape = 'f32[8,256]{1,0:T(8,128)}', space=vmem, size = 0x2000, scoped, tag = 'scratch operand']
  %s0 = inlined_call_operand.vmem [shape: bf16[8,100], index: 0, kind: input, shape index: {}]
  %s1 = inlined_call_operand.vmem [shape: bf16[2,100,256], index: 1, kind: input, shape index: {}]
  %s2 = inlined_call_operand.vmem [shape: f32[8,1], index: 2, kind: input, shape index: {}]
  %s3 = inlined_call_operand.vmem [shape: f32[2,8,256], index: 3, kind: output, shape index: {}]
  %s4 = sld [smem:[#allocation0]]
  $region53: #{mab_forward.18} parent=0
    _
  %s6 = ssub.s32 1, %s4
  %s7 = scalar_select 0, %s6, %s4
  loop: start=0, step=1, limit=4
  $region2: #{mab_forward.18} parent=0 // loop_pre_header
    _
  $region3: #{mab_forward.18} parent=0 // loop_header
    %s9 = sphi 0, %s13
    %p10 = scmp.ge.s32.totalorder %s9, 4
    %s16 = sphi 0, %s35
    %s17 = sphi 0, %s31
    %s18 = sphi 0, %s27
    %s19 = sphi 0, %s16
    %s20 = sphi 0, %s17
    %s21 = sphi 0, %s18
    %s22 = sphi 0, %s19
    %s23 = sphi 0, %s20
    %s24 = sphi 0, %s21
    %s38 = sphi 0, %s40
    %s41 = sphi 0, %s38
    %s42 = sphi 0, %s41
    %s58 = sphi 0, %s42
    %s68 = sphi 0, %s70
    %s71 = sphi 0, %s68
    %s72 = sphi 0, %s71
    %s88 = sphi 0, %s72
    %s92 = sphi 0, %s92
    %s94 = sphi 0, %s92
    %s95 = sphi 0, %s94
    %s109 = sphi 0, %s95
    %s117 = sphi 0, %s119
    %s120 = sphi 0, %s117
    %s121 = sphi 0, %s120
    %s137 = sphi 0, %s121
  $region4: #{mab_forward.18} parent=0 // loop_header_branch
    %12 = sbr.rel (%p10) target = $region8
  $region5: #{mab_forward.18} parent=0 // loop_body
    %s14 = ssub.s32 %s9, 1
    %s15 = ssub.s32 %s9, 2
    %s25 = sadd.s32 1, %s18
    %p26 = scmp.ge.s32.totalorder %s25, 1
    %s27 = scalar_select %p26, 0, %s25
    %s28 = sadd.s32 1, %s17
    %s29 = scalar_select %p26, %s28, %s17
    %p30 = scmp.ge.s32.totalorder %s29, 1
    %s31 = scalar_select %p30, 0, %s29
    %s32 = sadd.s32 1, %s16
    %s33 = scalar_select %p30, %s32, %s16
    %p34 = scmp.ge.s32.totalorder %s33, 2
    %s35 = scalar_select %p34, 0, %s33
    %s36 = ssub.s32 %s18, %s27
    %p37 = scmp.eq.s32.totalorder %s36, 0
    %s39 = sadd.s32 %s38, 1
    %s40 = scalar_select %p37, %s38, %s39
    %p43 = pneg %p37
    %p44 = scmp.eq.s32.totalorder %s9, 1
    %p45 = por %p43, %p44
    %p46 = scmp.ne.s32.totalorder %s38, %s41
    %p47 = scmp.eq.s32.totalorder %s9, 0
    %p48 = por %p46, %p47
    %p49 = scmp.ne.s32.totalorder %s38, %s41
    %p50 = scmp.eq.s32.totalorder %s14, 1
    %p51 = por %p49, %p50
    %p52 = scmp.ne.s32.totalorder %s41, %s42
    %p53 = scmp.eq.s32.totalorder %s14, 0
    %p54 = por %p52, %p53
    %p55 = scmp.ne.s32.totalorder %s41, %s42
    %p56 = scmp.eq.s32.totalorder %s15, 1
    %p57 = por %p55, %p56
    %p59 = scmp.ne.s32.totalorder %s42, %s58
    %p60 = scmp.eq.s32.totalorder %s15, 0
    %p61 = por %p59, %p60
    %s62 = ssub.s32 %s16, %s35
    %s63 = ssub.s32 %s18, %s27
    %s64 = sor.u32 %s62, %s63
    %s65 = ssub.s32 %s17, %s31
    %s66 = sor.u32 %s64, %s65
    %p67 = scmp.eq.s32.totalorder %s66, 0
    %s69 = sadd.s32 %s68, 1
    %s70 = scalar_select %p67, %s68, %s69
    %p73 = pneg %p67
    %p74 = scmp.eq.s32.totalorder %s9, 1
    %p75 = por %p73, %p74
    %p76 = scmp.ne.s32.totalorder %s68, %s71
    %p77 = scmp.eq.s32.totalorder %s9, 0
    %p78 = por %p76, %p77
    %p79 = scmp.ne.s32.totalorder %s68, %s71
    %p80 = scmp.eq.s32.totalorder %s14, 1
    %p81 = por %p79, %p80
    %p82 = scmp.ne.s32.totalorder %s71, %s72
    %p83 = scmp.eq.s32.totalorder %s14, 0
    %p84 = por %p82, %p83
    %p85 = scmp.ne.s32.totalorder %s71, %s72
    %p86 = scmp.eq.s32.totalorder %s15, 1
    %p87 = por %p85, %p86
    %p89 = scmp.ne.s32.totalorder %s72, %s88
    %p90 = scmp.eq.s32.totalorder %s15, 0
    %p91 = por %p89, %p90
    %s93 = sadd.s32 %s92, 1
    %p96 = scmp.eq.s32.totalorder %s9, 1
    %p97 = scmp.ne.s32.totalorder %s92, %s94
    %p98 = scmp.eq.s32.totalorder %s9, 0
    %p99 = por %p97, %p98
    %p100 = scmp.ne.s32.totalorder %s92, %s94
    %p101 = scmp.eq.s32.totalorder %s14, 1
    %p102 = por %p100, %p101
    %p103 = scmp.ne.s32.totalorder %s94, %s95
    %p104 = scmp.eq.s32.totalorder %s14, 0
    %p105 = por %p103, %p104
    %p106 = scmp.ne.s32.totalorder %s94, %s95
    %p107 = scmp.eq.s32.totalorder %s15, 1
    %p108 = por %p106, %p107
    %p110 = scmp.ne.s32.totalorder %s95, %s109
    %p111 = scmp.eq.s32.totalorder %s15, 0
    %p112 = por %p110, %p111
    %s113 = ssub.s32 %s16, %s35
    %s114 = ssub.s32 %s17, %s31
    %s115 = sor.u32 %s113, %s114
    %p116 = scmp.eq.s32.totalorder %s115, 0
    %s118 = sadd.s32 %s117, 1
    %s119 = scalar_select %p116, %s117, %s118
    %p122 = pneg %p116
    %p123 = scmp.eq.s32.totalorder %s9, 1
    %p124 = por %p122, %p123
    %p125 = scmp.ne.s32.totalorder %s117, %s120
    %p126 = scmp.eq.s32.totalorder %s9, 0
    %p127 = por %p125, %p126
    %p128 = scmp.ne.s32.totalorder %s117, %s120
    %p129 = scmp.eq.s32.totalorder %s14, 1
    %p130 = por %p128, %p129
    %p131 = scmp.ne.s32.totalorder %s120, %s121
    %p132 = scmp.eq.s32.totalorder %s14, 0
    %p133 = por %p131, %p132
    %p134 = scmp.ne.s32.totalorder %s120, %s121
    %p135 = scmp.eq.s32.totalorder %s15, 1
    %p136 = por %p134, %p135
    %p138 = scmp.ne.s32.totalorder %s121, %s137
    %p139 = scmp.eq.s32.totalorder %s15, 0
    %p140 = por %p138, %p139
    %p141 = scmp.le.s32.totalorder 1, %s9
    %p142 = scmp.lt.s32.totalorder %s9, 3
    %p143 = pnand %p141, %p142
    %p144 = pneg %p143
    // Predicated region
    $region9: #{mab_forward.18} parent=5 // pred_check
      _
    $region10: #{mab_forward.18} parent=5 // pred_check_branch
      %146 = sbr.rel (%p143) target = $region12
    $region11: #{mab_forward.18} parent=5 // pred_region
      %s147 = ssub.s32 %s9, 1
      // Predicated region
      $region13: #{mab_forward.18} parent=11 // pred_check
        %p148 = pneg %p54
      $region14: #{mab_forward.18} parent=11 // pred_check_branch
        %150 = sbr.rel (%p148) target = $region16
      $region15: #{mab_forward.18} parent=11 // pred_region
        %p151 = scmp.lt.s32.totalorder %s21, 0
        %s152 = scalar_select %p151, %s21, 0
        %s153 = smul.addr %s152, 4
        %s154 = scalar_lea.vmem %s0, %s153
      $region16: #{mab_forward.18} parent=11 // pred_fallthru
        _
      // Predicated region
      $region17: #{mab_forward.18} parent=11 // pred_check
        %p155 = pneg %p105
      $region18: #{mab_forward.18} parent=11 // pred_check_branch
        %157 = sbr.rel (%p155) target = $region20
      $region19: #{mab_forward.18} parent=11 // pred_region
        _
      $region20: #{mab_forward.18} parent=11 // pred_fallthru
        _
    $region12: #{mab_forward.18} parent=5 // pred_fallthru
      _
    %p158 = scmp.lt.s32.totalorder %s9, 2
    // Predicated region
    $region21: #{mab_forward.18} parent=5 // pred_check
      %p159 = pneg %p158
    $region22: #{mab_forward.18} parent=5 // pred_check_branch
      %161 = sbr.rel (%p159) target = $region24
    $region23: #{mab_forward.18} parent=5 // pred_region
      // Predicated region
      $region25: #{mab_forward.18} parent=23 // pred_check
        %p162 = pneg %p78
      $region26: #{mab_forward.18} parent=23 // pred_check_branch
        %164 = sbr.rel (%p162) target = $region28
      $region27: #{mab_forward.18} parent=23 // pred_region
        %s165 = smul.u32 13, %s18
        %s166 = smul.u32 2, %s17
        %p167 = scmp.lt.s32.totalorder %s16, 1
        %s168 = scalar_select %p167, %s16, 1
        %p169 = scmp.lt.s32.totalorder %s165, 12
        %s170 = scalar_select %p169, %s165, 12
        %p171 = scmp.lt.s32.totalorder %s166, 1
        %s172 = scalar_select %p171, %s166, 1
        %s173 = smul.addr %s170, 2
        %s174 = sadd.s32 %s172, %s173
        %s175 = smul.addr %s168, 26
        %s176 = sadd.s32 %s174, %s175
        %s177 = smul.addr %s176, 4
        %s178 = scalar_lea.vmem %s1, %s177
        %s179 = smul.u32 13, %s18
        %s180 = smul.u32 2, %s17
      $region28: #{mab_forward.18} parent=23 // pred_fallthru
        _
    $region24: #{mab_forward.18} parent=5 // pred_fallthru
      _
    %p181 = scmp.le.s32.totalorder 1, %s9
    %p182 = scmp.lt.s32.totalorder %s9, 3
    %p183 = pnand %p181, %p182
    %p184 = pneg %p183
    // Predicated region
    $region29: #{mab_forward.18} parent=5 // pred_check
      _
    $region30: #{mab_forward.18} parent=5 // pred_check_branch
      %186 = sbr.rel (%p183) target = $region32
    $region31: #{mab_forward.18} parent=5 // pred_region
      %s187 = ssub.s32 %s9, 1
      %p188 = scmp.lt.s32.totalorder %s21, 0
      %s189 = scalar_select %p188, %s21, 0
      %s190 = smul.addr %s189, 4
      %s191 = scalar_lea.vmem %s0, %s190
      %p192 = pneg %p54
      %p193 = pneg %p51
      %s194 = smul.u32 13, %s21
      %s195 = smul.u32 2, %s20
      %p196 = scmp.lt.s32.totalorder %s19, 1
      %s197 = scalar_select %p196, %s19, 1
      %p198 = scmp.lt.s32.totalorder %s194, 12
      %s199 = scalar_select %p198, %s194, 12
      %p200 = scmp.lt.s32.totalorder %s195, 1
      %s201 = scalar_select %p200, %s195, 1
      %s202 = smul.addr %s199, 2
      %s203 = sadd.s32 %s201, %s202
      %s204 = smul.addr %s197, 26
      %s205 = sadd.s32 %s203, %s204
      %s206 = smul.addr %s205, 4
      %s207 = scalar_lea.vmem %s1, %s206
      %p208 = pneg %p84
      %p209 = pneg %p81
      %p210 = pneg %p105
      %p211 = pneg %p102
      %p212 = pneg %p133
      %p213 = pneg %p130
      %s214 = smul.u32 2, %s20
      %p215 = scmp.lt.s32.totalorder %s19, 1
      %s216 = scalar_select %p215, %s19, 1
      %p217 = scmp.lt.s32.totalorder %s214, 1
      %s218 = scalar_select %p217, %s214, 1
      %s219 = smul.addr %s216, 2
      %s220 = sadd.s32 %s218, %s219
      %s221 = smul.addr %s220, 8
      %s222 = scalar_lea.vmem %s3, %s221
      %p223 = scmp.lt.s32.totalorder %s21, 0
      %s224 = scalar_select %p223, %s21, 0
      %s225 = smul.addr %s224, 4
      %s226 = scalar_lea.vmem %s0, %s225
      %s227 = smul.u32 13, %s21
      %s228 = smul.u32 2, %s20
      %p229 = scmp.lt.s32.totalorder %s19, 1
      %s230 = scalar_select %p229, %s19, 1
      %p231 = scmp.lt.s32.totalorder %s227, 12
      %s232 = scalar_select %p231, %s227, 12
      %p233 = scmp.lt.s32.totalorder %s228, 1
      %s234 = scalar_select %p233, %s228, 1
      %s235 = smul.addr %s232, 2
      %s236 = sadd.s32 %s234, %s235
      %s237 = smul.addr %s230, 26
      %s238 = sadd.s32 %s236, %s237
      %s239 = smul.addr %s238, 4
      %s240 = scalar_lea.vmem %s1, %s239
      %s241 = smul.u32 13, %s21
      %s242 = smul.u32 2, %s20
      %s243 = smul.u32 2, %s20
      %p244 = scmp.lt.s32.totalorder %s19, 1
      %s245 = scalar_select %p244, %s19, 1
      %p246 = scmp.lt.s32.totalorder %s243, 1
      %s247 = scalar_select %p246, %s243, 1
      %s248 = smul.addr %s245, 2
      %s249 = sadd.s32 %s247, %s248
      %s250 = smul.addr %s249, 8
      %s251 = scalar_lea.vmem %s3, %s250
      %s252 = smul.u32 2, %s20
      %p254 = scmp.eq.s32.totalorder %s21, 0
      // Predicated region
      $region33: #{mab_forward.18} parent=31 // pred_check
        %p255 = pneg %p254
      $region34: #{mab_forward.18} parent=31 // pred_check_branch
        %257 = sbr.rel (%p255) target = $region36
      $region35: #{mab_forward.18} parent=31 // pred_region
        %258 = vst [vmem:[#allocation2] sm:$0xff] 0.0
        %259 = vst [vmem:[#allocation2 + $0x8] sm:$0xff] 0.0
      $region36: #{mab_forward.18} parent=31 // pred_fallthru
        _
      %v260 = vld [vmem:[#allocation2] sm:$0xff]
      %v261 = vld [vmem:[#allocation2 + $0x8] sm:$0xff]
      %v262 = vld [vmem:[%s226] sm:$0xf]
      %v263 = vld [vmem:[%s240] sm:$0xff]
      %v264 = vld [vmem:[%s240 + $0x8] sm:$0xff]
      %v265 = vld [vmem:[%s240 + $0x10] sm:$0xff]
      %v266 = vld [vmem:[%s240 + $0x18] sm:$0xff]
      %v267 = vld [vmem:[%s240 + $0x20] sm:$0xff]
      %v268 = vld [vmem:[%s240 + $0x28] sm:$0xff]
      %v269 = vld [vmem:[%s240 + $0x30] sm:$0xff]
      %v270 = vld [vmem:[%s240 + $0x38] sm:$0xff]
      %v271 = vld [vmem:[%s240 + $0x40] sm:$0xff]
      %v272 = vld [vmem:[%s240 + $0x48] sm:$0xff]
      %v273 = vld [vmem:[%s240 + $0x50] sm:$0xff]
      %v274 = vld [vmem:[%s240 + $0x58] sm:$0xff]
      %v275 = vld [vmem:[%s240 + $0x60] sm:$0x33]
      %v289 = vunpack.c.l.b16 %v263
      %v290 = vunpack.c.h.b16 %v263
      %v291 = vunpack.c.l.b16 %v264
      %v292 = vunpack.c.h.b16 %v264
      %v293 = vunpack.c.l.b16 %v265
      %v294 = vunpack.c.h.b16 %v265
      %v295 = vunpack.c.l.b16 %v266
      %v296 = vunpack.c.h.b16 %v266
      %v297 = vunpack.c.l.b16 %v267
      %v298 = vunpack.c.h.b16 %v267
      %v299 = vunpack.c.l.b16 %v268
      %v300 = vunpack.c.h.b16 %v268
      %v301 = vunpack.c.l.b16 %v269
      %v302 = vunpack.c.h.b16 %v269
      %v303 = vunpack.c.l.b16 %v270
      %v304 = vunpack.c.h.b16 %v270
      %v305 = vunpack.c.l.b16 %v271
      %v306 = vunpack.c.h.b16 %v271
      %v307 = vunpack.c.l.b16 %v272
      %v308 = vunpack.c.h.b16 %v272
      %v309 = vunpack.c.l.b16 %v273
      %v310 = vunpack.c.h.b16 %v273
      %v311 = vunpack.c.l.b16 %v274
      %v312 = vunpack.c.h.b16 %v274
      %v313 = vunpack.c.l.b16 %v275
      %v314 = vunpack.c.h.b16 %v275
      %v315 = vpack.c.b16 %v291, %v289
      %v316 = vpack.c.b16 %v292, %v290
      %v317 = vpack.c.b16 %v295, %v293
      %v318 = vpack.c.b16 %v296, %v294
      %v319 = vpack.c.b16 %v299, %v297
      %v320 = vpack.c.b16 %v300, %v298
      %v321 = vpack.c.b16 %v303, %v301
      %v322 = vpack.c.b16 %v304, %v302
      %v323 = vpack.c.b16 %v307, %v305
      %v324 = vpack.c.b16 %v308, %v306
      %v325 = vpack.c.b16 %v311, %v309
      %v326 = vpack.c.b16 %v312, %v310
      %v327 = vpack.c.b16 %v313, %v313
      %v328 = vpack.c.b16 %v314, %v314
      %vm341 = vcmask 818176
      %v343 = vsel %vm341, %v262, 0
      %vm345 = vcmask 1041408
      %v347 = vsel %vm345, %v327, 0
      %v350 = vsel %vm345, %v328, 0
      %352 = vmatprep.subr.bf16.mxu0 0
      %353 = vmatpush1.bf16.msra.mxu0 0
      %354 = vmatprep.subr.bf16.mxu0 %v350
      %355 = vmatpush1.bf16.msra.mxu0 %v347
      %356 = vmatprep.subr.bf16.mxu0 %v326
      %357 = vmatpush1.bf16.msra.mxu0 %v325
      %358 = vmatprep.subr.bf16.mxu0 %v324
      %359 = vmatpush1.bf16.msra.mxu0 %v323
      %360 = vmatprep.subr.bf16.mxu0 %v322
      %361 = vmatpush1.bf16.msra.mxu0 %v321
      %362 = vmatprep.subr.bf16.mxu0 %v320
      %363 = vmatpush1.bf16.msra.mxu0 %v319
      %364 = vmatprep.subr.bf16.mxu0 %v318
      %365 = vmatpush1.bf16.msra.mxu0 %v317
      %366 = vmatprep.subr.bf16.mxu0 %v316
      %367 = vmatpush1.bf16.msra.mxu0 %v315
      %368 = vmatprep.subr.bf16.mxu0 0
      %369 = vmatpush2.bf16.msra.mxu0 0
      %370 = vmatprep.subr.bf16.mxu0 0
      %371 = vmatpush2.bf16.msra.mxu0 0
      %372 = vmatprep.subr.bf16.mxu0 0
      %373 = vmatpush2.bf16.msra.mxu0 0
      %374 = vmatprep.subr.bf16.mxu0 0
      %375 = vmatpush2.bf16.msra.mxu0 0
      %376 = vmatprep.subr.bf16.mxu0 0
      %377 = vmatpush2.bf16.msra.mxu0 0
      %378 = vmatprep.subr.bf16.mxu0 0
      %379 = vmatpush2.bf16.msra.mxu0 0
      %380 = vmatprep.subr.bf16.mxu0 0
      %381 = vmatpush2.bf16.msra.mxu0 0
      %382 = vmatprep.subr.bf16.mxu0 0
      %383 = vmatpush2.bf16.msra.mxu0 0
      %384 = vmatprep.mubr.bf16.mxu0 0
      %385 = vmatmul.mubr.bf16.gmra.mxu0 %v343
      %v386 = vpop.f32.mrf.mxu0
      %v387 = vadd.f32 0.0, %v386
      %v388 = vpop.f32.mrf.mxu0
      %v389 = vadd.f32 0.0, %v388
      %v390 = vpop.f32.mrf.mxu0
      %v391 = vpop.f32.mrf.mxu0
      %392 = vdwg.mxu0
      %v393 = vadd.f32 %v260, %v387
      %v394 = vadd.f32 %v261, %v389
      %395 = vst [vmem:[#allocation2] sm:$0xff] %v393
      %396 = vst [vmem:[#allocation2 + $0x8] sm:$0xff] %v394
      // Predicated region
      $region37: #{mab_forward.18} parent=31 // pred_check
        %p397 = pneg %p254
      $region38: #{mab_forward.18} parent=31 // pred_check_branch
        %399 = sbr.rel (%p397) target = $region40
      $region39: #{mab_forward.18} parent=31 // pred_region
        %v400 = vld [vmem:[#allocation2] sm:$0xff]
        %v401 = vld [vmem:[#allocation2 + $0x8] sm:$0xff]
        %v402 = vld [vmem:[%s2] sm:$0xff]
        %404 = vset.pattern.permute.xlu0 0
        %405 = vperm.xlu0 %404, %v402
        %v406 = vpop.permute.xlu0 %405
        %v408 = vadd.f32 %v400, %v406
        %v409 = vadd.f32 %v401, %v406
        %410 = vst [vmem:[%s251] sm:$0xff] %v408
        %411 = vst [vmem:[%s251 + $0x8] sm:$0xff] %v409
      $region40: #{mab_forward.18} parent=31 // pred_fallthru
        _
      %s412 = smul.u32 2, %s20
      %p413 = scmp.lt.s32.totalorder %s19, 1
      %s414 = scalar_select %p413, %s19, 1
      %p415 = scmp.lt.s32.totalorder %s412, 1
      %s416 = scalar_select %p415, %s412, 1
      %s417 = smul.addr %s414, 2
      %s418 = sadd.s32 %s416, %s417
      %s419 = smul.addr %s418, 8
      %s420 = scalar_lea.vmem %s3, %s419
      // Predicated region
      $region41: #{mab_forward.18} parent=31 // pred_check
        %p421 = pneg %p130
      $region42: #{mab_forward.18} parent=31 // pred_check_branch
        %423 = sbr.rel (%p421) target = $region44
      $region43: #{mab_forward.18} parent=31 // pred_region
        %s424 = smul.u32 2, %s20
      $region44: #{mab_forward.18} parent=31 // pred_fallthru
        _
    $region32: #{mab_forward.18} parent=5 // pred_fallthru
      _
    %p425 = scmp.le.s32.totalorder 2, %s9
    // Predicated region
    $region45: #{mab_forward.18} parent=5 // pred_check
      %p426 = pneg %p425
    $region46: #{mab_forward.18} parent=5 // pred_check_branch
      %428 = sbr.rel (%p426) target = $region48
    $region47: #{mab_forward.18} parent=5 // pred_region
      %s429 = ssub.s32 %s9, 2
      // Predicated region
      $region49: #{mab_forward.18} parent=47 // pred_check
        %p430 = pneg %p136
      $region50: #{mab_forward.18} parent=47 // pred_check_branch
        %432 = sbr.rel (%p430) target = $region52
      $region51: #{mab_forward.18} parent=47 // pred_region
        %s433 = smul.u32 2, %s23
        %p434 = scmp.lt.s32.totalorder %s22, 1
        %s435 = scalar_select %p434, %s22, 1
        %p436 = scmp.lt.s32.totalorder %s433, 1
        %s437 = scalar_select %p436, %s433, 1
        %s438 = smul.addr %s435, 2
        %s439 = sadd.s32 %s437, %s438
        %s440 = smul.addr %s439, 8
        %s441 = scalar_lea.vmem %s3, %s440
      $region52: #{mab_forward.18} parent=47 // pred_fallthru
        _
    $region48: #{mab_forward.18} parent=5 // pred_fallthru
      _
  $region6: #{mab_forward.18} parent=0 // loop_footer
    %s13 = sadd.s32 1, %s9
  $region7: #{mab_forward.18} parent=0 // loop_footer_branch
    %8 = sbr.rel target = $region3
  $region8: #{mab_forward.18} parent=0 // loop_exit
    _

// kernel: mab_forward.11
$region0: #{mab_forward.11}
  #allocation0 [shape = 'u32[]', space=smem, size = 0x4, offset = 0x4, fixed_abs, tag = 'smem constant byte address 0x4 - core index']
  #allocation1 [shape = 'u32[144,128]{1,0:T(1,128)}', space=vmem, size = 0x12000, scoped, tag = 'internal scratch']
  %s0 = inlined_call_operand.vmem [shape: f32[2,4,16,16], index: 0, kind: input, shape index: {}]
  %s1 = inlined_call_operand.vmem [shape: f32[8,16], index: 1, kind: input, shape index: {}]
  %s2 = inlined_call_operand.vmem [shape: f32[16,8], index: 2, kind: input, shape index: {}]
  %s3 = inlined_call_operand.vmem [shape: f32[2,4,8,8], index: 3, kind: output, shape index: {}]
  %s4 = sld [smem:[#allocation0]]
  $region45: #{mab_forward.11} parent=0
    _
  %s6 = ssub.s32 1, %s4
  %s7 = scalar_select 0, %s6, %s4
  loop: start=0, step=1, limit=10
  $region2: #{mab_forward.11} parent=0 // loop_pre_header
    _
  $region3: #{mab_forward.11} parent=0 // loop_header
    %s9 = sphi 0, %s13
    %p10 = scmp.ge.s32.totalorder %s9, 10
    %s16 = sphi 0, %s28
    %s17 = sphi 0, %s24
    %s18 = sphi 0, %s16
    %s19 = sphi 0, %s17
    %s20 = sphi 0, %s18
    %s21 = sphi 0, %s19
    %s33 = sphi 0, %s35
    %s36 = sphi 0, %s33
    %s37 = sphi 0, %s36
    %s53 = sphi 0, %s37
    %s57 = sphi 0, %s57
    %s59 = sphi 0, %s57
    %s60 = sphi 0, %s59
    %s74 = sphi 0, %s60
    %s78 = sphi 0, %s78
    %s80 = sphi 0, %s78
    %s81 = sphi 0, %s80
    %s95 = sphi 0, %s81
    %s103 = sphi 0, %s105
    %s106 = sphi 0, %s103
    %s107 = sphi 0, %s106
    %s123 = sphi 0, %s107
  $region4: #{mab_forward.11} parent=0 // loop_header_branch
    %12 = sbr.rel (%p10) target = $region8
  $region5: #{mab_forward.11} parent=0 // loop_body
    %s14 = ssub.s32 %s9, 1
    %s15 = ssub.s32 %s9, 2
    %s22 = sadd.s32 1, %s17
    %p23 = scmp.ge.s32.totalorder %s22, 4
    %s24 = scalar_select %p23, 0, %s22
    %s25 = sadd.s32 1, %s16
    %s26 = scalar_select %p23, %s25, %s16
    %p27 = scmp.ge.s32.totalorder %s26, 2
    %s28 = scalar_select %p27, 0, %s26
    %s29 = ssub.s32 %s16, %s28
    %s30 = ssub.s32 %s17, %s24
    %s31 = sor.u32 %s29, %s30
    %p32 = scmp.eq.s32.totalorder %s31, 0
    %s34 = sadd.s32 %s33, 1
    %s35 = scalar_select %p32, %s33, %s34
    %p38 = pneg %p32
    %p39 = scmp.eq.s32.totalorder %s9, 7
    %p40 = por %p38, %p39
    %p41 = scmp.ne.s32.totalorder %s33, %s36
    %p42 = scmp.eq.s32.totalorder %s9, 0
    %p43 = por %p41, %p42
    %p44 = scmp.ne.s32.totalorder %s33, %s36
    %p45 = scmp.eq.s32.totalorder %s14, 7
    %p46 = por %p44, %p45
    %p47 = scmp.ne.s32.totalorder %s36, %s37
    %p48 = scmp.eq.s32.totalorder %s14, 0
    %p49 = por %p47, %p48
    %p50 = scmp.ne.s32.totalorder %s36, %s37
    %p51 = scmp.eq.s32.totalorder %s15, 7
    %p52 = por %p50, %p51
    %p54 = scmp.ne.s32.totalorder %s37, %s53
    %p55 = scmp.eq.s32.totalorder %s15, 0
    %p56 = por %p54, %p55
    %s58 = sadd.s32 %s57, 1
    %p61 = scmp.eq.s32.totalorder %s9, 7
    %p62 = scmp.ne.s32.totalorder %s57, %s59
    %p63 = scmp.eq.s32.totalorder %s9, 0
    %p64 = por %p62, %p63
    %p65 = scmp.ne.s32.totalorder %s57, %s59
    %p66 = scmp.eq.s32.totalorder %s14, 7
    %p67 = por %p65, %p66
    %p68 = scmp.ne.s32.totalorder %s59, %s60
    %p69 = scmp.eq.s32.totalorder %s14, 0
    %p70 = por %p68, %p69
    %p71 = scmp.ne.s32.totalorder %s59, %s60
    %p72 = scmp.eq.s32.totalorder %s15, 7
    %p73 = por %p71, %p72
    %p75 = scmp.ne.s32.totalorder %s60, %s74
    %p76 = scmp.eq.s32.totalorder %s15, 0
    %p77 = por %p75, %p76
    %s79 = sadd.s32 %s78, 1
    %p82 = scmp.eq.s32.totalorder %s9, 7
    %p83 = scmp.ne.s32.totalorder %s78, %s80
    %p84 = scmp.eq.s32.totalorder %s9, 0
    %p85 = por %p83, %p84
    %p86 = scmp.ne.s32.totalorder %s78, %s80
    %p87 = scmp.eq.s32.totalorder %s14, 7
    %p88 = por %p86, %p87
    %p89 = scmp.ne.s32.totalorder %s80, %s81
    %p90 = scmp.eq.s32.totalorder %s14, 0
    %p91 = por %p89, %p90
    %p92 = scmp.ne.s32.totalorder %s80, %s81
    %p93 = scmp.eq.s32.totalorder %s15, 7
    %p94 = por %p92, %p93
    %p96 = scmp.ne.s32.totalorder %s81, %s95
    %p97 = scmp.eq.s32.totalorder %s15, 0
    %p98 = por %p96, %p97
    %s99 = ssub.s32 %s16, %s28
    %s100 = ssub.s32 %s17, %s24
    %s101 = sor.u32 %s99, %s100
    %p102 = scmp.eq.s32.totalorder %s101, 0
    %s104 = sadd.s32 %s103, 1
    %s105 = scalar_select %p102, %s103, %s104
    %p108 = pneg %p102
    %p109 = scmp.eq.s32.totalorder %s9, 7
    %p110 = por %p108, %p109
    %p111 = scmp.ne.s32.totalorder %s103, %s106
    %p112 = scmp.eq.s32.totalorder %s9, 0
    %p113 = por %p111, %p112
    %p114 = scmp.ne.s32.totalorder %s103, %s106
    %p115 = scmp.eq.s32.totalorder %s14, 7
    %p116 = por %p114, %p115
    %p117 = scmp.ne.s32.totalorder %s106, %s107
    %p118 = scmp.eq.s32.totalorder %s14, 0
    %p119 = por %p117, %p118
    %p120 = scmp.ne.s32.totalorder %s106, %s107
    %p121 = scmp.eq.s32.totalorder %s15, 7
    %p122 = por %p120, %p121
    %p124 = scmp.ne.s32.totalorder %s107, %s123
    %p125 = scmp.eq.s32.totalorder %s15, 0
    %p126 = por %p124, %p125
    %p127 = scmp.le.s32.totalorder 1, %s9
    %p128 = scmp.lt.s32.totalorder %s9, 9
    %p129 = pnand %p127, %p128
    %p130 = pneg %p129
    // Predicated region
    $region9: #{mab_forward.11} parent=5 // pred_check
      _
    $region10: #{mab_forward.11} parent=5 // pred_check_branch
      %132 = sbr.rel (%p129) target = $region12
    $region11: #{mab_forward.11} parent=5 // pred_region
      %s133 = ssub.s32 %s9, 1
      // Predicated region
      $region13: #{mab_forward.11} parent=11 // pred_check
        %p134 = pneg %p70
      $region14: #{mab_forward.11} parent=11 // pred_check_branch
        %136 = sbr.rel (%p134) target = $region16
      $region15: #{mab_forward.11} parent=11 // pred_region
        _
      $region16: #{mab_forward.11} parent=11 // pred_fallthru
        _
      // Predicated region
      $region17: #{mab_forward.11} parent=11 // pred_check
        %p137 = pneg %p91
      $region18: #{mab_forward.11} parent=11 // pred_check_branch
        %139 = sbr.rel (%p137) target = $region20
      $region19: #{mab_forward.11} parent=11 // pred_region
        _
      $region20: #{mab_forward.11} parent=11 // pred_fallthru
        _
    $region12: #{mab_forward.11} parent=5 // pred_fallthru
      _
    %p140 = scmp.lt.s32.totalorder %s9, 8
    // Predicated region
    $region21: #{mab_forward.11} parent=5 // pred_check
      %p141 = pneg %p140
    $region22: #{mab_forward.11} parent=5 // pred_check_branch
      %143 = sbr.rel (%p141) target = $region24
    $region23: #{mab_forward.11} parent=5 // pred_region
      // Predicated region
      $region25: #{mab_forward.11} parent=23 // pred_check
        %p144 = pneg %p43
      $region26: #{mab_forward.11} parent=23 // pred_check_branch
        %146 = sbr.rel (%p144) target = $region28
      $region27: #{mab_forward.11} parent=23 // pred_region
        %p147 = scmp.lt.s32.totalorder %s16, 1
        %s148 = scalar_select %p147, %s16, 1
        %p149 = scmp.lt.s32.totalorder %s17, 3
        %s150 = scalar_select %p149, %s17, 3
        %s151 = smul.addr %s150, 2
        %s152 = smul.addr %s148, 8
        %s153 = sadd.s32 %s151, %s152
        %s154 = smul.addr %s153, 8
        %s155 = scalar_lea.vmem %s0, %s154
      $region28: #{mab_forward.11} parent=23 // pred_fallthru
        _
    $region24: #{mab_forward.11} parent=5 // pred_fallthru
      _
    %p156 = scmp.le.s32.totalorder 1, %s9
    %p157 = scmp.lt.s32.totalorder %s9, 9
    %p158 = pnand %p156, %p157
    %p159 = pneg %p158
    // Predicated region
    $region29: #{mab_forward.11} parent=5 // pred_check
      _
    $region30: #{mab_forward.11} parent=5 // pred_check_branch
      %161 = sbr.rel (%p158) target = $region32
    $region31: #{mab_forward.11} parent=5 // pred_region
      %s162 = ssub.s32 %s9, 1
      %p163 = scmp.lt.s32.totalorder %s18, 1
      %s164 = scalar_select %p163, %s18, 1
      %p165 = scmp.lt.s32.totalorder %s19, 3
      %s166 = scalar_select %p165, %s19, 3
      %s167 = smul.addr %s166, 2
      %s168 = smul.addr %s164, 8
      %s169 = sadd.s32 %s167, %s168
      %s170 = smul.addr %s169, 8
      %s171 = scalar_lea.vmem %s0, %s170
      %p172 = pneg %p49
      %p173 = pneg %p46
      %p174 = pneg %p70
      %p175 = pneg %p67
      %p176 = pneg %p91
      %p177 = pneg %p88
      %p178 = pneg %p119
      %p179 = pneg %p116
      %p180 = scmp.lt.s32.totalorder %s18, 1
      %s181 = scalar_select %p180, %s18, 1
      %p182 = scmp.lt.s32.totalorder %s19, 3
      %s183 = scalar_select %p182, %s19, 3
      %s184 = smul.addr %s181, 4
      %s185 = sadd.s32 %s183, %s184
      %s186 = smul.addr %s185, 8
      %s187 = scalar_lea.vmem %s3, %s186
      %p188 = scmp.lt.s32.totalorder %s18, 1
      %s189 = scalar_select %p188, %s18, 1
      %p190 = scmp.lt.s32.totalorder %s19, 3
      %s191 = scalar_select %p190, %s19, 3
      %s192 = smul.addr %s191, 2
      %s193 = smul.addr %s189, 8
      %s194 = sadd.s32 %s192, %s193
      %s195 = smul.addr %s194, 8
      %s196 = scalar_lea.vmem %s0, %s195
      %p197 = scmp.lt.s32.totalorder %s18, 1
      %s198 = scalar_select %p197, %s18, 1
      %p199 = scmp.lt.s32.totalorder %s19, 3
      %s200 = scalar_select %p199, %s19, 3
      %s201 = smul.addr %s198, 4
      %s202 = sadd.s32 %s200, %s201
      %s203 = smul.addr %s202, 8
      %s204 = scalar_lea.vmem %s3, %s203
      %v205 = vld [vmem:[%s196] sm:$0xff]
      %v206 = vld [vmem:[%s196 + $0x8] sm:$0xff]
      %v207 = vld [vmem:[%s2] sm:$0xff]
      %v208 = vld [vmem:[%s2 + $0x8] sm:$0xff]
      %vm209 = vcmask 130048
      %v211 = vsel %vm209, %v205, 0
      %v214 = vsel %vm209, %v206, 0
      %216 = vmatprep.subr.mxu0 0.0
      %217 = vmatpush1.msra.mxu0 0.0
      %218 = vmatprep.subr.mxu0 0.0
      %219 = vmatpush1.msra.mxu0 0.0
      %220 = vmatprep.subr.mxu0 0.0
      %221 = vmatpush1.msra.mxu0 0.0
      %222 = vmatprep.subr.mxu0 0.0
      %223 = vmatpush1.msra.mxu0 0.0
      %224 = vmatprep.subr.mxu0 0.0
      %225 = vmatpush1.msra.mxu0 0.0
      %226 = vmatprep.subr.mxu0 0.0
      %227 = vmatpush1.msra.mxu0 0.0
      %228 = vmatprep.subr.mxu0 0.0
      %229 = vmatpush1.msra.mxu0 0.0
      %230 = vmatprep.subr.mxu0 0.0
      %231 = vmatpush1.msra.mxu0 0.0
      %232 = vmatprep.subr.mxu0 0.0
      %233 = vmatpush1.msra.mxu0 0.0
      %234 = vmatprep.subr.mxu0 0.0
      %235 = vmatpush1.msra.mxu0 0.0
      %236 = vmatprep.subr.mxu0 0.0
      %237 = vmatpush1.msra.mxu0 0.0
      %238 = vmatprep.subr.mxu0 0.0
      %239 = vmatpush1.msra.mxu0 0.0
      %240 = vmatprep.subr.mxu0 0.0
      %241 = vmatpush1.msra.mxu0 0.0
      %242 = vmatprep.subr.mxu0 0.0
      %243 = vmatpush1.msra.mxu0 0.0
      %244 = vmatprep.subr.mxu0 0.0
      %245 = vmatpush1.msra.mxu0 %v208
      %246 = vmatprep.subr.mxu0 0.0
      %247 = vmatpush1.msra.mxu0 %v207
      %248 = vmatprep.subr.mxu0 0.0
      %249 = vmatpush2.msra.mxu0 0.0
      %250 = vmatprep.subr.mxu0 0.0
      %251 = vmatpush2.msra.mxu0 0.0
      %252 = vmatprep.subr.mxu0 0.0
      %253 = vmatpush2.msra.mxu0 0.0
      %254 = vmatprep.subr.mxu0 0.0
      %255 = vmatpush2.msra.mxu0 0.0
      %256 = vmatprep.subr.mxu0 0.0
      %257 = vmatpush2.msra.mxu0 0.0
      %258 = vmatprep.subr.mxu0 0.0
      %259 = vmatpush2.msra.mxu0 0.0
      %260 = vmatprep.subr.mxu0 0.0
      %261 = vmatpush2.msra.mxu0 0.0
      %262 = vmatprep.subr.mxu0 0.0
      %263 = vmatpush2.msra.mxu0 0.0
      %264 = vmatprep.subr.mxu0 0.0
      %265 = vmatpush2.msra.mxu0 0.0
      %266 = vmatprep.subr.mxu0 0.0
      %267 = vmatpush2.msra.mxu0 0.0
      %268 = vmatprep.subr.mxu0 0.0
      %269 = vmatpush2.msra.mxu0 0.0
      %270 = vmatprep.subr.mxu0 0.0
      %271 = vmatpush2.msra.mxu0 0.0
      %272 = vmatprep.subr.mxu0 0.0
      %273 = vmatpush2.msra.mxu0 0.0
      %274 = vmatprep.subr.mxu0 0.0
      %275 = vmatpush2.msra.mxu0 0.0
      %276 = vmatprep.subr.mxu0 0.0
      %277 = vmatpush2.msra.mxu0 0.0
      %278 = vmatprep.subr.mxu0 0.0
      %279 = vmatpush2.msra.mxu0 0.0
      %280 = vmatprep.mubr.f32.mxu0 0.0
      %281 = vmatmul.mubr.f32.gmra.mxu0 %v211
      %v282 = vpop.f32.mrf.mxu0
      %v283 = vadd.f32 0.0, %v282
      %v284 = vpop.f32.mrf.mxu0
      %285 = vmatprep.mubr.f32.mxu0 0.0
      %286 = vmatmul.mubr.f32.gmra.mxu0 %v214
      %v287 = vpop.f32.mrf.mxu0
      %v288 = vadd.f32 0.0, %v287
      %v289 = vpop.f32.mrf.mxu0
      %290 = vdwg.mxu0
      %v291 = vld [vmem:[%s1] sm:$0xff]
      %v293 = vsel %vm209, %v291, 0
      %295 = vmatprep.subr.mxu0 0.0
      %296 = vmatpush1.msra.mxu0 0.0
      %297 = vmatprep.subr.mxu0 0.0
      %298 = vmatpush1.msra.mxu0 0.0
      %299 = vmatprep.subr.mxu0 0.0
      %300 = vmatpush1.msra.mxu0 0.0
      %301 = vmatprep.subr.mxu0 0.0
      %302 = vmatpush1.msra.mxu0 0.0
      %303 = vmatprep.subr.mxu0 0.0
      %304 = vmatpush1.msra.mxu0 0.0
      %305 = vmatprep.subr.mxu0 0.0
      %306 = vmatpush1.msra.mxu0 0.0
      %307 = vmatprep.subr.mxu0 0.0
      %308 = vmatpush1.msra.mxu0 0.0
      %309 = vmatprep.subr.mxu0 0.0
      %310 = vmatpush1.msra.mxu0 0.0
      %311 = vmatprep.subr.mxu0 0.0
      %312 = vmatpush1.msra.mxu0 0.0
      %313 = vmatprep.subr.mxu0 0.0
      %314 = vmatpush1.msra.mxu0 0.0
      %315 = vmatprep.subr.mxu0 0.0
      %316 = vmatpush1.msra.mxu0 0.0
      %317 = vmatprep.subr.mxu0 0.0
      %318 = vmatpush1.msra.mxu0 0.0
      %319 = vmatprep.subr.mxu0 0.0
      %320 = vmatpush1.msra.mxu0 0.0
      %321 = vmatprep.subr.mxu0 0.0
      %322 = vmatpush1.msra.mxu0 0.0
      %323 = vmatprep.subr.mxu0 0.0
      %324 = vmatpush1.msra.mxu0 %v288
      %325 = vmatprep.subr.mxu0 0.0
      %326 = vmatpush1.msra.mxu0 %v283
      %327 = vmatprep.subr.mxu0 0.0
      %328 = vmatpush2.msra.mxu0 0.0
      %329 = vmatprep.subr.mxu0 0.0
      %330 = vmatpush2.msra.mxu0 0.0
      %331 = vmatprep.subr.mxu0 0.0
      %332 = vmatpush2.msra.mxu0 0.0
      %333 = vmatprep.subr.mxu0 0.0
      %334 = vmatpush2.msra.mxu0 0.0
      %335 = vmatprep.subr.mxu0 0.0
      %336 = vmatpush2.msra.mxu0 0.0
      %337 = vmatprep.subr.mxu0 0.0
      %338 = vmatpush2.msra.mxu0 0.0
      %339 = vmatprep.subr.mxu0 0.0
      %340 = vmatpush2.msra.mxu0 0.0
      %341 = vmatprep.subr.mxu0 0.0
      %342 = vmatpush2.msra.mxu0 0.0
      %343 = vmatprep.subr.mxu0 0.0
      %344 = vmatpush2.msra.mxu0 0.0
      %345 = vmatprep.subr.mxu0 0.0
      %346 = vmatpush2.msra.mxu0 0.0
      %347 = vmatprep.subr.mxu0 0.0
      %348 = vmatpush2.msra.mxu0 0.0
      %349 = vmatprep.subr.mxu0 0.0
      %350 = vmatpush2.msra.mxu0 0.0
      %351 = vmatprep.subr.mxu0 0.0
      %352 = vmatpush2.msra.mxu0 0.0
      %353 = vmatprep.subr.mxu0 0.0
      %354 = vmatpush2.msra.mxu0 0.0
      %355 = vmatprep.subr.mxu0 0.0
      %356 = vmatpush2.msra.mxu0 0.0
      %357 = vmatprep.subr.mxu0 0.0
      %358 = vmatpush2.msra.mxu0 0.0
      %359 = vmatprep.mubr.f32.mxu0 0.0
      %360 = vmatmul.mubr.f32.gmra.mxu0 %v293
      %v361 = vpop.f32.mrf.mxu0
      %v362 = vadd.f32 0.0, %v361
      %v363 = vpop.f32.mrf.mxu0
      %364 = vdwg.mxu0
      %vm365 = vcmask 64512
      %366 = vst.msk [vmem:[%s204] sm:$0xff] %vm365, %v362
      %p367 = scmp.lt.s32.totalorder %s18, 1
      %s368 = scalar_select %p367, %s18, 1
      %p369 = scmp.lt.s32.totalorder %s19, 3
      %s370 = scalar_select %p369, %s19, 3
      %s371 = smul.addr %s368, 4
      %s372 = sadd.s32 %s370, %s371
      %s373 = smul.addr %s372, 8
      %s374 = scalar_lea.vmem %s3, %s373
      // Predicated region
      $region33: #{mab_forward.11} parent=31 // pred_check
        %p375 = pneg %p116
      $region34: #{mab_forward.11} parent=31 // pred_check_branch
        %377 = sbr.rel (%p375) target = $region36
      $region35: #{mab_forward.11} parent=31 // pred_region
        _
      $region36: #{mab_forward.11} parent=31 // pred_fallthru
        _
    $region32: #{mab_forward.11} parent=5 // pred_fallthru
      _
    %p378 = scmp.le.s32.totalorder 2, %s9
    // Predicated region
    $region37: #{mab_forward.11} parent=5 // pred_check
      %p379 = pneg %p378
    $region38: #{mab_forward.11} parent=5 // pred_check_branch
      %381 = sbr.rel (%p379) target = $region40
    $region39: #{mab_forward.11} parent=5 // pred_region
      %s382 = ssub.s32 %s9, 2
      // Predicated region
      $region41: #{mab_forward.11} parent=39 // pred_check
        %p383 = pneg %p122
      $region42: #{mab_forward.11} parent=39 // pred_check_branch
        %385 = sbr.rel (%p383) target = $region44
      $region43: #{mab_forward.11} parent=39 // pred_region
        %p386 = scmp.lt.s32.totalorder %s20, 1
        %s387 = scalar_select %p386, %s20, 1
        %p388 = scmp.lt.s32.totalorder %s21, 3
        %s389 = scalar_select %p388, %s21, 3
        %s390 = smul.addr %s387, 4
        %s391 = sadd.s32 %s389, %s390
        %s392 = smul.addr %s391, 8
        %s393 = scalar_lea.vmem %s3, %s392
      $region44: #{mab_forward.11} parent=39 // pred_fallthru
        _
    $region40: #{mab_forward.11} parent=5 // pred_fallthru
      _
  $region6: #{mab_forward.11} parent=0 // loop_footer
    %s13 = sadd.s32 1, %s9
  $region7: #{mab_forward.11} parent=0 // loop_footer_branch
    %8 = sbr.rel target = $region3
  $region8: #{mab_forward.11} parent=0 // loop_exit
    _

// kernel: mab_forward.12
$region0: #{mab_forward.12}
  #allocation0 [shape = 'u32[]', space=smem, size = 0x4, offset = 0x4, fixed_abs, tag = 'smem constant byte address 0x4 - core index']
  #allocation1 [shape = 'u32[144,128]{1,0:T(1,128)}', space=vmem, size = 0x12000, scoped, tag = 'internal scratch']
  %s0 = inlined_call_operand.vmem [shape: f32[2,4,64], index: 0, kind: input, shape index: {}]
  %s1 = inlined_call_operand.vmem [shape: f32[4,4], index: 1, kind: input, shape index: {}]
  %s2 = inlined_call_operand.vmem [shape: f32[2,4,64], index: 2, kind: output, shape index: {}]
  %s3 = sld [smem:[#allocation0]]
  $region41: #{mab_forward.12} parent=0
    _
  %s5 = ssub.s32 1, %s3
  %s6 = scalar_select 0, %s5, %s3
  loop: start=0, step=1, limit=4
  $region2: #{mab_forward.12} parent=0 // loop_pre_header
    _
  $region3: #{mab_forward.12} parent=0 // loop_header
    %s8 = sphi 0, %s12
    %p9 = scmp.ge.s32.totalorder %s8, 4
    %s18 = sphi 0, %s20
    %s21 = sphi 0, %s18
    %s22 = sphi 0, %s21
    %s38 = sphi 0, %s22
    %s42 = sphi 0, %s42
    %s44 = sphi 0, %s42
    %s45 = sphi 0, %s44
    %s59 = sphi 0, %s45
    %s65 = sphi 0, %s67
    %s68 = sphi 0, %s65
    %s69 = sphi 0, %s68
    %s85 = sphi 0, %s69
  $region4: #{mab_forward.12} parent=0 // loop_header_branch
    %11 = sbr.rel (%p9) target = $region8
  $region5: #{mab_forward.12} parent=0 // loop_body
    %s13 = ssub.s32 %s8, 1
    %s14 = ssub.s32 %s8, 2
    %s15 = sadd.s32 %s8, 1
    %s16 = ssub.s32 %s8, %s15
    %p17 = scmp.eq.s32.totalorder %s16, 0
    %s19 = sadd.s32 %s18, 1
    %s20 = scalar_select %p17, %s18, %s19
    %p23 = pneg %p17
    %p24 = scmp.eq.s32.totalorder %s8, 1
    %p25 = por %p23, %p24
    %p26 = scmp.ne.s32.totalorder %s18, %s21
    %p27 = scmp.eq.s32.totalorder %s8, 0
    %p28 = por %p26, %p27
    %p29 = scmp.ne.s32.totalorder %s18, %s21
    %p30 = scmp.eq.s32.totalorder %s13, 1
    %p31 = por %p29, %p30
    %p32 = scmp.ne.s32.totalorder %s21, %s22
    %p33 = scmp.eq.s32.totalorder %s13, 0
    %p34 = por %p32, %p33
    %p35 = scmp.ne.s32.totalorder %s21, %s22
    %p36 = scmp.eq.s32.totalorder %s14, 1
    %p37 = por %p35, %p36
    %p39 = scmp.ne.s32.totalorder %s22, %s38
    %p40 = scmp.eq.s32.totalorder %s14, 0
    %p41 = por %p39, %p40
    %s43 = sadd.s32 %s42, 1
    %p46 = scmp.eq.s32.totalorder %s8, 1
    %p47 = scmp.ne.s32.totalorder %s42, %s44
    %p48 = scmp.eq.s32.totalorder %s8, 0
    %p49 = por %p47, %p48
    %p50 = scmp.ne.s32.totalorder %s42, %s44
    %p51 = scmp.eq.s32.totalorder %s13, 1
    %p52 = por %p50, %p51
    %p53 = scmp.ne.s32.totalorder %s44, %s45
    %p54 = scmp.eq.s32.totalorder %s13, 0
    %p55 = por %p53, %p54
    %p56 = scmp.ne.s32.totalorder %s44, %s45
    %p57 = scmp.eq.s32.totalorder %s14, 1
    %p58 = por %p56, %p57
    %p60 = scmp.ne.s32.totalorder %s45, %s59
    %p61 = scmp.eq.s32.totalorder %s14, 0
    %p62 = por %p60, %p61
    %s63 = ssub.s32 %s8, %s15
    %p64 = scmp.eq.s32.totalorder %s63, 0
    %s66 = sadd.s32 %s65, 1
    %s67 = scalar_select %p64, %s65, %s66
    %p70 = pneg %p64
    %p71 = scmp.eq.s32.totalorder %s8, 1
    %p72 = por %p70, %p71
    %p73 = scmp.ne.s32.totalorder %s65, %s68
    %p74 = scmp.eq.s32.totalorder %s8, 0
    %p75 = por %p73, %p74
    %p76 = scmp.ne.s32.totalorder %s65, %s68
    %p77 = scmp.eq.s32.totalorder %s13, 1
    %p78 = por %p76, %p77
    %p79 = scmp.ne.s32.totalorder %s68, %s69
    %p80 = scmp.eq.s32.totalorder %s13, 0
    %p81 = por %p79, %p80
    %p82 = scmp.ne.s32.totalorder %s68, %s69
    %p83 = scmp.eq.s32.totalorder %s14, 1
    %p84 = por %p82, %p83
    %p86 = scmp.ne.s32.totalorder %s69, %s85
    %p87 = scmp.eq.s32.totalorder %s14, 0
    %p88 = por %p86, %p87
    %p89 = scmp.le.s32.totalorder 1, %s8
    %p90 = scmp.lt.s32.totalorder %s8, 3
    %p91 = pnand %p89, %p90
    %p92 = pneg %p91
    // Predicated region
    $region9: #{mab_forward.12} parent=5 // pred_check
      _
    $region10: #{mab_forward.12} parent=5 // pred_check_branch
      %94 = sbr.rel (%p91) target = $region12
    $region11: #{mab_forward.12} parent=5 // pred_region
      %s95 = ssub.s32 %s8, 1
      // Predicated region
      $region13: #{mab_forward.12} parent=11 // pred_check
        %p96 = pneg %p55
      $region14: #{mab_forward.12} parent=11 // pred_check_branch
        %98 = sbr.rel (%p96) target = $region16
      $region15: #{mab_forward.12} parent=11 // pred_region
        _
      $region16: #{mab_forward.12} parent=11 // pred_fallthru
        _
    $region12: #{mab_forward.12} parent=5 // pred_fallthru
      _
    %p99 = scmp.lt.s32.totalorder %s8, 2
    // Predicated region
    $region17: #{mab_forward.12} parent=5 // pred_check
      %p100 = pneg %p99
    $region18: #{mab_forward.12} parent=5 // pred_check_branch
      %102 = sbr.rel (%p100) target = $region20
    $region19: #{mab_forward.12} parent=5 // pred_region
      // Predicated region
      $region21: #{mab_forward.12} parent=19 // pred_check
        %p103 = pneg %p28
      $region22: #{mab_forward.12} parent=19 // pred_check_branch
        %105 = sbr.rel (%p103) target = $region24
      $region23: #{mab_forward.12} parent=19 // pred_region
        %p106 = scmp.lt.s32.totalorder %s8, 1
        %s107 = scalar_select %p106, %s8, 1
        %s108 = smul.addr %s107, 4
        %s109 = scalar_lea.vmem %s0, %s108
      $region24: #{mab_forward.12} parent=19 // pred_fallthru
        _
    $region20: #{mab_forward.12} parent=5 // pred_fallthru
      _
    %p110 = scmp.le.s32.totalorder 1, %s8
    %p111 = scmp.lt.s32.totalorder %s8, 3
    %p112 = pnand %p110, %p111
    %p113 = pneg %p112
    // Predicated region
    $region25: #{mab_forward.12} parent=5 // pred_check
      _
    $region26: #{mab_forward.12} parent=5 // pred_check_branch
      %115 = sbr.rel (%p112) target = $region28
    $region27: #{mab_forward.12} parent=5 // pred_region
      %s116 = ssub.s32 %s8, 1
      %p117 = scmp.lt.s32.totalorder %s13, 1
      %s118 = scalar_select %p117, %s13, 1
      %s119 = smul.addr %s118, 4
      %s120 = scalar_lea.vmem %s0, %s119
      %p121 = pneg %p34
      %p122 = pneg %p31
      %p123 = pneg %p55
      %p124 = pneg %p52
      %p125 = pneg %p81
      %p126 = pneg %p78
      %p127 = scmp.lt.s32.totalorder %s13, 1
      %s128 = scalar_select %p127, %s13, 1
      %s129 = smul.addr %s128, 4
      %s130 = scalar_lea.vmem %s2, %s129
      %p131 = scmp.lt.s32.totalorder %s13, 1
      %s132 = scalar_select %p131, %s13, 1
      %s133 = smul.addr %s132, 4
      %s134 = scalar_lea.vmem %s0, %s133
      %p135 = scmp.lt.s32.totalorder %s13, 1
      %s136 = scalar_select %p135, %s13, 1
      %s137 = smul.addr %s136, 4
      %s138 = scalar_lea.vmem %s2, %s137
      %v139 = vld [vmem:[%s134] sm:$0xf]
      %vm140 = vcmask 519168
      %v141 = vsel %vm140, %v139, 0.0
      %142 = vadd.xlane.f32.xlu0 %v141
      %v143 = vpop.xlane.xlu0 %142
      %v144 = vrcp.pop 64.0
      %v145 = vmul.f32 %v143, %v144
      %v146 = vld [vmem:[%s1] sm:$0xf]
      %v148 = vlaneseq
      %v149 = vand.u32 %v148, 127
      %v150 = vlaneseq
      %v151 = vshrl.u32 %v150, 7
      %v152 = vsub.s32 %v149, %v151
      %v153 = vrot.slane %v145, %v152
      %vm154 = vcmask 31744
      %v155 = vsel %vm154, %v153, 0
      %vm157 = vcmask 1043456
      %v159 = vsel %vm157, %v146, 0
      %161 = vmatprep.subr.mxu0 0.0
      %162 = vmatpush1.msra.mxu0 0.0
      %163 = vmatprep.subr.mxu0 0.0
      %164 = vmatpush1.msra.mxu0 0.0
      %165 = vmatprep.subr.mxu0 0.0
      %166 = vmatpush1.msra.mxu0 0.0
      %167 = vmatprep.subr.mxu0 0.0
      %168 = vmatpush1.msra.mxu0 0.0
      %169 = vmatprep.subr.mxu0 0.0
      %170 = vmatpush1.msra.mxu0 0.0
      %171 = vmatprep.subr.mxu0 0.0
      %172 = vmatpush1.msra.mxu0 0.0
      %173 = vmatprep.subr.mxu0 0.0
      %174 = vmatpush1.msra.mxu0 0.0
      %175 = vmatprep.subr.mxu0 0.0
      %176 = vmatpush1.msra.mxu0 0.0
      %177 = vmatprep.subr.mxu0 0.0
      %178 = vmatpush1.msra.mxu0 0.0
      %179 = vmatprep.subr.mxu0 0.0
      %180 = vmatpush1.msra.mxu0 0.0
      %181 = vmatprep.subr.mxu0 0.0
      %182 = vmatpush1.msra.mxu0 0.0
      %183 = vmatprep.subr.mxu0 0.0
      %184 = vmatpush1.msra.mxu0 0.0
      %185 = vmatprep.subr.mxu0 0.0
      %186 = vmatpush1.msra.mxu0 0.0
      %187 = vmatprep.subr.mxu0 0.0
      %188 = vmatpush1.msra.mxu0 0.0
      %189 = vmatprep.subr.mxu0 0.0
      %190 = vmatpush1.msra.mxu0 0.0
      %191 = vmatprep.subr.mxu0 0.0
      %192 = vmatpush1.msra.mxu0 %v159
      %193 = vmatprep.subr.mxu0 0.0
      %194 = vmatpush2.msra.mxu0 0.0
      %195 = vmatprep.subr.mxu0 0.0
      %196 = vmatpush2.msra.mxu0 0.0
      %197 = vmatprep.subr.mxu0 0.0
      %198 = vmatpush2.msra.mxu0 0.0
      %199 = vmatprep.subr.mxu0 0.0
      %200 = vmatpush2.msra.mxu0 0.0
      %201 = vmatprep.subr.mxu0 0.0
      %202 = vmatpush2.msra.mxu0 0.0
      %203 = vmatprep.subr.mxu0 0.0
      %204 = vmatpush2.msra.mxu0 0.0
      %205 = vmatprep.subr.mxu0 0.0
      %206 = vmatpush2.msra.mxu0 0.0
      %207 = vmatprep.subr.mxu0 0.0
      %208 = vmatpush2.msra.mxu0 0.0
      %209 = vmatprep.subr.mxu0 0.0
      %210 = vmatpush2.msra.mxu0 0.0
      %211 = vmatprep.subr.mxu0 0.0
      %212 = vmatpush2.msra.mxu0 0.0
      %213 = vmatprep.subr.mxu0 0.0
      %214 = vmatpush2.msra.mxu0 0.0
      %215 = vmatprep.subr.mxu0 0.0
      %216 = vmatpush2.msra.mxu0 0.0
      %217 = vmatprep.subr.mxu0 0.0
      %218 = vmatpush2.msra.mxu0 0.0
      %219 = vmatprep.subr.mxu0 0.0
      %220 = vmatpush2.msra.mxu0 0.0
      %221 = vmatprep.subr.mxu0 0.0
      %222 = vmatpush2.msra.mxu0 0.0
      %223 = vmatprep.subr.mxu0 0.0
      %224 = vmatpush2.msra.mxu0 0.0
      %225 = vmatprep.mubr.f32.mxu0 0.0
      %226 = vmatmul.mubr.f32.gmra.mxu0 %v155
      %v227 = vpop.f32.mrf.mxu0
      %v228 = vadd.f32 0.0, %v227
      %v229 = vpop.f32.mrf.mxu0
      %230 = vdwg.mxu0
      %v231 = vsub.f32 0.0, %v228
      %v232 = vmul.f32 %v231, 1.442695
      %v233 = vpow.pop %v232
      %v234 = vadd.f32 %v233, 1.0
      %v235 = vrcp.pop %v234
      %v236 = vmul.f32 1.0, %v235
      %v237 = vadd.f32 %v236, 1.0
      %v238 = vlaneseq
      %v239 = vshrl.u32 %v238, 7
      %v240 = vsub.s32 0, %v239
      %v241 = vrot.slane %v237, %v240
      %243 = vbcast.lane.b32.xlu0 %v241, 256
      %v244 = vpop.permute.xlu0 %243
      %v245 = vmul.f32 %v139, %v244
      %246 = vst.msk [vmem:[%s138] sm:$0xf] %vm140, %v245
      %p247 = scmp.lt.s32.totalorder %s13, 1
      %s248 = scalar_select %p247, %s13, 1
      %s249 = smul.addr %s248, 4
      %s250 = scalar_lea.vmem %s2, %s249
      // Predicated region
      $region29: #{mab_forward.12} parent=27 // pred_check
        %p251 = pneg %p78
      $region30: #{mab_forward.12} parent=27 // pred_check_branch
        %253 = sbr.rel (%p251) target = $region32
      $region31: #{mab_forward.12} parent=27 // pred_region
        _
      $region32: #{mab_forward.12} parent=27 // pred_fallthru
        _
    $region28: #{mab_forward.12} parent=5 // pred_fallthru
      _
    %p254 = scmp.le.s32.totalorder 2, %s8
    // Predicated region
    $region33: #{mab_forward.12} parent=5 // pred_check
      %p255 = pneg %p254
    $region34: #{mab_forward.12} parent=5 // pred_check_branch
      %257 = sbr.rel (%p255) target = $region36
    $region35: #{mab_forward.12} parent=5 // pred_region
      %s258 = ssub.s32 %s8, 2
      // Predicated region
      $region37: #{mab_forward.12} parent=35 // pred_check
        %p259 = pneg %p84
      $region38: #{mab_forward.12} parent=35 // pred_check_branch
        %261 = sbr.rel (%p259) target = $region40
      $region39: #{mab_forward.12} parent=35 // pred_region
        %p262 = scmp.lt.s32.totalorder %s14, 1
        %s263 = scalar_select %p262, %s14, 1
        %s264 = smul.addr %s263, 4
        %s265 = scalar_lea.vmem %s2, %s264
      $region40: #{mab_forward.12} parent=35 // pred_fallthru
        _
    $region36: #{mab_forward.12} parent=5 // pred_fallthru
      _
  $region6: #{mab_forward.12} parent=0 // loop_footer
    %s12 = sadd.s32 1, %s8
  $region7: #{mab_forward.12} parent=0 // loop_footer_branch
    %7 = sbr.rel target = $region3
  $region8: #{mab_forward.12} parent=0 // loop_exit
    _

// kernel: mab_forward.13
$region0: #{mab_forward.13}
  #allocation0 [shape = 'u32[]', space=smem, size = 0x4, offset = 0x4, fixed_abs, tag = 'smem constant byte address 0x4 - core index']
  #allocation1 [shape = 'u32[144,128]{1,0:T(1,128)}', space=vmem, size = 0x12000, scoped, tag = 'internal scratch']
  %s0 = inlined_call_operand.vmem [shape: f32[2,4,8,8], index: 0, kind: input, shape index: {}]
  %s1 = inlined_call_operand.vmem [shape: f32[16,8], index: 1, kind: input, shape index: {}]
  %s2 = inlined_call_operand.vmem [shape: f32[8,16], index: 2, kind: input, shape index: {}]
  %s3 = inlined_call_operand.vmem [shape: f32[2,4,16,16], index: 3, kind: output, shape index: {}]
  %s4 = sld [smem:[#allocation0]]
  $region45: #{mab_forward.13} parent=0
    _
  %s6 = ssub.s32 1, %s4
  %s7 = scalar_select 0, %s6, %s4
  loop: start=0, step=1, limit=10
  $region2: #{mab_forward.13} parent=0 // loop_pre_header
    _
  $region3: #{mab_forward.13} parent=0 // loop_header
    %s9 = sphi 0, %s13
    %p10 = scmp.ge.s32.totalorder %s9, 10
    %s16 = sphi 0, %s28
    %s17 = sphi 0, %s24
    %s18 = sphi 0, %s16
    %s19 = sphi 0, %s17
    %s20 = sphi 0, %s18
    %s21 = sphi 0, %s19
    %s33 = sphi 0, %s35
    %s36 = sphi 0, %s33
    %s37 = sphi 0, %s36
    %s53 = sphi 0, %s37
    %s57 = sphi 0, %s57
    %s59 = sphi 0, %s57
    %s60 = sphi 0, %s59
    %s74 = sphi 0, %s60
    %s78 = sphi 0, %s78
    %s80 = sphi 0, %s78
    %s81 = sphi 0, %s80
    %s95 = sphi 0, %s81
    %s103 = sphi 0, %s105
    %s106 = sphi 0, %s103
    %s107 = sphi 0, %s106
    %s123 = sphi 0, %s107
  $region4: #{mab_forward.13} parent=0 // loop_header_branch
    %12 = sbr.rel (%p10) target = $region8
  $region5: #{mab_forward.13} parent=0 // loop_body
    %s14 = ssub.s32 %s9, 1
    %s15 = ssub.s32 %s9, 2
    %s22 = sadd.s32 1, %s17
    %p23 = scmp.ge.s32.totalorder %s22, 4
    %s24 = scalar_select %p23, 0, %s22
    %s25 = sadd.s32 1, %s16
    %s26 = scalar_select %p23, %s25, %s16
    %p27 = scmp.ge.s32.totalorder %s26, 2
    %s28 = scalar_select %p27, 0, %s26
    %s29 = ssub.s32 %s16, %s28
    %s30 = ssub.s32 %s17, %s24
    %s31 = sor.u32 %s29, %s30
    %p32 = scmp.eq.s32.totalorder %s31, 0
    %s34 = sadd.s32 %s33, 1
    %s35 = scalar_select %p32, %s33, %s34
    %p38 = pneg %p32
    %p39 = scmp.eq.s32.totalorder %s9, 7
    %p40 = por %p38, %p39
    %p41 = scmp.ne.s32.totalorder %s33, %s36
    %p42 = scmp.eq.s32.totalorder %s9, 0
    %p43 = por %p41, %p42
    %p44 = scmp.ne.s32.totalorder %s33, %s36
    %p45 = scmp.eq.s32.totalorder %s14, 7
    %p46 = por %p44, %p45
    %p47 = scmp.ne.s32.totalorder %s36, %s37
    %p48 = scmp.eq.s32.totalorder %s14, 0
    %p49 = por %p47, %p48
    %p50 = scmp.ne.s32.totalorder %s36, %s37
    %p51 = scmp.eq.s32.totalorder %s15, 7
    %p52 = por %p50, %p51
    %p54 = scmp.ne.s32.totalorder %s37, %s53
    %p55 = scmp.eq.s32.totalorder %s15, 0
    %p56 = por %p54, %p55
    %s58 = sadd.s32 %s57, 1
    %p61 = scmp.eq.s32.totalorder %s9, 7
    %p62 = scmp.ne.s32.totalorder %s57, %s59
    %p63 = scmp.eq.s32.totalorder %s9, 0
    %p64 = por %p62, %p63
    %p65 = scmp.ne.s32.totalorder %s57, %s59
    %p66 = scmp.eq.s32.totalorder %s14, 7
    %p67 = por %p65, %p66
    %p68 = scmp.ne.s32.totalorder %s59, %s60
    %p69 = scmp.eq.s32.totalorder %s14, 0
    %p70 = por %p68, %p69
    %p71 = scmp.ne.s32.totalorder %s59, %s60
    %p72 = scmp.eq.s32.totalorder %s15, 7
    %p73 = por %p71, %p72
    %p75 = scmp.ne.s32.totalorder %s60, %s74
    %p76 = scmp.eq.s32.totalorder %s15, 0
    %p77 = por %p75, %p76
    %s79 = sadd.s32 %s78, 1
    %p82 = scmp.eq.s32.totalorder %s9, 7
    %p83 = scmp.ne.s32.totalorder %s78, %s80
    %p84 = scmp.eq.s32.totalorder %s9, 0
    %p85 = por %p83, %p84
    %p86 = scmp.ne.s32.totalorder %s78, %s80
    %p87 = scmp.eq.s32.totalorder %s14, 7
    %p88 = por %p86, %p87
    %p89 = scmp.ne.s32.totalorder %s80, %s81
    %p90 = scmp.eq.s32.totalorder %s14, 0
    %p91 = por %p89, %p90
    %p92 = scmp.ne.s32.totalorder %s80, %s81
    %p93 = scmp.eq.s32.totalorder %s15, 7
    %p94 = por %p92, %p93
    %p96 = scmp.ne.s32.totalorder %s81, %s95
    %p97 = scmp.eq.s32.totalorder %s15, 0
    %p98 = por %p96, %p97
    %s99 = ssub.s32 %s16, %s28
    %s100 = ssub.s32 %s17, %s24
    %s101 = sor.u32 %s99, %s100
    %p102 = scmp.eq.s32.totalorder %s101, 0
    %s104 = sadd.s32 %s103, 1
    %s105 = scalar_select %p102, %s103, %s104
    %p108 = pneg %p102
    %p109 = scmp.eq.s32.totalorder %s9, 7
    %p110 = por %p108, %p109
    %p111 = scmp.ne.s32.totalorder %s103, %s106
    %p112 = scmp.eq.s32.totalorder %s9, 0
    %p113 = por %p111, %p112
    %p114 = scmp.ne.s32.totalorder %s103, %s106
    %p115 = scmp.eq.s32.totalorder %s14, 7
    %p116 = por %p114, %p115
    %p117 = scmp.ne.s32.totalorder %s106, %s107
    %p118 = scmp.eq.s32.totalorder %s14, 0
    %p119 = por %p117, %p118
    %p120 = scmp.ne.s32.totalorder %s106, %s107
    %p121 = scmp.eq.s32.totalorder %s15, 7
    %p122 = por %p120, %p121
    %p124 = scmp.ne.s32.totalorder %s107, %s123
    %p125 = scmp.eq.s32.totalorder %s15, 0
    %p126 = por %p124, %p125
    %p127 = scmp.le.s32.totalorder 1, %s9
    %p128 = scmp.lt.s32.totalorder %s9, 9
    %p129 = pnand %p127, %p128
    %p130 = pneg %p129
    // Predicated region
    $region9: #{mab_forward.13} parent=5 // pred_check
      _
    $region10: #{mab_forward.13} parent=5 // pred_check_branch
      %132 = sbr.rel (%p129) target = $region12
    $region11: #{mab_forward.13} parent=5 // pred_region
      %s133 = ssub.s32 %s9, 1
      // Predicated region
      $region13: #{mab_forward.13} parent=11 // pred_check
        %p134 = pneg %p70
      $region14: #{mab_forward.13} parent=11 // pred_check_branch
        %136 = sbr.rel (%p134) target = $region16
      $region15: #{mab_forward.13} parent=11 // pred_region
        _
      $region16: #{mab_forward.13} parent=11 // pred_fallthru
        _
      // Predicated region
      $region17: #{mab_forward.13} parent=11 // pred_check
        %p137 = pneg %p91
      $region18: #{mab_forward.13} parent=11 // pred_check_branch
        %139 = sbr.rel (%p137) target = $region20
      $region19: #{mab_forward.13} parent=11 // pred_region
        _
      $region20: #{mab_forward.13} parent=11 // pred_fallthru
        _
    $region12: #{mab_forward.13} parent=5 // pred_fallthru
      _
    %p140 = scmp.lt.s32.totalorder %s9, 8
    // Predicated region
    $region21: #{mab_forward.13} parent=5 // pred_check
      %p141 = pneg %p140
    $region22: #{mab_forward.13} parent=5 // pred_check_branch
      %143 = sbr.rel (%p141) target = $region24
    $region23: #{mab_forward.13} parent=5 // pred_region
      // Predicated region
      $region25: #{mab_forward.13} parent=23 // pred_check
        %p144 = pneg %p43
      $region26: #{mab_forward.13} parent=23 // pred_check_branch
        %146 = sbr.rel (%p144) target = $region28
      $region27: #{mab_forward.13} parent=23 // pred_region
        %p147 = scmp.lt.s32.totalorder %s16, 1
        %s148 = scalar_select %p147, %s16, 1
        %p149 = scmp.lt.s32.totalorder %s17, 3
        %s150 = scalar_select %p149, %s17, 3
        %s151 = smul.addr %s148, 4
        %s152 = sadd.s32 %s150, %s151
        %s153 = smul.addr %s152, 8
        %s154 = scalar_lea.vmem %s0, %s153
      $region28: #{mab_forward.13} parent=23 // pred_fallthru
        _
    $region24: #{mab_forward.13} parent=5 // pred_fallthru
      _
    %p155 = scmp.le.s32.totalorder 1, %s9
    %p156 = scmp.lt.s32.totalorder %s9, 9
    %p157 = pnand %p155, %p156
    %p158 = pneg %p157
    // Predicated region
    $region29: #{mab_forward.13} parent=5 // pred_check
      _
    $region30: #{mab_forward.13} parent=5 // pred_check_branch
      %160 = sbr.rel (%p157) target = $region32
    $region31: #{mab_forward.13} parent=5 // pred_region
      %s161 = ssub.s32 %s9, 1
      %p162 = scmp.lt.s32.totalorder %s18, 1
      %s163 = scalar_select %p162, %s18, 1
      %p164 = scmp.lt.s32.totalorder %s19, 3
      %s165 = scalar_select %p164, %s19, 3
      %s166 = smul.addr %s163, 4
      %s167 = sadd.s32 %s165, %s166
      %s168 = smul.addr %s167, 8
      %s169 = scalar_lea.vmem %s0, %s168
      %p170 = pneg %p49
      %p171 = pneg %p46
      %p172 = pneg %p70
      %p173 = pneg %p67
      %p174 = pneg %p91
      %p175 = pneg %p88
      %p176 = pneg %p119
      %p177 = pneg %p116
      %p178 = scmp.lt.s32.totalorder %s18, 1
      %s179 = scalar_select %p178, %s18, 1
      %p180 = scmp.lt.s32.totalorder %s19, 3
      %s181 = scalar_select %p180, %s19, 3
      %s182 = smul.addr %s181, 2
      %s183 = smul.addr %s179, 8
      %s184 = sadd.s32 %s182, %s183
      %s185 = smul.addr %s184, 8
      %s186 = scalar_lea.vmem %s3, %s185
      %p187 = scmp.lt.s32.totalorder %s18, 1
      %s188 = scalar_select %p187, %s18, 1
      %p189 = scmp.lt.s32.totalorder %s19, 3
      %s190 = scalar_select %p189, %s19, 3
      %s191 = smul.addr %s188, 4
      %s192 = sadd.s32 %s190, %s191
      %s193 = smul.addr %s192, 8
      %s194 = scalar_lea.vmem %s0, %s193
      %p195 = scmp.lt.s32.totalorder %s18, 1
      %s196 = scalar_select %p195, %s18, 1
      %p197 = scmp.lt.s32.totalorder %s19, 3
      %s198 = scalar_select %p197, %s19, 3
      %s199 = smul.addr %s198, 2
      %s200 = smul.addr %s196, 8
      %s201 = sadd.s32 %s199, %s200
      %s202 = smul.addr %s201, 8
      %s203 = scalar_lea.vmem %s3, %s202
      %v204 = vld [vmem:[%s194] sm:$0xff]
      %v205 = vld [vmem:[%s2] sm:$0xff]
      %vm206 = vcmask 64512
      %v208 = vsel %vm206, %v204, 0
      %210 = vmatprep.subr.mxu0 0.0
      %211 = vmatpush1.msra.mxu0 0.0
      %212 = vmatprep.subr.mxu0 0.0
      %213 = vmatpush1.msra.mxu0 0.0
      %214 = vmatprep.subr.mxu0 0.0
      %215 = vmatpush1.msra.mxu0 0.0
      %216 = vmatprep.subr.mxu0 0.0
      %217 = vmatpush1.msra.mxu0 0.0
      %218 = vmatprep.subr.mxu0 0.0
      %219 = vmatpush1.msra.mxu0 0.0
      %220 = vmatprep.subr.mxu0 0.0
      %221 = vmatpush1.msra.mxu0 0.0
      %222 = vmatprep.subr.mxu0 0.0
      %223 = vmatpush1.msra.mxu0 0.0
      %224 = vmatprep.subr.mxu0 0.0
      %225 = vmatpush1.msra.mxu0 0.0
      %226 = vmatprep.subr.mxu0 0.0
      %227 = vmatpush1.msra.mxu0 0.0
      %228 = vmatprep.subr.mxu0 0.0
      %229 = vmatpush1.msra.mxu0 0.0
      %230 = vmatprep.subr.mxu0 0.0
      %231 = vmatpush1.msra.mxu0 0.0
      %232 = vmatprep.subr.mxu0 0.0
      %233 = vmatpush1.msra.mxu0 0.0
      %234 = vmatprep.subr.mxu0 0.0
      %235 = vmatpush1.msra.mxu0 0.0
      %236 = vmatprep.subr.mxu0 0.0
      %237 = vmatpush1.msra.mxu0 0.0
      %238 = vmatprep.subr.mxu0 0.0
      %239 = vmatpush1.msra.mxu0 0.0
      %240 = vmatprep.subr.mxu0 0.0
      %241 = vmatpush1.msra.mxu0 %v205
      %242 = vmatprep.subr.mxu0 0.0
      %243 = vmatpush2.msra.mxu0 0.0
      %244 = vmatprep.subr.mxu0 0.0
      %245 = vmatpush2.msra.mxu0 0.0
      %246 = vmatprep.subr.mxu0 0.0
      %247 = vmatpush2.msra.mxu0 0.0
      %248 = vmatprep.subr.mxu0 0.0
      %249 = vmatpush2.msra.mxu0 0.0
      %250 = vmatprep.subr.mxu0 0.0
      %251 = vmatpush2.msra.mxu0 0.0
      %252 = vmatprep.subr.mxu0 0.0
      %253 = vmatpush2.msra.mxu0 0.0
      %254 = vmatprep.subr.mxu0 0.0
      %255 = vmatpush2.msra.mxu0 0.0
      %256 = vmatprep.subr.mxu0 0.0
      %257 = vmatpush2.msra.mxu0 0.0
      %258 = vmatprep.subr.mxu0 0.0
      %259 = vmatpush2.msra.mxu0 0.0
      %260 = vmatprep.subr.mxu0 0.0
      %261 = vmatpush2.msra.mxu0 0.0
      %262 = vmatprep.subr.mxu0 0.0
      %263 = vmatpush2.msra.mxu0 0.0
      %264 = vmatprep.subr.mxu0 0.0
      %265 = vmatpush2.msra.mxu0 0.0
      %266 = vmatprep.subr.mxu0 0.0
      %267 = vmatpush2.msra.mxu0 0.0
      %268 = vmatprep.subr.mxu0 0.0
      %269 = vmatpush2.msra.mxu0 0.0
      %270 = vmatprep.subr.mxu0 0.0
      %271 = vmatpush2.msra.mxu0 0.0
      %272 = vmatprep.subr.mxu0 0.0
      %273 = vmatpush2.msra.mxu0 0.0
      %274 = vmatprep.mubr.f32.mxu0 0.0
      %275 = vmatmul.mubr.f32.gmra.mxu0 %v208
      %v276 = vpop.f32.mrf.mxu0
      %v277 = vadd.f32 0.0, %v276
      %v278 = vpop.f32.mrf.mxu0
      %279 = vdwg.mxu0
      %v280 = vld [vmem:[%s1] sm:$0xff]
      %v281 = vld [vmem:[%s1 + $0x8] sm:$0xff]
      %v283 = vsel %vm206, %v280, 0
      %v286 = vsel %vm206, %v281, 0
      %288 = vmatprep.subr.mxu0 0.0
      %289 = vmatpush1.msra.mxu0 0.0
      %290 = vmatprep.subr.mxu0 0.0
      %291 = vmatpush1.msra.mxu0 0.0
      %292 = vmatprep.subr.mxu0 0.0
      %293 = vmatpush1.msra.mxu0 0.0
      %294 = vmatprep.subr.mxu0 0.0
      %295 = vmatpush1.msra.mxu0 0.0
      %296 = vmatprep.subr.mxu0 0.0
      %297 = vmatpush1.msra.mxu0 0.0
      %298 = vmatprep.subr.mxu0 0.0
      %299 = vmatpush1.msra.mxu0 0.0
      %300 = vmatprep.subr.mxu0 0.0
      %301 = vmatpush1.msra.mxu0 0.0
      %302 = vmatprep.subr.mxu0 0.0
      %303 = vmatpush1.msra.mxu0 0.0
      %304 = vmatprep.subr.mxu0 0.0
      %305 = vmatpush1.msra.mxu0 0.0
      %306 = vmatprep.subr.mxu0 0.0
      %307 = vmatpush1.msra.mxu0 0.0
      %308 = vmatprep.subr.mxu0 0.0
      %309 = vmatpush1.msra.mxu0 0.0
      %310 = vmatprep.subr.mxu0 0.0
      %311 = vmatpush1.msra.mxu0 0.0
      %312 = vmatprep.subr.mxu0 0.0
      %313 = vmatpush1.msra.mxu0 0.0
      %314 = vmatprep.subr.mxu0 0.0
      %315 = vmatpush1.msra.mxu0 0.0
      %316 = vmatprep.subr.mxu0 0.0
      %317 = vmatpush1.msra.mxu0 0.0
      %318 = vmatprep.subr.mxu0 0.0
      %319 = vmatpush1.msra.mxu0 %v277
      %320 = vmatprep.subr.mxu0 0.0
      %321 = vmatpush2.msra.mxu0 0.0
      %322 = vmatprep.subr.mxu0 0.0
      %323 = vmatpush2.msra.mxu0 0.0
      %324 = vmatprep.subr.mxu0 0.0
      %325 = vmatpush2.msra.mxu0 0.0
      %326 = vmatprep.subr.mxu0 0.0
      %327 = vmatpush2.msra.mxu0 0.0
      %328 = vmatprep.subr.mxu0 0.0
      %329 = vmatpush2.msra.mxu0 0.0
      %330 = vmatprep.subr.mxu0 0.0
      %331 = vmatpush2.msra.mxu0 0.0
      %332 = vmatprep.subr.mxu0 0.0
      %333 = vmatpush2.msra.mxu0 0.0
      %334 = vmatprep.subr.mxu0 0.0
      %335 = vmatpush2.msra.mxu0 0.0
      %336 = vmatprep.subr.mxu0 0.0
      %337 = vmatpush2.msra.mxu0 0.0
      %338 = vmatprep.subr.mxu0 0.0
      %339 = vmatpush2.msra.mxu0 0.0
      %340 = vmatprep.subr.mxu0 0.0
      %341 = vmatpush2.msra.mxu0 0.0
      %342 = vmatprep.subr.mxu0 0.0
      %343 = vmatpush2.msra.mxu0 0.0
      %344 = vmatprep.subr.mxu0 0.0
      %345 = vmatpush2.msra.mxu0 0.0
      %346 = vmatprep.subr.mxu0 0.0
      %347 = vmatpush2.msra.mxu0 0.0
      %348 = vmatprep.subr.mxu0 0.0
      %349 = vmatpush2.msra.mxu0 0.0
      %350 = vmatprep.subr.mxu0 0.0
      %351 = vmatpush2.msra.mxu0 0.0
      %352 = vmatprep.mubr.f32.mxu0 0.0
      %353 = vmatmul.mubr.f32.gmra.mxu0 %v283
      %v354 = vpop.f32.mrf.mxu0
      %v355 = vadd.f32 0.0, %v354
      %v356 = vpop.f32.mrf.mxu0
      %357 = vmatprep.mubr.f32.mxu0 0.0
      %358 = vmatmul.mubr.f32.gmra.mxu0 %v286
      %v359 = vpop.f32.mrf.mxu0
      %v360 = vadd.f32 0.0, %v359
      %v361 = vpop.f32.mrf.mxu0
      %362 = vdwg.mxu0
      %vm363 = vcmask 130048
      %364 = vst.msk [vmem:[%s203] sm:$0xff] %vm363, %v355
      %365 = vst.msk [vmem:[%s203 + $0x8] sm:$0xff] %vm363, %v360
      %p366 = scmp.lt.s32.totalorder %s18, 1
      %s367 = scalar_select %p366, %s18, 1
      %p368 = scmp.lt.s32.totalorder %s19, 3
      %s369 = scalar_select %p368, %s19, 3
      %s370 = smul.addr %s369, 2
      %s371 = smul.addr %s367, 8
      %s372 = sadd.s32 %s370, %s371
      %s373 = smul.addr %s372, 8
      %s374 = scalar_lea.vmem %s3, %s373
      // Predicated region
      $region33: #{mab_forward.13} parent=31 // pred_check
        %p375 = pneg %p116
      $region34: #{mab_forward.13} parent=31 // pred_check_branch
        %377 = sbr.rel (%p375) target = $region36
      $region35: #{mab_forward.13} parent=31 // pred_region
        _
      $region36: #{mab_forward.13} parent=31 // pred_fallthru
        _
    $region32: #{mab_forward.13} parent=5 // pred_fallthru
      _
    %p378 = scmp.le.s32.totalorder 2, %s9
    // Predicated region
    $region37: #{mab_forward.13} parent=5 // pred_check
      %p379 = pneg %p378
    $region38: #{mab_forward.13} parent=5 // pred_check_branch
      %381 = sbr.rel (%p379) target = $region40
    $region39: #{mab_forward.13} parent=5 // pred_region
      %s382 = ssub.s32 %s9, 2
      // Predicated region
      $region41: #{mab_forward.13} parent=39 // pred_check
        %p383 = pneg %p122
      $region42: #{mab_forward.13} parent=39 // pred_check_branch
        %385 = sbr.rel (%p383) target = $region44
      $region43: #{mab_forward.13} parent=39 // pred_region
        %p386 = scmp.lt.s32.totalorder %s20, 1
        %s387 = scalar_select %p386, %s20, 1
        %p388 = scmp.lt.s32.totalorder %s21, 3
        %s389 = scalar_select %p388, %s21, 3
        %s390 = smul.addr %s389, 2
        %s391 = smul.addr %s387, 8
        %s392 = sadd.s32 %s390, %s391
        %s393 = smul.addr %s392, 8
        %s394 = scalar_lea.vmem %s3, %s393
      $region44: #{mab_forward.13} parent=39 // pred_fallthru
        _
    $region40: #{mab_forward.13} parent=5 // pred_fallthru
      _
  $region6: #{mab_forward.13} parent=0 // loop_footer
    %s13 = sadd.s32 1, %s9
  $region7: #{mab_forward.13} parent=0 // loop_footer_branch
    %8 = sbr.rel target = $region3
  $region8: #{mab_forward.13} parent=0 // loop_exit
    _

// kernel: mab_forward.14
$region0: #{mab_forward.14}
  #allocation0 [shape = 'u32[]', space=smem, size = 0x4, offset = 0x4, fixed_abs, tag = 'smem constant byte address 0x4 - core index']
  #allocation1 [shape = 'u32[144,128]{1,0:T(1,128)}', space=vmem, size = 0x12000, scoped, tag = 'internal scratch']
  #allocation2 [shape = 'f32[8,256]{1,0:T(8,128)}', space=vmem, size = 0x2000, scoped, tag = 'scratch operand']
  %s0 = inlined_call_operand.vmem [shape: bf16[8,36], index: 0, kind: input, shape index: {}]
  %s1 = inlined_call_operand.vmem [shape: bf16[2,36,256], index: 1, kind: input, shape index: {}]
  %s2 = inlined_call_operand.vmem [shape: f32[8,1], index: 2, kind: input, shape index: {}]
  %s3 = inlined_call_operand.vmem [shape: f32[2,8,256], index: 3, kind: output, shape index: {}]
  %s4 = sld [smem:[#allocation0]]
  $region53: #{mab_forward.14} parent=0
    _
  %s6 = ssub.s32 1, %s4
  %s7 = scalar_select 0, %s6, %s4
  loop: start=0, step=1, limit=4
  $region2: #{mab_forward.14} parent=0 // loop_pre_header
    _
  $region3: #{mab_forward.14} parent=0 // loop_header
    %s9 = sphi 0, %s13
    %p10 = scmp.ge.s32.totalorder %s9, 4
    %s16 = sphi 0, %s35
    %s17 = sphi 0, %s31
    %s18 = sphi 0, %s27
    %s19 = sphi 0, %s16
    %s20 = sphi 0, %s17
    %s21 = sphi 0, %s18
    %s22 = sphi 0, %s19
    %s23 = sphi 0, %s20
    %s24 = sphi 0, %s21
    %s38 = sphi 0, %s40
    %s41 = sphi 0, %s38
    %s42 = sphi 0, %s41
    %s58 = sphi 0, %s42
    %s68 = sphi 0, %s70
    %s71 = sphi 0, %s68
    %s72 = sphi 0, %s71
    %s88 = sphi 0, %s72
    %s92 = sphi 0, %s92
    %s94 = sphi 0, %s92
    %s95 = sphi 0, %s94
    %s109 = sphi 0, %s95
    %s117 = sphi 0, %s119
    %s120 = sphi 0, %s117
    %s121 = sphi 0, %s120
    %s137 = sphi 0, %s121
  $region4: #{mab_forward.14} parent=0 // loop_header_branch
    %12 = sbr.rel (%p10) target = $region8
  $region5: #{mab_forward.14} parent=0 // loop_body
    %s14 = ssub.s32 %s9, 1
    %s15 = ssub.s32 %s9, 2
    %s25 = sadd.s32 1, %s18
    %p26 = scmp.ge.s32.totalorder %s25, 1
    %s27 = scalar_select %p26, 0, %s25
    %s28 = sadd.s32 1, %s17
    %s29 = scalar_select %p26, %s28, %s17
    %p30 = scmp.ge.s32.totalorder %s29, 1
    %s31 = scalar_select %p30, 0, %s29
    %s32 = sadd.s32 1, %s16
    %s33 = scalar_select %p30, %s32, %s16
    %p34 = scmp.ge.s32.totalorder %s33, 2
    %s35 = scalar_select %p34, 0, %s33
    %s36 = ssub.s32 %s18, %s27
    %p37 = scmp.eq.s32.totalorder %s36, 0
    %s39 = sadd.s32 %s38, 1
    %s40 = scalar_select %p37, %s38, %s39
    %p43 = pneg %p37
    %p44 = scmp.eq.s32.totalorder %s9, 1
    %p45 = por %p43, %p44
    %p46 = scmp.ne.s32.totalorder %s38, %s41
    %p47 = scmp.eq.s32.totalorder %s9, 0
    %p48 = por %p46, %p47
    %p49 = scmp.ne.s32.totalorder %s38, %s41
    %p50 = scmp.eq.s32.totalorder %s14, 1
    %p51 = por %p49, %p50
    %p52 = scmp.ne.s32.totalorder %s41, %s42
    %p53 = scmp.eq.s32.totalorder %s14, 0
    %p54 = por %p52, %p53
    %p55 = scmp.ne.s32.totalorder %s41, %s42
    %p56 = scmp.eq.s32.totalorder %s15, 1
    %p57 = por %p55, %p56
    %p59 = scmp.ne.s32.totalorder %s42, %s58
    %p60 = scmp.eq.s32.totalorder %s15, 0
    %p61 = por %p59, %p60
    %s62 = ssub.s32 %s16, %s35
    %s63 = ssub.s32 %s18, %s27
    %s64 = sor.u32 %s62, %s63
    %s65 = ssub.s32 %s17, %s31
    %s66 = sor.u32 %s64, %s65
    %p67 = scmp.eq.s32.totalorder %s66, 0
    %s69 = sadd.s32 %s68, 1
    %s70 = scalar_select %p67, %s68, %s69
    %p73 = pneg %p67
    %p74 = scmp.eq.s32.totalorder %s9, 1
    %p75 = por %p73, %p74
    %p76 = scmp.ne.s32.totalorder %s68, %s71
    %p77 = scmp.eq.s32.totalorder %s9, 0
    %p78 = por %p76, %p77
    %p79 = scmp.ne.s32.totalorder %s68, %s71
    %p80 = scmp.eq.s32.totalorder %s14, 1
    %p81 = por %p79, %p80
    %p82 = scmp.ne.s32.totalorder %s71, %s72
    %p83 = scmp.eq.s32.totalorder %s14, 0
    %p84 = por %p82, %p83
    %p85 = scmp.ne.s32.totalorder %s71, %s72
    %p86 = scmp.eq.s32.totalorder %s15, 1
    %p87 = por %p85, %p86
    %p89 = scmp.ne.s32.totalorder %s72, %s88
    %p90 = scmp.eq.s32.totalorder %s15, 0
    %p91 = por %p89, %p90
    %s93 = sadd.s32 %s92, 1
    %p96 = scmp.eq.s32.totalorder %s9, 1
    %p97 = scmp.ne.s32.totalorder %s92, %s94
    %p98 = scmp.eq.s32.totalorder %s9, 0
    %p99 = por %p97, %p98
    %p100 = scmp.ne.s32.totalorder %s92, %s94
    %p101 = scmp.eq.s32.totalorder %s14, 1
    %p102 = por %p100, %p101
    %p103 = scmp.ne.s32.totalorder %s94, %s95
    %p104 = scmp.eq.s32.totalorder %s14, 0
    %p105 = por %p103, %p104
    %p106 = scmp.ne.s32.totalorder %s94, %s95
    %p107 = scmp.eq.s32.totalorder %s15, 1
    %p108 = por %p106, %p107
    %p110 = scmp.ne.s32.totalorder %s95, %s109
    %p111 = scmp.eq.s32.totalorder %s15, 0
    %p112 = por %p110, %p111
    %s113 = ssub.s32 %s16, %s35
    %s114 = ssub.s32 %s17, %s31
    %s115 = sor.u32 %s113, %s114
    %p116 = scmp.eq.s32.totalorder %s115, 0
    %s118 = sadd.s32 %s117, 1
    %s119 = scalar_select %p116, %s117, %s118
    %p122 = pneg %p116
    %p123 = scmp.eq.s32.totalorder %s9, 1
    %p124 = por %p122, %p123
    %p125 = scmp.ne.s32.totalorder %s117, %s120
    %p126 = scmp.eq.s32.totalorder %s9, 0
    %p127 = por %p125, %p126
    %p128 = scmp.ne.s32.totalorder %s117, %s120
    %p129 = scmp.eq.s32.totalorder %s14, 1
    %p130 = por %p128, %p129
    %p131 = scmp.ne.s32.totalorder %s120, %s121
    %p132 = scmp.eq.s32.totalorder %s14, 0
    %p133 = por %p131, %p132
    %p134 = scmp.ne.s32.totalorder %s120, %s121
    %p135 = scmp.eq.s32.totalorder %s15, 1
    %p136 = por %p134, %p135
    %p138 = scmp.ne.s32.totalorder %s121, %s137
    %p139 = scmp.eq.s32.totalorder %s15, 0
    %p140 = por %p138, %p139
    %p141 = scmp.le.s32.totalorder 1, %s9
    %p142 = scmp.lt.s32.totalorder %s9, 3
    %p143 = pnand %p141, %p142
    %p144 = pneg %p143
    // Predicated region
    $region9: #{mab_forward.14} parent=5 // pred_check
      _
    $region10: #{mab_forward.14} parent=5 // pred_check_branch
      %146 = sbr.rel (%p143) target = $region12
    $region11: #{mab_forward.14} parent=5 // pred_region
      %s147 = ssub.s32 %s9, 1
      // Predicated region
      $region13: #{mab_forward.14} parent=11 // pred_check
        %p148 = pneg %p54
      $region14: #{mab_forward.14} parent=11 // pred_check_branch
        %150 = sbr.rel (%p148) target = $region16
      $region15: #{mab_forward.14} parent=11 // pred_region
        %p151 = scmp.lt.s32.totalorder %s21, 0
        %s152 = scalar_select %p151, %s21, 0
        %s153 = smul.addr %s152, 4
        %s154 = scalar_lea.vmem %s0, %s153
      $region16: #{mab_forward.14} parent=11 // pred_fallthru
        _
      // Predicated region
      $region17: #{mab_forward.14} parent=11 // pred_check
        %p155 = pneg %p105
      $region18: #{mab_forward.14} parent=11 // pred_check_branch
        %157 = sbr.rel (%p155) target = $region20
      $region19: #{mab_forward.14} parent=11 // pred_region
        _
      $region20: #{mab_forward.14} parent=11 // pred_fallthru
        _
    $region12: #{mab_forward.14} parent=5 // pred_fallthru
      _
    %p158 = scmp.lt.s32.totalorder %s9, 2
    // Predicated region
    $region21: #{mab_forward.14} parent=5 // pred_check
      %p159 = pneg %p158
    $region22: #{mab_forward.14} parent=5 // pred_check_branch
      %161 = sbr.rel (%p159) target = $region24
    $region23: #{mab_forward.14} parent=5 // pred_region
      // Predicated region
      $region25: #{mab_forward.14} parent=23 // pred_check
        %p162 = pneg %p78
      $region26: #{mab_forward.14} parent=23 // pred_check_branch
        %164 = sbr.rel (%p162) target = $region28
      $region27: #{mab_forward.14} parent=23 // pred_region
        %s165 = smul.u32 5, %s18
        %s166 = smul.u32 2, %s17
        %p167 = scmp.lt.s32.totalorder %s16, 1
        %s168 = scalar_select %p167, %s16, 1
        %p169 = scmp.lt.s32.totalorder %s165, 4
        %s170 = scalar_select %p169, %s165, 4
        %p171 = scmp.lt.s32.totalorder %s166, 1
        %s172 = scalar_select %p171, %s166, 1
        %s173 = smul.addr %s170, 2
        %s174 = sadd.s32 %s172, %s173
        %s175 = smul.addr %s168, 10
        %s176 = sadd.s32 %s174, %s175
        %s177 = smul.addr %s176, 4
        %s178 = scalar_lea.vmem %s1, %s177
        %s179 = smul.u32 5, %s18
        %s180 = smul.u32 2, %s17
      $region28: #{mab_forward.14} parent=23 // pred_fallthru
        _
    $region24: #{mab_forward.14} parent=5 // pred_fallthru
      _
    %p181 = scmp.le.s32.totalorder 1, %s9
    %p182 = scmp.lt.s32.totalorder %s9, 3
    %p183 = pnand %p181, %p182
    %p184 = pneg %p183
    // Predicated region
    $region29: #{mab_forward.14} parent=5 // pred_check
      _
    $region30: #{mab_forward.14} parent=5 // pred_check_branch
      %186 = sbr.rel (%p183) target = $region32
    $region31: #{mab_forward.14} parent=5 // pred_region
      %s187 = ssub.s32 %s9, 1
      %p188 = scmp.lt.s32.totalorder %s21, 0
      %s189 = scalar_select %p188, %s21, 0
      %s190 = smul.addr %s189, 4
      %s191 = scalar_lea.vmem %s0, %s190
      %p192 = pneg %p54
      %p193 = pneg %p51
      %s194 = smul.u32 5, %s21
      %s195 = smul.u32 2, %s20
      %p196 = scmp.lt.s32.totalorder %s19, 1
      %s197 = scalar_select %p196, %s19, 1
      %p198 = scmp.lt.s32.totalorder %s194, 4
      %s199 = scalar_select %p198, %s194, 4
      %p200 = scmp.lt.s32.totalorder %s195, 1
      %s201 = scalar_select %p200, %s195, 1
      %s202 = smul.addr %s199, 2
      %s203 = sadd.s32 %s201, %s202
      %s204 = smul.addr %s197, 10
      %s205 = sadd.s32 %s203, %s204
      %s206 = smul.addr %s205, 4
      %s207 = scalar_lea.vmem %s1, %s206
      %p208 = pneg %p84
      %p209 = pneg %p81
      %p210 = pneg %p105
      %p211 = pneg %p102
      %p212 = pneg %p133
      %p213 = pneg %p130
      %s214 = smul.u32 2, %s20
      %p215 = scmp.lt.s32.totalorder %s19, 1
      %s216 = scalar_select %p215, %s19, 1
      %p217 = scmp.lt.s32.totalorder %s214, 1
      %s218 = scalar_select %p217, %s214, 1
      %s219 = smul.addr %s216, 2
      %s220 = sadd.s32 %s218, %s219
      %s221 = smul.addr %s220, 8
      %s222 = scalar_lea.vmem %s3, %s221
      %p223 = scmp.lt.s32.totalorder %s21, 0
      %s224 = scalar_select %p223, %s21, 0
      %s225 = smul.addr %s224, 4
      %s226 = scalar_lea.vmem %s0, %s225
      %s227 = smul.u32 5, %s21
      %s228 = smul.u32 2, %s20
      %p229 = scmp.lt.s32.totalorder %s19, 1
      %s230 = scalar_select %p229, %s19, 1
      %p231 = scmp.lt.s32.totalorder %s227, 4
      %s232 = scalar_select %p231, %s227, 4
      %p233 = scmp.lt.s32.totalorder %s228, 1
      %s234 = scalar_select %p233, %s228, 1
      %s235 = smul.addr %s232, 2
      %s236 = sadd.s32 %s234, %s235
      %s237 = smul.addr %s230, 10
      %s238 = sadd.s32 %s236, %s237
      %s239 = smul.addr %s238, 4
      %s240 = scalar_lea.vmem %s1, %s239
      %s241 = smul.u32 5, %s21
      %s242 = smul.u32 2, %s20
      %s243 = smul.u32 2, %s20
      %p244 = scmp.lt.s32.totalorder %s19, 1
      %s245 = scalar_select %p244, %s19, 1
      %p246 = scmp.lt.s32.totalorder %s243, 1
      %s247 = scalar_select %p246, %s243, 1
      %s248 = smul.addr %s245, 2
      %s249 = sadd.s32 %s247, %s248
      %s250 = smul.addr %s249, 8
      %s251 = scalar_lea.vmem %s3, %s250
      %s252 = smul.u32 2, %s20
      %p254 = scmp.eq.s32.totalorder %s21, 0
      // Predicated region
      $region33: #{mab_forward.14} parent=31 // pred_check
        %p255 = pneg %p254
      $region34: #{mab_forward.14} parent=31 // pred_check_branch
        %257 = sbr.rel (%p255) target = $region36
      $region35: #{mab_forward.14} parent=31 // pred_region
        %258 = vst [vmem:[#allocation2] sm:$0xff] 0.0
        %259 = vst [vmem:[#allocation2 + $0x8] sm:$0xff] 0.0
      $region36: #{mab_forward.14} parent=31 // pred_fallthru
        _
      %v260 = vld [vmem:[#allocation2] sm:$0xff]
      %v261 = vld [vmem:[#allocation2 + $0x8] sm:$0xff]
      %v262 = vld [vmem:[%s226] sm:$0xf]
      %v263 = vld [vmem:[%s240] sm:$0xff]
      %v264 = vld [vmem:[%s240 + $0x8] sm:$0xff]
      %v265 = vld [vmem:[%s240 + $0x10] sm:$0xff]
      %v266 = vld [vmem:[%s240 + $0x18] sm:$0xff]
      %v267 = vld [vmem:[%s240 + $0x20] sm:$0x33]
      %v273 = vunpack.c.l.b16 %v263
      %v274 = vunpack.c.h.b16 %v263
      %v275 = vunpack.c.l.b16 %v264
      %v276 = vunpack.c.h.b16 %v264
      %v277 = vunpack.c.l.b16 %v265
      %v278 = vunpack.c.h.b16 %v265
      %v279 = vunpack.c.l.b16 %v266
      %v280 = vunpack.c.h.b16 %v266
      %v281 = vunpack.c.l.b16 %v267
      %v282 = vunpack.c.h.b16 %v267
      %v283 = vpack.c.b16 %v275, %v273
      %v284 = vpack.c.b16 %v276, %v274
      %v285 = vpack.c.b16 %v279, %v277
      %v286 = vpack.c.b16 %v280, %v278
      %v287 = vpack.c.b16 %v281, %v281
      %v288 = vpack.c.b16 %v282, %v282
      %vm293 = vcmask 293888
      %v295 = vsel %vm293, %v262, 0
      %vm297 = vcmask 1041408
      %v299 = vsel %vm297, %v287, 0
      %v302 = vsel %vm297, %v288, 0
      %304 = vmatprep.subr.bf16.mxu0 0
      %305 = vmatpush1.bf16.msra.mxu0 0
      %306 = vmatprep.subr.bf16.mxu0 0
      %307 = vmatpush1.bf16.msra.mxu0 0
      %308 = vmatprep.subr.bf16.mxu0 0
      %309 = vmatpush1.bf16.msra.mxu0 0
      %310 = vmatprep.subr.bf16.mxu0 0
      %311 = vmatpush1.bf16.msra.mxu0 0
      %312 = vmatprep.subr.bf16.mxu0 0
      %313 = vmatpush1.bf16.msra.mxu0 0
      %314 = vmatprep.subr.bf16.mxu0 %v302
      %315 = vmatpush1.bf16.msra.mxu0 %v299
      %316 = vmatprep.subr.bf16.mxu0 %v286
      %317 = vmatpush1.bf16.msra.mxu0 %v285
      %318 = vmatprep.subr.bf16.mxu0 %v284
      %319 = vmatpush1.bf16.msra.mxu0 %v283
      %320 = vmatprep.subr.bf16.mxu0 0
      %321 = vmatpush2.bf16.msra.mxu0 0
      %322 = vmatprep.subr.bf16.mxu0 0
      %323 = vmatpush2.bf16.msra.mxu0 0
      %324 = vmatprep.subr.bf16.mxu0 0
      %325 = vmatpush2.bf16.msra.mxu0 0
      %326 = vmatprep.subr.bf16.mxu0 0
      %327 = vmatpush2.bf16.msra.mxu0 0
      %328 = vmatprep.subr.bf16.mxu0 0
      %329 = vmatpush2.bf16.msra.mxu0 0
      %330 = vmatprep.subr.bf16.mxu0 0
      %331 = vmatpush2.bf16.msra.mxu0 0
      %332 = vmatprep.subr.bf16.mxu0 0
      %333 = vmatpush2.bf16.msra.mxu0 0
      %334 = vmatprep.subr.bf16.mxu0 0
      %335 = vmatpush2.bf16.msra.mxu0 0
      %336 = vmatprep.mubr.bf16.mxu0 0
      %337 = vmatmul.mubr.bf16.gmra.mxu0 %v295
      %v338 = vpop.f32.mrf.mxu0
      %v339 = vadd.f32 0.0, %v338
      %v340 = vpop.f32.mrf.mxu0
      %v341 = vadd.f32 0.0, %v340
      %v342 = vpop.f32.mrf.mxu0
      %v343 = vpop.f32.mrf.mxu0
      %344 = vdwg.mxu0
      %v345 = vadd.f32 %v260, %v339
      %v346 = vadd.f32 %v261, %v341
      %347 = vst [vmem:[#allocation2] sm:$0xff] %v345
      %348 = vst [vmem:[#allocation2 + $0x8] sm:$0xff] %v346
      // Predicated region
      $region37: #{mab_forward.14} parent=31 // pred_check
        %p349 = pneg %p254
      $region38: #{mab_forward.14} parent=31 // pred_check_branch
        %351 = sbr.rel (%p349) target = $region40
      $region39: #{mab_forward.14} parent=31 // pred_region
        %v352 = vld [vmem:[#allocation2] sm:$0xff]
        %v353 = vld [vmem:[#allocation2 + $0x8] sm:$0xff]
        %v354 = vld [vmem:[%s2] sm:$0xff]
        %356 = vset.pattern.permute.xlu0 0
        %357 = vperm.xlu0 %356, %v354
        %v358 = vpop.permute.xlu0 %357
        %v360 = vadd.f32 %v352, %v358
        %v361 = vadd.f32 %v353, %v358
        %362 = vst [vmem:[%s251] sm:$0xff] %v360
        %363 = vst [vmem:[%s251 + $0x8] sm:$0xff] %v361
      $region40: #{mab_forward.14} parent=31 // pred_fallthru
        _
      %s364 = smul.u32 2, %s20
      %p365 = scmp.lt.s32.totalorder %s19, 1
      %s366 = scalar_select %p365, %s19, 1
      %p367 = scmp.lt.s32.totalorder %s364, 1
      %s368 = scalar_select %p367, %s364, 1
      %s369 = smul.addr %s366, 2
      %s370 = sadd.s32 %s368, %s369
      %s371 = smul.addr %s370, 8
      %s372 = scalar_lea.vmem %s3, %s371
      // Predicated region
      $region41: #{mab_forward.14} parent=31 // pred_check
        %p373 = pneg %p130
      $region42: #{mab_forward.14} parent=31 // pred_check_branch
        %375 = sbr.rel (%p373) target = $region44
      $region43: #{mab_forward.14} parent=31 // pred_region
        %s376 = smul.u32 2, %s20
      $region44: #{mab_forward.14} parent=31 // pred_fallthru
        _
    $region32: #{mab_forward.14} parent=5 // pred_fallthru
      _
    %p377 = scmp.le.s32.totalorder 2, %s9
    // Predicated region
    $region45: #{mab_forward.14} parent=5 // pred_check
      %p378 = pneg %p377
    $region46: #{mab_forward.14} parent=5 // pred_check_branch
      %380 = sbr.rel (%p378) target = $region48
    $region47: #{mab_forward.14} parent=5 // pred_region
      %s381 = ssub.s32 %s9, 2
      // Predicated region
      $region49: #{mab_forward.14} parent=47 // pred_check
        %p382 = pneg %p136
      $region50: #{mab_forward.14} parent=47 // pred_check_branch
        %384 = sbr.rel (%p382) target = $region52
      $region51: #{mab_forward.14} parent=47 // pred_region
        %s385 = smul.u32 2, %s23
        %p386 = scmp.lt.s32.totalorder %s22, 1
        %s387 = scalar_select %p386, %s22, 1
        %p388 = scmp.lt.s32.totalorder %s385, 1
        %s389 = scalar_select %p388, %s385, 1
        %s390 = smul.addr %s387, 2
        %s391 = sadd.s32 %s389, %s390
        %s392 = smul.addr %s391, 8
        %s393 = scalar_lea.vmem %s3, %s392
      $region52: #{mab_forward.14} parent=47 // pred_fallthru
        _
    $region48: #{mab_forward.14} parent=5 // pred_fallthru
      _
  $region6: #{mab_forward.14} parent=0 // loop_footer
    %s13 = sadd.s32 1, %s9
  $region7: #{mab_forward.14} parent=0 // loop_footer_branch
    %8 = sbr.rel target = $region3
  $region8: #{mab_forward.14} parent=0 // loop_exit
    _

// kernel: mab_forward.10
$region0: #{mab_forward.10}
  #allocation0 [shape = 'u32[]', space=smem, size = 0x4, offset = 0x4, fixed_abs, tag = 'smem constant byte address 0x4 - core index']
  #allocation1 [shape = 'u32[144,128]{1,0:T(1,128)}', space=vmem, size = 0x12000, scoped, tag = 'internal scratch']
  %s0 = inlined_call_operand.vmem [shape: f32[2,4,256], index: 0, kind: input, shape index: {}]
  %s1 = inlined_call_operand.vmem [shape: f32[4,4], index: 1, kind: input, shape index: {}]
  %s2 = inlined_call_operand.vmem [shape: f32[2,4,256], index: 2, kind: output, shape index: {}]
  %s3 = sld [smem:[#allocation0]]
  $region41: #{mab_forward.10} parent=0
    _
  %s5 = ssub.s32 1, %s3
  %s6 = scalar_select 0, %s5, %s3
  loop: start=0, step=1, limit=4
  $region2: #{mab_forward.10} parent=0 // loop_pre_header
    _
  $region3: #{mab_forward.10} parent=0 // loop_header
    %s8 = sphi 0, %s12
    %p9 = scmp.ge.s32.totalorder %s8, 4
    %s18 = sphi 0, %s20
    %s21 = sphi 0, %s18
    %s22 = sphi 0, %s21
    %s38 = sphi 0, %s22
    %s42 = sphi 0, %s42
    %s44 = sphi 0, %s42
    %s45 = sphi 0, %s44
    %s59 = sphi 0, %s45
    %s65 = sphi 0, %s67
    %s68 = sphi 0, %s65
    %s69 = sphi 0, %s68
    %s85 = sphi 0, %s69
  $region4: #{mab_forward.10} parent=0 // loop_header_branch
    %11 = sbr.rel (%p9) target = $region8
  $region5: #{mab_forward.10} parent=0 // loop_body
    %s13 = ssub.s32 %s8, 1
    %s14 = ssub.s32 %s8, 2
    %s15 = sadd.s32 %s8, 1
    %s16 = ssub.s32 %s8, %s15
    %p17 = scmp.eq.s32.totalorder %s16, 0
    %s19 = sadd.s32 %s18, 1
    %s20 = scalar_select %p17, %s18, %s19
    %p23 = pneg %p17
    %p24 = scmp.eq.s32.totalorder %s8, 1
    %p25 = por %p23, %p24
    %p26 = scmp.ne.s32.totalorder %s18, %s21
    %p27 = scmp.eq.s32.totalorder %s8, 0
    %p28 = por %p26, %p27
    %p29 = scmp.ne.s32.totalorder %s18, %s21
    %p30 = scmp.eq.s32.totalorder %s13, 1
    %p31 = por %p29, %p30
    %p32 = scmp.ne.s32.totalorder %s21, %s22
    %p33 = scmp.eq.s32.totalorder %s13, 0
    %p34 = por %p32, %p33
    %p35 = scmp.ne.s32.totalorder %s21, %s22
    %p36 = scmp.eq.s32.totalorder %s14, 1
    %p37 = por %p35, %p36
    %p39 = scmp.ne.s32.totalorder %s22, %s38
    %p40 = scmp.eq.s32.totalorder %s14, 0
    %p41 = por %p39, %p40
    %s43 = sadd.s32 %s42, 1
    %p46 = scmp.eq.s32.totalorder %s8, 1
    %p47 = scmp.ne.s32.totalorder %s42, %s44
    %p48 = scmp.eq.s32.totalorder %s8, 0
    %p49 = por %p47, %p48
    %p50 = scmp.ne.s32.totalorder %s42, %s44
    %p51 = scmp.eq.s32.totalorder %s13, 1
    %p52 = por %p50, %p51
    %p53 = scmp.ne.s32.totalorder %s44, %s45
    %p54 = scmp.eq.s32.totalorder %s13, 0
    %p55 = por %p53, %p54
    %p56 = scmp.ne.s32.totalorder %s44, %s45
    %p57 = scmp.eq.s32.totalorder %s14, 1
    %p58 = por %p56, %p57
    %p60 = scmp.ne.s32.totalorder %s45, %s59
    %p61 = scmp.eq.s32.totalorder %s14, 0
    %p62 = por %p60, %p61
    %s63 = ssub.s32 %s8, %s15
    %p64 = scmp.eq.s32.totalorder %s63, 0
    %s66 = sadd.s32 %s65, 1
    %s67 = scalar_select %p64, %s65, %s66
    %p70 = pneg %p64
    %p71 = scmp.eq.s32.totalorder %s8, 1
    %p72 = por %p70, %p71
    %p73 = scmp.ne.s32.totalorder %s65, %s68
    %p74 = scmp.eq.s32.totalorder %s8, 0
    %p75 = por %p73, %p74
    %p76 = scmp.ne.s32.totalorder %s65, %s68
    %p77 = scmp.eq.s32.totalorder %s13, 1
    %p78 = por %p76, %p77
    %p79 = scmp.ne.s32.totalorder %s68, %s69
    %p80 = scmp.eq.s32.totalorder %s13, 0
    %p81 = por %p79, %p80
    %p82 = scmp.ne.s32.totalorder %s68, %s69
    %p83 = scmp.eq.s32.totalorder %s14, 1
    %p84 = por %p82, %p83
    %p86 = scmp.ne.s32.totalorder %s69, %s85
    %p87 = scmp.eq.s32.totalorder %s14, 0
    %p88 = por %p86, %p87
    %p89 = scmp.le.s32.totalorder 1, %s8
    %p90 = scmp.lt.s32.totalorder %s8, 3
    %p91 = pnand %p89, %p90
    %p92 = pneg %p91
    // Predicated region
    $region9: #{mab_forward.10} parent=5 // pred_check
      _
    $region10: #{mab_forward.10} parent=5 // pred_check_branch
      %94 = sbr.rel (%p91) target = $region12
    $region11: #{mab_forward.10} parent=5 // pred_region
      %s95 = ssub.s32 %s8, 1
      // Predicated region
      $region13: #{mab_forward.10} parent=11 // pred_check
        %p96 = pneg %p55
      $region14: #{mab_forward.10} parent=11 // pred_check_branch
        %98 = sbr.rel (%p96) target = $region16
      $region15: #{mab_forward.10} parent=11 // pred_region
        _
      $region16: #{mab_forward.10} parent=11 // pred_fallthru
        _
    $region12: #{mab_forward.10} parent=5 // pred_fallthru
      _
    %p99 = scmp.lt.s32.totalorder %s8, 2
    // Predicated region
    $region17: #{mab_forward.10} parent=5 // pred_check
      %p100 = pneg %p99
    $region18: #{mab_forward.10} parent=5 // pred_check_branch
      %102 = sbr.rel (%p100) target = $region20
    $region19: #{mab_forward.10} parent=5 // pred_region
      // Predicated region
      $region21: #{mab_forward.10} parent=19 // pred_check
        %p103 = pneg %p28
      $region22: #{mab_forward.10} parent=19 // pred_check_branch
        %105 = sbr.rel (%p103) target = $region24
      $region23: #{mab_forward.10} parent=19 // pred_region
        %p106 = scmp.lt.s32.totalorder %s8, 1
        %s107 = scalar_select %p106, %s8, 1
        %s108 = smul.addr %s107, 2
        %s109 = smul.addr %s108, 4
        %s110 = scalar_lea.vmem %s0, %s109
      $region24: #{mab_forward.10} parent=19 // pred_fallthru
        _
    $region20: #{mab_forward.10} parent=5 // pred_fallthru
      _
    %p111 = scmp.le.s32.totalorder 1, %s8
    %p112 = scmp.lt.s32.totalorder %s8, 3
    %p113 = pnand %p111, %p112
    %p114 = pneg %p113
    // Predicated region
    $region25: #{mab_forward.10} parent=5 // pred_check
      _
    $region26: #{mab_forward.10} parent=5 // pred_check_branch
      %116 = sbr.rel (%p113) target = $region28
    $region27: #{mab_forward.10} parent=5 // pred_region
      %s117 = ssub.s32 %s8, 1
      %p118 = scmp.lt.s32.totalorder %s13, 1
      %s119 = scalar_select %p118, %s13, 1
      %s120 = smul.addr %s119, 2
      %s121 = smul.addr %s120, 4
      %s122 = scalar_lea.vmem %s0, %s121
      %p123 = pneg %p34
      %p124 = pneg %p31
      %p125 = pneg %p55
      %p126 = pneg %p52
      %p127 = pneg %p81
      %p128 = pneg %p78
      %p129 = scmp.lt.s32.totalorder %s13, 1
      %s130 = scalar_select %p129, %s13, 1
      %s131 = smul.addr %s130, 2
      %s132 = smul.addr %s131, 4
      %s133 = scalar_lea.vmem %s2, %s132
      %p134 = scmp.lt.s32.totalorder %s13, 1
      %s135 = scalar_select %p134, %s13, 1
      %s136 = smul.addr %s135, 2
      %s137 = smul.addr %s136, 4
      %s138 = scalar_lea.vmem %s0, %s137
      %p139 = scmp.lt.s32.totalorder %s13, 1
      %s140 = scalar_select %p139, %s13, 1
      %s141 = smul.addr %s140, 2
      %s142 = smul.addr %s141, 4
      %s143 = scalar_lea.vmem %s2, %s142
      %v144 = vld [vmem:[%s138] sm:$0xff]
      %v146 = vcombine.high %v144, %v144
      %vm148 = vcmask 1043456
      %v149 = vsel %vm148, %v144, 0.0
      %v150 = vsel %vm148, %v146, 0.0
      %v151 = vadd.f32 %v149, %v150
      %152 = vadd.xlane.f32.xlu0 %v151
      %v153 = vpop.xlane.xlu0 %152
      %v154 = vrcp.pop 256.0
      %v155 = vmul.f32 %v153, %v154
      %v156 = vld [vmem:[%s1] sm:$0xf]
      %v158 = vlaneseq
      %v159 = vand.u32 %v158, 127
      %v160 = vlaneseq
      %v161 = vshrl.u32 %v160, 7
      %v162 = vsub.s32 %v159, %v161
      %v163 = vrot.slane %v155, %v162
      %vm164 = vcmask 31744
      %v165 = vsel %vm164, %v163, 0
      %v168 = vsel %vm148, %v156, 0
      %170 = vmatprep.subr.mxu0 0.0
      %171 = vmatpush1.msra.mxu0 0.0
      %172 = vmatprep.subr.mxu0 0.0
      %173 = vmatpush1.msra.mxu0 0.0
      %174 = vmatprep.subr.mxu0 0.0
      %175 = vmatpush1.msra.mxu0 0.0
      %176 = vmatprep.subr.mxu0 0.0
      %177 = vmatpush1.msra.mxu0 0.0
      %178 = vmatprep.subr.mxu0 0.0
      %179 = vmatpush1.msra.mxu0 0.0
      %180 = vmatprep.subr.mxu0 0.0
      %181 = vmatpush1.msra.mxu0 0.0
      %182 = vmatprep.subr.mxu0 0.0
      %183 = vmatpush1.msra.mxu0 0.0
      %184 = vmatprep.subr.mxu0 0.0
      %185 = vmatpush1.msra.mxu0 0.0
      %186 = vmatprep.subr.mxu0 0.0
      %187 = vmatpush1.msra.mxu0 0.0
      %188 = vmatprep.subr.mxu0 0.0
      %189 = vmatpush1.msra.mxu0 0.0
      %190 = vmatprep.subr.mxu0 0.0
      %191 = vmatpush1.msra.mxu0 0.0
      %192 = vmatprep.subr.mxu0 0.0
      %193 = vmatpush1.msra.mxu0 0.0
      %194 = vmatprep.subr.mxu0 0.0
      %195 = vmatpush1.msra.mxu0 0.0
      %196 = vmatprep.subr.mxu0 0.0
      %197 = vmatpush1.msra.mxu0 0.0
      %198 = vmatprep.subr.mxu0 0.0
      %199 = vmatpush1.msra.mxu0 0.0
      %200 = vmatprep.subr.mxu0 0.0
      %201 = vmatpush1.msra.mxu0 %v168
      %202 = vmatprep.subr.mxu0 0.0
      %203 = vmatpush2.msra.mxu0 0.0
      %204 = vmatprep.subr.mxu0 0.0
      %205 = vmatpush2.msra.mxu0 0.0
      %206 = vmatprep.subr.mxu0 0.0
      %207 = vmatpush2.msra.mxu0 0.0
      %208 = vmatprep.subr.mxu0 0.0
      %209 = vmatpush2.msra.mxu0 0.0
      %210 = vmatprep.subr.mxu0 0.0
      %211 = vmatpush2.msra.mxu0 0.0
      %212 = vmatprep.subr.mxu0 0.0
      %213 = vmatpush2.msra.mxu0 0.0
      %214 = vmatprep.subr.mxu0 0.0
      %215 = vmatpush2.msra.mxu0 0.0
      %216 = vmatprep.subr.mxu0 0.0
      %217 = vmatpush2.msra.mxu0 0.0
      %218 = vmatprep.subr.mxu0 0.0
      %219 = vmatpush2.msra.mxu0 0.0
      %220 = vmatprep.subr.mxu0 0.0
      %221 = vmatpush2.msra.mxu0 0.0
      %222 = vmatprep.subr.mxu0 0.0
      %223 = vmatpush2.msra.mxu0 0.0
      %224 = vmatprep.subr.mxu0 0.0
      %225 = vmatpush2.msra.mxu0 0.0
      %226 = vmatprep.subr.mxu0 0.0
      %227 = vmatpush2.msra.mxu0 0.0
      %228 = vmatprep.subr.mxu0 0.0
      %229 = vmatpush2.msra.mxu0 0.0
      %230 = vmatprep.subr.mxu0 0.0
      %231 = vmatpush2.msra.mxu0 0.0
      %232 = vmatprep.subr.mxu0 0.0
      %233 = vmatpush2.msra.mxu0 0.0
      %234 = vmatprep.mubr.f32.mxu0 0.0
      %235 = vmatmul.mubr.f32.gmra.mxu0 %v165
      %v236 = vpop.f32.mrf.mxu0
      %v237 = vadd.f32 0.0, %v236
      %v238 = vpop.f32.mrf.mxu0
      %239 = vdwg.mxu0
      %v240 = vsub.f32 0.0, %v237
      %v241 = vmul.f32 %v240, 1.442695
      %v242 = vpow.pop %v241
      %v243 = vadd.f32 %v242, 1.0
      %v244 = vrcp.pop %v243
      %v245 = vmul.f32 1.0, %v244
      %v246 = vadd.f32 %v245, 1.0
      %v247 = vlaneseq
      %v248 = vshrl.u32 %v247, 7
      %v249 = vsub.s32 0, %v248
      %v250 = vrot.slane %v246, %v249
      %252 = vbcast.lane.b32.xlu0 %v250, 256
      %v253 = vpop.permute.xlu0 %252
      %v256 = vunpack.c.l.s4 839922192
      %v257 = vunpack.c.0.s8 %v256
      %v258 = vlaneseq
      %v259 = vshrl.u32 %v258, 7
      %v260 = vsub.s32 %v257, %v259
      %v261 = vrot.slane %v253, %v260
      %v263 = vmul.f32 %v144, %v261
      %264 = vst [vmem:[%s143] sm:$0xff] %v263
      %p265 = scmp.lt.s32.totalorder %s13, 1
      %s266 = scalar_select %p265, %s13, 1
      %s267 = smul.addr %s266, 2
      %s268 = smul.addr %s267, 4
      %s269 = scalar_lea.vmem %s2, %s268
      // Predicated region
      $region29: #{mab_forward.10} parent=27 // pred_check
        %p270 = pneg %p78
      $region30: #{mab_forward.10} parent=27 // pred_check_branch
        %272 = sbr.rel (%p270) target = $region32
      $region31: #{mab_forward.10} parent=27 // pred_region
        _
      $region32: #{mab_forward.10} parent=27 // pred_fallthru
        _
    $region28: #{mab_forward.10} parent=5 // pred_fallthru
      _
    %p273 = scmp.le.s32.totalorder 2, %s8
    // Predicated region
    $region33: #{mab_forward.10} parent=5 // pred_check
      %p274 = pneg %p273
    $region34: #{mab_forward.10} parent=5 // pred_check_branch
      %276 = sbr.rel (%p274) target = $region36
    $region35: #{mab_forward.10} parent=5 // pred_region
      %s277 = ssub.s32 %s8, 2
      // Predicated region
      $region37: #{mab_forward.10} parent=35 // pred_check
        %p278 = pneg %p84
      $region38: #{mab_forward.10} parent=35 // pred_check_branch
        %280 = sbr.rel (%p278) target = $region40
      $region39: #{mab_forward.10} parent=35 // pred_region
        %p281 = scmp.lt.s32.totalorder %s14, 1
        %s282 = scalar_select %p281, %s14, 1
        %s283 = smul.addr %s282, 2
        %s284 = smul.addr %s283, 4
        %s285 = scalar_lea.vmem %s2, %s284
      $region40: #{mab_forward.10} parent=35 // pred_fallthru
        _
    $region36: #{mab_forward.10} parent=5 // pred_fallthru
      _
  $region6: #{mab_forward.10} parent=0 // loop_footer
    %s12 = sadd.s32 1, %s8
  $region7: #{mab_forward.10} parent=0 // loop_footer_branch
    %7 = sbr.rel target = $region3
  $region8: #{mab_forward.10} parent=0 // loop_exit
    _

// kernel: mab_forward.19
$region0: #{mab_forward.19}
  #allocation0 [shape = 'u32[]', space=smem, size = 0x4, offset = 0x4, fixed_abs, tag = 'smem constant byte address 0x4 - core index']
  #allocation1 [shape = 'u32[144,128]{1,0:T(1,128)}', space=vmem, size = 0x12000, scoped, tag = 'internal scratch']
  #allocation2 [shape = 'f32[8,256]{1,0:T(8,128)}', space=vmem, size = 0x2000, scoped, tag = 'scratch operand']
  %s0 = inlined_call_operand.vmem [shape: bf16[8,108], index: 0, kind: input, shape index: {}]
  %s1 = inlined_call_operand.vmem [shape: bf16[2,108,256], index: 1, kind: input, shape index: {}]
  %s2 = inlined_call_operand.vmem [shape: f32[8,1], index: 2, kind: input, shape index: {}]
  %s3 = inlined_call_operand.vmem [shape: f32[2,8,256], index: 3, kind: input, shape index: {}]
  %s4 = inlined_call_operand.vmem [shape: f32[2,8,256], index: 4, kind: output, shape index: {}]
  %s5 = sld [smem:[#allocation0]]
  $region57: #{mab_forward.19} parent=0
    _
  %s7 = ssub.s32 1, %s5
  %s8 = scalar_select 0, %s7, %s5
  loop: start=0, step=1, limit=4
  $region2: #{mab_forward.19} parent=0 // loop_pre_header
    _
  $region3: #{mab_forward.19} parent=0 // loop_header
    %s10 = sphi 0, %s14
    %p11 = scmp.ge.s32.totalorder %s10, 4
    %s17 = sphi 0, %s36
    %s18 = sphi 0, %s32
    %s19 = sphi 0, %s28
    %s20 = sphi 0, %s17
    %s21 = sphi 0, %s18
    %s22 = sphi 0, %s19
    %s23 = sphi 0, %s20
    %s24 = sphi 0, %s21
    %s25 = sphi 0, %s22
    %s39 = sphi 0, %s41
    %s42 = sphi 0, %s39
    %s43 = sphi 0, %s42
    %s59 = sphi 0, %s43
    %s69 = sphi 0, %s71
    %s72 = sphi 0, %s69
    %s73 = sphi 0, %s72
    %s89 = sphi 0, %s73
    %s93 = sphi 0, %s93
    %s95 = sphi 0, %s93
    %s96 = sphi 0, %s95
    %s110 = sphi 0, %s96
    %s118 = sphi 0, %s120
    %s121 = sphi 0, %s118
    %s122 = sphi 0, %s121
    %s138 = sphi 0, %s122
    %s146 = sphi 0, %s148
    %s149 = sphi 0, %s146
    %s150 = sphi 0, %s149
    %s166 = sphi 0, %s150
  $region4: #{mab_forward.19} parent=0 // loop_header_branch
    %13 = sbr.rel (%p11) target = $region8
  $region5: #{mab_forward.19} parent=0 // loop_body
    %s15 = ssub.s32 %s10, 1
    %s16 = ssub.s32 %s10, 2
    %s26 = sadd.s32 1, %s19
    %p27 = scmp.ge.s32.totalorder %s26, 1
    %s28 = scalar_select %p27, 0, %s26
    %s29 = sadd.s32 1, %s18
    %s30 = scalar_select %p27, %s29, %s18
    %p31 = scmp.ge.s32.totalorder %s30, 1
    %s32 = scalar_select %p31, 0, %s30
    %s33 = sadd.s32 1, %s17
    %s34 = scalar_select %p31, %s33, %s17
    %p35 = scmp.ge.s32.totalorder %s34, 2
    %s36 = scalar_select %p35, 0, %s34
    %s37 = ssub.s32 %s19, %s28
    %p38 = scmp.eq.s32.totalorder %s37, 0
    %s40 = sadd.s32 %s39, 1
    %s41 = scalar_select %p38, %s39, %s40
    %p44 = pneg %p38
    %p45 = scmp.eq.s32.totalorder %s10, 1
    %p46 = por %p44, %p45
    %p47 = scmp.ne.s32.totalorder %s39, %s42
    %p48 = scmp.eq.s32.totalorder %s10, 0
    %p49 = por %p47, %p48
    %p50 = scmp.ne.s32.totalorder %s39, %s42
    %p51 = scmp.eq.s32.totalorder %s15, 1
    %p52 = por %p50, %p51
    %p53 = scmp.ne.s32.totalorder %s42, %s43
    %p54 = scmp.eq.s32.totalorder %s15, 0
    %p55 = por %p53, %p54
    %p56 = scmp.ne.s32.totalorder %s42, %s43
    %p57 = scmp.eq.s32.totalorder %s16, 1
    %p58 = por %p56, %p57
    %p60 = scmp.ne.s32.totalorder %s43, %s59
    %p61 = scmp.eq.s32.totalorder %s16, 0
    %p62 = por %p60, %p61
    %s63 = ssub.s32 %s17, %s36
    %s64 = ssub.s32 %s19, %s28
    %s65 = sor.u32 %s63, %s64
    %s66 = ssub.s32 %s18, %s32
    %s67 = sor.u32 %s65, %s66
    %p68 = scmp.eq.s32.totalorder %s67, 0
    %s70 = sadd.s32 %s69, 1
    %s71 = scalar_select %p68, %s69, %s70
    %p74 = pneg %p68
    %p75 = scmp.eq.s32.totalorder %s10, 1
    %p76 = por %p74, %p75
    %p77 = scmp.ne.s32.totalorder %s69, %s72
    %p78 = scmp.eq.s32.totalorder %s10, 0
    %p79 = por %p77, %p78
    %p80 = scmp.ne.s32.totalorder %s69, %s72
    %p81 = scmp.eq.s32.totalorder %s15, 1
    %p82 = por %p80, %p81
    %p83 = scmp.ne.s32.totalorder %s72, %s73
    %p84 = scmp.eq.s32.totalorder %s15, 0
    %p85 = por %p83, %p84
    %p86 = scmp.ne.s32.totalorder %s72, %s73
    %p87 = scmp.eq.s32.totalorder %s16, 1
    %p88 = por %p86, %p87
    %p90 = scmp.ne.s32.totalorder %s73, %s89
    %p91 = scmp.eq.s32.totalorder %s16, 0
    %p92 = por %p90, %p91
    %s94 = sadd.s32 %s93, 1
    %p97 = scmp.eq.s32.totalorder %s10, 1
    %p98 = scmp.ne.s32.totalorder %s93, %s95
    %p99 = scmp.eq.s32.totalorder %s10, 0
    %p100 = por %p98, %p99
    %p101 = scmp.ne.s32.totalorder %s93, %s95
    %p102 = scmp.eq.s32.totalorder %s15, 1
    %p103 = por %p101, %p102
    %p104 = scmp.ne.s32.totalorder %s95, %s96
    %p105 = scmp.eq.s32.totalorder %s15, 0
    %p106 = por %p104, %p105
    %p107 = scmp.ne.s32.totalorder %s95, %s96
    %p108 = scmp.eq.s32.totalorder %s16, 1
    %p109 = por %p107, %p108
    %p111 = scmp.ne.s32.totalorder %s96, %s110
    %p112 = scmp.eq.s32.totalorder %s16, 0
    %p113 = por %p111, %p112
    %s114 = ssub.s32 %s17, %s36
    %s115 = ssub.s32 %s18, %s32
    %s116 = sor.u32 %s114, %s115
    %p117 = scmp.eq.s32.totalorder %s116, 0
    %s119 = sadd.s32 %s118, 1
    %s120 = scalar_select %p117, %s118, %s119
    %p123 = pneg %p117
    %p124 = scmp.eq.s32.totalorder %s10, 1
    %p125 = por %p123, %p124
    %p126 = scmp.ne.s32.totalorder %s118, %s121
    %p127 = scmp.eq.s32.totalorder %s10, 0
    %p128 = por %p126, %p127
    %p129 = scmp.ne.s32.totalorder %s118, %s121
    %p130 = scmp.eq.s32.totalorder %s15, 1
    %p131 = por %p129, %p130
    %p132 = scmp.ne.s32.totalorder %s121, %s122
    %p133 = scmp.eq.s32.totalorder %s15, 0
    %p134 = por %p132, %p133
    %p135 = scmp.ne.s32.totalorder %s121, %s122
    %p136 = scmp.eq.s32.totalorder %s16, 1
    %p137 = por %p135, %p136
    %p139 = scmp.ne.s32.totalorder %s122, %s138
    %p140 = scmp.eq.s32.totalorder %s16, 0
    %p141 = por %p139, %p140
    %s142 = ssub.s32 %s17, %s36
    %s143 = ssub.s32 %s18, %s32
    %s144 = sor.u32 %s142, %s143
    %p145 = scmp.eq.s32.totalorder %s144, 0
    %s147 = sadd.s32 %s146, 1
    %s148 = scalar_select %p145, %s146, %s147
    %p151 = pneg %p145
    %p152 = scmp.eq.s32.totalorder %s10, 1
    %p153 = por %p151, %p152
    %p154 = scmp.ne.s32.totalorder %s146, %s149
    %p155 = scmp.eq.s32.totalorder %s10, 0
    %p156 = por %p154, %p155
    %p157 = scmp.ne.s32.totalorder %s146, %s149
    %p158 = scmp.eq.s32.totalorder %s15, 1
    %p159 = por %p157, %p158
    %p160 = scmp.ne.s32.totalorder %s149, %s150
    %p161 = scmp.eq.s32.totalorder %s15, 0
    %p162 = por %p160, %p161
    %p163 = scmp.ne.s32.totalorder %s149, %s150
    %p164 = scmp.eq.s32.totalorder %s16, 1
    %p165 = por %p163, %p164
    %p167 = scmp.ne.s32.totalorder %s150, %s166
    %p168 = scmp.eq.s32.totalorder %s16, 0
    %p169 = por %p167, %p168
    %p170 = scmp.le.s32.totalorder 1, %s10
    %p171 = scmp.lt.s32.totalorder %s10, 3
    %p172 = pnand %p170, %p171
    %p173 = pneg %p172
    // Predicated region
    $region9: #{mab_forward.19} parent=5 // pred_check
      _
    $region10: #{mab_forward.19} parent=5 // pred_check_branch
      %175 = sbr.rel (%p172) target = $region12
    $region11: #{mab_forward.19} parent=5 // pred_region
      %s176 = ssub.s32 %s10, 1
      // Predicated region
      $region13: #{mab_forward.19} parent=11 // pred_check
        %p177 = pneg %p55
      $region14: #{mab_forward.19} parent=11 // pred_check_branch
        %179 = sbr.rel (%p177) target = $region16
      $region15: #{mab_forward.19} parent=11 // pred_region
        %p180 = scmp.lt.s32.totalorder %s22, 0
        %s181 = scalar_select %p180, %s22, 0
        %s182 = smul.addr %s181, 4
        %s183 = scalar_lea.vmem %s0, %s182
      $region16: #{mab_forward.19} parent=11 // pred_fallthru
        _
      // Predicated region
      $region17: #{mab_forward.19} parent=11 // pred_check
        %p184 = pneg %p106
      $region18: #{mab_forward.19} parent=11 // pred_check_branch
        %186 = sbr.rel (%p184) target = $region20
      $region19: #{mab_forward.19} parent=11 // pred_region
        _
      $region20: #{mab_forward.19} parent=11 // pred_fallthru
        _
    $region12: #{mab_forward.19} parent=5 // pred_fallthru
      _
    %p187 = scmp.lt.s32.totalorder %s10, 2
    // Predicated region
    $region21: #{mab_forward.19} parent=5 // pred_check
      %p188 = pneg %p187
    $region22: #{mab_forward.19} parent=5 // pred_check_branch
      %190 = sbr.rel (%p188) target = $region24
    $region23: #{mab_forward.19} parent=5 // pred_region
      // Predicated region
      $region25: #{mab_forward.19} parent=23 // pred_check
        %p191 = pneg %p79
      $region26: #{mab_forward.19} parent=23 // pred_check_branch
        %193 = sbr.rel (%p191) target = $region28
      $region27: #{mab_forward.19} parent=23 // pred_region
        %s194 = smul.u32 14, %s19
        %s195 = smul.u32 2, %s18
        %p196 = scmp.lt.s32.totalorder %s17, 1
        %s197 = scalar_select %p196, %s17, 1
        %p198 = scmp.lt.s32.totalorder %s194, 13
        %s199 = scalar_select %p198, %s194, 13
        %p200 = scmp.lt.s32.totalorder %s195, 1
        %s201 = scalar_select %p200, %s195, 1
        %s202 = smul.addr %s199, 2
        %s203 = sadd.s32 %s201, %s202
        %s204 = smul.addr %s197, 28
        %s205 = sadd.s32 %s203, %s204
        %s206 = smul.addr %s205, 4
        %s207 = scalar_lea.vmem %s1, %s206
        %s208 = smul.u32 14, %s19
        %s209 = smul.u32 2, %s18
      $region28: #{mab_forward.19} parent=23 // pred_fallthru
        _
      // Predicated region
      $region29: #{mab_forward.19} parent=23 // pred_check
        %p210 = pneg %p128
      $region30: #{mab_forward.19} parent=23 // pred_check_branch
        %212 = sbr.rel (%p210) target = $region32
      $region31: #{mab_forward.19} parent=23 // pred_region
        %s213 = smul.u32 2, %s18
        %p214 = scmp.lt.s32.totalorder %s17, 1
        %s215 = scalar_select %p214, %s17, 1
        %p216 = scmp.lt.s32.totalorder %s213, 1
        %s217 = scalar_select %p216, %s213, 1
        %s218 = smul.addr %s215, 2
        %s219 = sadd.s32 %s217, %s218
        %s220 = smul.addr %s219, 8
        %s221 = scalar_lea.vmem %s3, %s220
        %s222 = smul.u32 2, %s18
      $region32: #{mab_forward.19} parent=23 // pred_fallthru
        _
    $region24: #{mab_forward.19} parent=5 // pred_fallthru
      _
    %p223 = scmp.le.s32.totalorder 1, %s10
    %p224 = scmp.lt.s32.totalorder %s10, 3
    %p225 = pnand %p223, %p224
    %p226 = pneg %p225
    // Predicated region
    $region33: #{mab_forward.19} parent=5 // pred_check
      _
    $region34: #{mab_forward.19} parent=5 // pred_check_branch
      %228 = sbr.rel (%p225) target = $region36
    $region35: #{mab_forward.19} parent=5 // pred_region
      %s229 = ssub.s32 %s10, 1
      %p230 = scmp.lt.s32.totalorder %s22, 0
      %s231 = scalar_select %p230, %s22, 0
      %s232 = smul.addr %s231, 4
      %s233 = scalar_lea.vmem %s0, %s232
      %p234 = pneg %p55
      %p235 = pneg %p52
      %s236 = smul.u32 14, %s22
      %s237 = smul.u32 2, %s21
      %p238 = scmp.lt.s32.totalorder %s20, 1
      %s239 = scalar_select %p238, %s20, 1
      %p240 = scmp.lt.s32.totalorder %s236, 13
      %s241 = scalar_select %p240, %s236, 13
      %p242 = scmp.lt.s32.totalorder %s237, 1
      %s243 = scalar_select %p242, %s237, 1
      %s244 = smul.addr %s241, 2
      %s245 = sadd.s32 %s243, %s244
      %s246 = smul.addr %s239, 28
      %s247 = sadd.s32 %s245, %s246
      %s248 = smul.addr %s247, 4
      %s249 = scalar_lea.vmem %s1, %s248
      %p250 = pneg %p85
      %p251 = pneg %p82
      %p252 = pneg %p106
      %p253 = pneg %p103
      %s254 = smul.u32 2, %s21
      %p255 = scmp.lt.s32.totalorder %s20, 1
      %s256 = scalar_select %p255, %s20, 1
      %p257 = scmp.lt.s32.totalorder %s254, 1
      %s258 = scalar_select %p257, %s254, 1
      %s259 = smul.addr %s256, 2
      %s260 = sadd.s32 %s258, %s259
      %s261 = smul.addr %s260, 8
      %s262 = scalar_lea.vmem %s3, %s261
      %p263 = pneg %p134
      %p264 = pneg %p131
      %p265 = pneg %p162
      %p266 = pneg %p159
      %s267 = smul.u32 2, %s21
      %p268 = scmp.lt.s32.totalorder %s20, 1
      %s269 = scalar_select %p268, %s20, 1
      %p270 = scmp.lt.s32.totalorder %s267, 1
      %s271 = scalar_select %p270, %s267, 1
      %s272 = smul.addr %s269, 2
      %s273 = sadd.s32 %s271, %s272
      %s274 = smul.addr %s273, 8
      %s275 = scalar_lea.vmem %s4, %s274
      %p276 = scmp.lt.s32.totalorder %s22, 0
      %s277 = scalar_select %p276, %s22, 0
      %s278 = smul.addr %s277, 4
      %s279 = scalar_lea.vmem %s0, %s278
      %s280 = smul.u32 14, %s22
      %s281 = smul.u32 2, %s21
      %p282 = scmp.lt.s32.totalorder %s20, 1
      %s283 = scalar_select %p282, %s20, 1
      %p284 = scmp.lt.s32.totalorder %s280, 13
      %s285 = scalar_select %p284, %s280, 13
      %p286 = scmp.lt.s32.totalorder %s281, 1
      %s287 = scalar_select %p286, %s281, 1
      %s288 = smul.addr %s285, 2
      %s289 = sadd.s32 %s287, %s288
      %s290 = smul.addr %s283, 28
      %s291 = sadd.s32 %s289, %s290
      %s292 = smul.addr %s291, 4
      %s293 = scalar_lea.vmem %s1, %s292
      %s294 = smul.u32 14, %s22
      %s295 = smul.u32 2, %s21
      %s296 = smul.u32 2, %s21
      %p297 = scmp.lt.s32.totalorder %s20, 1
      %s298 = scalar_select %p297, %s20, 1
      %p299 = scmp.lt.s32.totalorder %s296, 1
      %s300 = scalar_select %p299, %s296, 1
      %s301 = smul.addr %s298, 2
      %s302 = sadd.s32 %s300, %s301
      %s303 = smul.addr %s302, 8
      %s304 = scalar_lea.vmem %s3, %s303
      %s305 = smul.u32 2, %s21
      %s306 = smul.u32 2, %s21
      %p307 = scmp.lt.s32.totalorder %s20, 1
      %s308 = scalar_select %p307, %s20, 1
      %p309 = scmp.lt.s32.totalorder %s306, 1
      %s310 = scalar_select %p309, %s306, 1
      %s311 = smul.addr %s308, 2
      %s312 = sadd.s32 %s310, %s311
      %s313 = smul.addr %s312, 8
      %s314 = scalar_lea.vmem %s4, %s313
      %s315 = smul.u32 2, %s21
      %p317 = scmp.eq.s32.totalorder %s22, 0
      // Predicated region
      $region37: #{mab_forward.19} parent=35 // pred_check
        %p318 = pneg %p317
      $region38: #{mab_forward.19} parent=35 // pred_check_branch
        %320 = sbr.rel (%p318) target = $region40
      $region39: #{mab_forward.19} parent=35 // pred_region
        %321 = vst [vmem:[#allocation2] sm:$0xff] 0.0
        %322 = vst [vmem:[#allocation2 + $0x8] sm:$0xff] 0.0
      $region40: #{mab_forward.19} parent=35 // pred_fallthru
        _
      %v323 = vld [vmem:[#allocation2] sm:$0xff]
      %v324 = vld [vmem:[#allocation2 + $0x8] sm:$0xff]
      %v325 = vld [vmem:[%s279] sm:$0xf]
      %v326 = vld [vmem:[%s293] sm:$0xff]
      %v327 = vld [vmem:[%s293 + $0x8] sm:$0xff]
      %v328 = vld [vmem:[%s293 + $0x10] sm:$0xff]
      %v329 = vld [vmem:[%s293 + $0x18] sm:$0xff]
      %v330 = vld [vmem:[%s293 + $0x20] sm:$0xff]
      %v331 = vld [vmem:[%s293 + $0x28] sm:$0xff]
      %v332 = vld [vmem:[%s293 + $0x30] sm:$0xff]
      %v333 = vld [vmem:[%s293 + $0x38] sm:$0xff]
      %v334 = vld [vmem:[%s293 + $0x40] sm:$0xff]
      %v335 = vld [vmem:[%s293 + $0x48] sm:$0xff]
      %v336 = vld [vmem:[%s293 + $0x50] sm:$0xff]
      %v337 = vld [vmem:[%s293 + $0x58] sm:$0xff]
      %v338 = vld [vmem:[%s293 + $0x60] sm:$0xff]
      %v339 = vld [vmem:[%s293 + $0x68] sm:$0x33]
      %v354 = vunpack.c.l.b16 %v326
      %v355 = vunpack.c.h.b16 %v326
      %v356 = vunpack.c.l.b16 %v327
      %v357 = vunpack.c.h.b16 %v327
      %v358 = vunpack.c.l.b16 %v328
      %v359 = vunpack.c.h.b16 %v328
      %v360 = vunpack.c.l.b16 %v329
      %v361 = vunpack.c.h.b16 %v329
      %v362 = vunpack.c.l.b16 %v330
      %v363 = vunpack.c.h.b16 %v330
      %v364 = vunpack.c.l.b16 %v331
      %v365 = vunpack.c.h.b16 %v331
      %v366 = vunpack.c.l.b16 %v332
      %v367 = vunpack.c.h.b16 %v332
      %v368 = vunpack.c.l.b16 %v333
      %v369 = vunpack.c.h.b16 %v333
      %v370 = vunpack.c.l.b16 %v334
      %v371 = vunpack.c.h.b16 %v334
      %v372 = vunpack.c.l.b16 %v335
      %v373 = vunpack.c.h.b16 %v335
      %v374 = vunpack.c.l.b16 %v336
      %v375 = vunpack.c.h.b16 %v336
      %v376 = vunpack.c.l.b16 %v337
      %v377 = vunpack.c.h.b16 %v337
      %v378 = vunpack.c.l.b16 %v338
      %v379 = vunpack.c.h.b16 %v338
      %v380 = vunpack.c.l.b16 %v339
      %v381 = vunpack.c.h.b16 %v339
      %v382 = vpack.c.b16 %v356, %v354
      %v383 = vpack.c.b16 %v357, %v355
      %v384 = vpack.c.b16 %v360, %v358
      %v385 = vpack.c.b16 %v361, %v359
      %v386 = vpack.c.b16 %v364, %v362
      %v387 = vpack.c.b16 %v365, %v363
      %v388 = vpack.c.b16 %v368, %v366
      %v389 = vpack.c.b16 %v369, %v367
      %v390 = vpack.c.b16 %v372, %v370
      %v391 = vpack.c.b16 %v373, %v371
      %v392 = vpack.c.b16 %v376, %v374
      %v393 = vpack.c.b16 %v377, %v375
      %v394 = vpack.c.b16 %v380, %v378
      %v395 = vpack.c.b16 %v381, %v379
      %vm408 = vcmask 883712
      %v410 = vsel %vm408, %v325, 0
      %vm412 = vcmask 1045504
      %v414 = vsel %vm412, %v394, 0
      %v417 = vsel %vm412, %v395, 0
      %419 = vmatprep.subr.bf16.mxu0 0
      %420 = vmatpush1.bf16.msra.mxu0 0
      %421 = vmatprep.subr.bf16.mxu0 %v417
      %422 = vmatpush1.bf16.msra.mxu0 %v414
      %423 = vmatprep.subr.bf16.mxu0 %v393
      %424 = vmatpush1.bf16.msra.mxu0 %v392
      %425 = vmatprep.subr.bf16.mxu0 %v391
      %426 = vmatpush1.bf16.msra.mxu0 %v390
      %427 = vmatprep.subr.bf16.mxu0 %v389
      %428 = vmatpush1.bf16.msra.mxu0 %v388
      %429 = vmatprep.subr.bf16.mxu0 %v387
      %430 = vmatpush1.bf16.msra.mxu0 %v386
      %431 = vmatprep.subr.bf16.mxu0 %v385
      %432 = vmatpush1.bf16.msra.mxu0 %v384
      %433 = vmatprep.subr.bf16.mxu0 %v383
      %434 = vmatpush1.bf16.msra.mxu0 %v382
      %435 = vmatprep.subr.bf16.mxu0 0
      %436 = vmatpush2.bf16.msra.mxu0 0
      %437 = vmatprep.subr.bf16.mxu0 0
      %438 = vmatpush2.bf16.msra.mxu0 0
      %439 = vmatprep.subr.bf16.mxu0 0
      %440 = vmatpush2.bf16.msra.mxu0 0
      %441 = vmatprep.subr.bf16.mxu0 0
      %442 = vmatpush2.bf16.msra.mxu0 0
      %443 = vmatprep.subr.bf16.mxu0 0
      %444 = vmatpush2.bf16.msra.mxu0 0
      %445 = vmatprep.subr.bf16.mxu0 0
      %446 = vmatpush2.bf16.msra.mxu0 0
      %447 = vmatprep.subr.bf16.mxu0 0
      %448 = vmatpush2.bf16.msra.mxu0 0
      %449 = vmatprep.subr.bf16.mxu0 0
      %450 = vmatpush2.bf16.msra.mxu0 0
      %451 = vmatprep.mubr.bf16.mxu0 0
      %452 = vmatmul.mubr.bf16.gmra.mxu0 %v410
      %v453 = vpop.f32.mrf.mxu0
      %v454 = vadd.f32 0.0, %v453
      %v455 = vpop.f32.mrf.mxu0
      %v456 = vadd.f32 0.0, %v455
      %v457 = vpop.f32.mrf.mxu0
      %v458 = vpop.f32.mrf.mxu0
      %459 = vdwg.mxu0
      %v460 = vadd.f32 %v323, %v454
      %v461 = vadd.f32 %v324, %v456
      %462 = vst [vmem:[#allocation2] sm:$0xff] %v460
      %463 = vst [vmem:[#allocation2 + $0x8] sm:$0xff] %v461
      // Predicated region
      $region41: #{mab_forward.19} parent=35 // pred_check
        %p464 = pneg %p317
      $region42: #{mab_forward.19} parent=35 // pred_check_branch
        %466 = sbr.rel (%p464) target = $region44
      $region43: #{mab_forward.19} parent=35 // pred_region
        %v467 = vld [vmem:[#allocation2] sm:$0xff]
        %v468 = vld [vmem:[#allocation2 + $0x8] sm:$0xff]
        %v469 = vld [vmem:[%s2] sm:$0xff]
        %471 = vset.pattern.permute.xlu0 0
        %472 = vperm.xlu0 %471, %v469
        %v473 = vpop.permute.xlu0 %472
        %v475 = vadd.f32 %v467, %v473
        %v476 = vadd.f32 %v468, %v473
        %v477 = vld [vmem:[%s304] sm:$0xff]
        %v478 = vld [vmem:[%s304 + $0x8] sm:$0xff]
        %v479 = vadd.f32 %v475, %v477
        %v480 = vadd.f32 %v476, %v478
        %481 = vst [vmem:[%s314] sm:$0xff] %v479
        %482 = vst [vmem:[%s314 + $0x8] sm:$0xff] %v480
      $region44: #{mab_forward.19} parent=35 // pred_fallthru
        _
      %s483 = smul.u32 2, %s21
      %p484 = scmp.lt.s32.totalorder %s20, 1
      %s485 = scalar_select %p484, %s20, 1
      %p486 = scmp.lt.s32.totalorder %s483, 1
      %s487 = scalar_select %p486, %s483, 1
      %s488 = smul.addr %s485, 2
      %s489 = sadd.s32 %s487, %s488
      %s490 = smul.addr %s489, 8
      %s491 = scalar_lea.vmem %s4, %s490
      // Predicated region
      $region45: #{mab_forward.19} parent=35 // pred_check
        %p492 = pneg %p159
      $region46: #{mab_forward.19} parent=35 // pred_check_branch
        %494 = sbr.rel (%p492) target = $region48
      $region47: #{mab_forward.19} parent=35 // pred_region
        %s495 = smul.u32 2, %s21
      $region48: #{mab_forward.19} parent=35 // pred_fallthru
        _
    $region36: #{mab_forward.19} parent=5 // pred_fallthru
      _
    %p496 = scmp.le.s32.totalorder 2, %s10
    // Predicated region
    $region49: #{mab_forward.19} parent=5 // pred_check
      %p497 = pneg %p496
    $region50: #{mab_forward.19} parent=5 // pred_check_branch
      %499 = sbr.rel (%p497) target = $region52
    $region51: #{mab_forward.19} parent=5 // pred_region
      %s500 = ssub.s32 %s10, 2
      // Predicated region
      $region53: #{mab_forward.19} parent=51 // pred_check
        %p501 = pneg %p165
      $region54: #{mab_forward.19} parent=51 // pred_check_branch
        %503 = sbr.rel (%p501) target = $region56
      $region55: #{mab_forward.19} parent=51 // pred_region
        %s504 = smul.u32 2, %s24
        %p505 = scmp.lt.s32.totalorder %s23, 1
        %s506 = scalar_select %p505, %s23, 1
        %p507 = scmp.lt.s32.totalorder %s504, 1
        %s508 = scalar_select %p507, %s504, 1
        %s509 = smul.addr %s506, 2
        %s510 = sadd.s32 %s508, %s509
        %s511 = smul.addr %s510, 8
        %s512 = scalar_lea.vmem %s4, %s511
      $region56: #{mab_forward.19} parent=51 // pred_fallthru
        _
    $region52: #{mab_forward.19} parent=5 // pred_fallthru
      _
  $region6: #{mab_forward.19} parent=0 // loop_footer
    %s14 = sadd.s32 1, %s10
  $region7: #{mab_forward.19} parent=0 // loop_footer_branch
    %9 = sbr.rel target = $region3
  $region8: #{mab_forward.19} parent=0 // loop_exit
    _

</llo_original>
